<compile_context>
chip_gen: v6e
topology: v6e:2x2x1
jax: 0.10.0
libtpu: 0.0.40
codegen_flags: <defaults>
</compile_context>

<pallas_src>
import numpy as np
import jax
import jax.numpy as jnp
from jax.experimental import pallas as pl
from jax.experimental.pallas import tpu as pltpu

SCALE = 8                       # F.interpolate(scale_factor=1/8)
_GRAY = (0.2989, 0.587, 0.114)  # grayscale weights (sum = 0.9999)


# ----------------------------- parameter builders ---------------------------

def _bilinear_downsample_matrix(in_size: int, out_size: int) -> np.ndarray:
    """1-D bilinear resize (align_corners=False) as a matrix: out = M @ in."""
    scale = in_size / out_size
    M = np.zeros((out_size, in_size), np.float32)
    for o in range(out_size):
        src = scale * (o + 0.5) - 0.5
        src = max(src, 0.0)
        i0 = min(int(np.floor(src)), in_size - 1)
        i1 = min(i0 + 1, in_size - 1)
        frac = src - i0
        M[o, i0] += 1.0 - frac
        M[o, i1] += frac
    return M


def _vmem_ceiling_bytes() -> int:
    """Generation-aware VMEM budget with headroom below physical capacity."""
    phys = 64 << 20                       # conservative default (v7x per-TC)
    try:
        phys = int(pltpu.get_tpu_info().vmem_capacity_bytes)
    except Exception:                      # non-TPU backend / older jax
        pass
    # ~100 MiB on 128 MiB parts (v5e/v6e), ~52 MiB on 64 MiB parts (v7x).
    return int(max(32 << 20, min(phys - (12 << 20), 100 << 20)))


def _choose_batch_block(n: int, bytes_per_image: int, w: int,
                        max_block_bytes: int) -> int:
    """Pick per-step batch block Nb (must divide n).

    Preference order: fits the VMEM budget; leaves >=2 (ideally an even
    number of) grid steps so v7x's two TensorCores both get work; lane-dense
    output (Nb*w multiple of 128); as large as possible to amortize the
    ~0.35us/step pipeline overhead.
    """
    cap = max(1, max_block_bytes // max(1, bytes_per_image))
    best, best_score = 1, (-1, -1, -1, -1)
    for d in range(1, n + 1):
        if n % d != 0 or d > cap:
            continue
        steps = n // d
        score = (1 if steps >= 2 else 0,
                 1 if steps % 2 == 0 else 0,
                 1 if (d * w) % 128 == 0 else 0,
                 d)
        if score > best_score:
            best, best_score = d, score
    return best


# --------------------------------- kernel -----------------------------------

def _shift2d(x, delta, axis):
    """Neighbour fetch for a 2-D array: out[idx] = x[idx + delta] along `axis`.

    The element that wraps (or would read out of range) is zeroed by the
    caller's seam/border mask, so a cyclic XLU roll is used when the axis is
    tile-aligned; otherwise a slice+zero-pad fallback.
    """
    size = x.shape[axis]
    tile = 128 if axis == 1 else 8
    if size % tile == 0:
        return pltpu.roll(x, (-delta) % size, axis)   # XLU rotate (jnp.roll semantics)
    if axis == 1:
        z = jnp.zeros((x.shape[0], 1), x.dtype)
        return (jnp.concatenate([x[:, 1:], z], 1) if delta == 1
                else jnp.concatenate([z, x[:, :-1]], 1))
    z = jnp.zeros((1, x.shape[1]), x.dtype)
    return (jnp.concatenate([x[1:, :], z], 0) if delta == 1
            else jnp.concatenate([z, x[:-1, :]], 0))


def _mask_kernel(img_ref, swt_ref, shp_ref, out_ref, slab_ref):
    # img_ref:  (Nb, 3H, W)   producer dtype (f32 ok; cast to bf16 in-kernel)
    # swt_ref:  (W, w)        bf16  column-downsample (transposed), exact in bf16
    # shp_ref:  (h, 3H)       bf16  row-downsample with grayscale + /2 folded in
    # out_ref:  (2, h, Nb*w)  f32   lane-packed [mx | my]
    # slab_ref: (3H, Nb*w)    bf16  scratch: column-downsampled images
    nb = img_ref.shape[0]
    h = shp_ref.shape[0]
    w = swt_ref.shape[1]
    L = nb * w

    swt = swt_ref[...]
    # Column-downsample each image on the MXU (bf16 x bf16 -> f32) and pack
    # the results into one slab so the row stage is a single MXU call.
    for n in range(nb):
        col = jnp.dot(img_ref[n].astype(jnp.bfloat16), swt,
                      preferred_element_type=jnp.float32)             # (3H, w)
        slab_ref[:, n * w:(n + 1) * w] = col.astype(jnp.bfloat16)

    # Row downsample + grayscale + /2 for the whole block in one matmul.
    # +0.49995 = (sum of gray weights)/2 — the constant from the +1 offset
    # that survives the row-stochastic bilinear matrices.
    p = jnp.dot(shp_ref[...], slab_ref[...],
                preferred_element_type=jnp.float32) + 0.49995          # (h, L)

    # Seam / border masks, hoisted once and reused by both gradient channels.
    col_id = jax.lax.broadcasted_iota(jnp.int32, (h, L), 1) % w
    row_id = jax.lax.broadcasted_iota(jnp.int32, (h, L), 0)
    not_last_col, not_first_col = col_id != (w - 1), col_id != 0
    not_last_row, not_first_row = row_id != (h - 1), row_id != 0

    # Horizontal neighbours (lane rolls) with per-image zero padding.
    left = jnp.where(not_last_col, _shift2d(p, +1, 1), 0.0)    # value at j+1
    right = jnp.where(not_first_col, _shift2d(p, -1, 1), 0.0)  # value at j-1
    dh = left - right                    # horizontal [-1, 0, 1]
    sm = right + 2.0 * p + left          # horizontal [ 1, 2, 1]

    # Vertical neighbours (sublane rolls) with zero padding.
    gx = (jnp.where(not_first_row, _shift2d(dh, -1, 0), 0.0)
          + 2.0 * dh
          + jnp.where(not_last_row, _shift2d(dh, +1, 0), 0.0))         # Dx
    gy = (jnp.where(not_last_row, _shift2d(sm, +1, 0), 0.0)
          - jnp.where(not_first_row, _shift2d(sm, -1, 0), 0.0))        # Dy

    out_ref[0] = jnp.exp(-jnp.abs(gx))
    out_ref[1] = jnp.exp(-jnp.abs(gy))


# -------------------------------- wrapper ------------------------------------

def mask_generator(image: jax.Array) -> jax.Array:
    N, C, H, W = image.shape
    assert C == 3 and H % SCALE == 0 and W % SCALE == 0
    h, w = H // SCALE, W // SCALE

    # No wrapper-side dtype cast: stream the image as-is (f32 or bf16) and
    # cast to bf16 inside the kernel just before the first MXU matmul.
    img = image.reshape(N, 3 * H, W)
    itemsize = image.dtype.itemsize
    bytes_per_image = 3 * H * W * itemsize

    vmem_ceiling = _vmem_ceiling_bytes()
    nb = _choose_batch_block(N, bytes_per_image, w,
                             max_block_bytes=vmem_ceiling // 4)
    grid = (N // nb,)
    L = nb * w

    # Row-downsample with grayscale + (x+1)/2 folded in:
    #   Sh' (h, 3H) = [0.14945*Sh | 0.2935*Sh | 0.057*Sh]
    sh = _bilinear_downsample_matrix(H, h)
    shp = jnp.asarray(np.concatenate([(c / 2.0) * sh for c in _GRAY], axis=1),
                      jnp.bfloat16)                                   # (h, 3H)
    # /8 bilinear weights are exactly 0.5 -> bf16 is exact here.
    swt = jnp.asarray(_bilinear_downsample_matrix(W, w).T, jnp.bfloat16)  # (W, w)

    # Real double-buffered footprint -> vmem_limit_bytes (kept under physical).
    img_block = nb * 3 * H * W * itemsize
    out_block = 2 * h * L * 4
    slab_bytes = 3 * H * L * 2
    wgt_bytes = (shp.size + swt.size) * 2
    footprint = 2 * (img_block + out_block + wgt_bytes) + slab_bytes
    vmem_limit = int(min(vmem_ceiling, max(16 << 20, footprint + (8 << 20))))

    grid_spec = pltpu.PrefetchScalarGridSpec(
        num_scalar_prefetch=0,
        grid=grid,
        in_specs=[
            pl.BlockSpec((nb, 3 * H, W), lambda g: (g, 0, 0)),   # image block
            pl.BlockSpec((W, w), lambda g: (0, 0)),              # Sw^T (bf16)
            pl.BlockSpec((h, 3 * H), lambda g: (0, 0)),          # Sh'  (bf16)
        ],
        out_specs=pl.BlockSpec((None, 2, h, L), lambda g: (g, 0, 0, 0)),
        scratch_shapes=[pltpu.VMEM((3 * H, L), jnp.bfloat16)],
    )

    packed = pl.pallas_call(
        _mask_kernel,
        out_shape=jax.ShapeDtypeStruct((N // nb, 2, h, L), jnp.float32),
        grid_spec=grid_spec,
        compiler_params=pltpu.CompilerParams(
            dimension_semantics=("parallel",),
            vmem_limit_bytes=vmem_limit),
    )(img, swt, shp)

    # Unpack lane-dense slab -> NCHW, then the [gx, gy, gx, gy] channel repeat.
    mask2 = packed.reshape(N // nb, 2, h, nb, w)
    mask2 = jnp.transpose(mask2, (0, 3, 1, 2, 4)).reshape(N, 2, h, w)
    return jnp.tile(mask2, (1, 2, 1, 1))


# --------------------------- pure-JAX reference -------------------------------

def mask_generator_ref(image: jax.Array) -> jax.Array:
    img = (image + 1.0) / 2.0
    N, C, H, W = img.shape
    h, w = H // SCALE, W // SCALE
    # bilinear 1/8 downsample (align_corners=False, H,W multiples of 8):
    # average of the 2x2 block at offsets (3,4) inside each 8x8 tile.
    blk = img.reshape(N, C, h, SCALE, w, SCALE)
    small = blk[:, :, :, 3:5, :, 3:5].mean(axis=(3, 5))
    gray = (small * jnp.array(_GRAY, jnp.float32).reshape(1, 3, 1, 1)).sum(
        axis=1, keepdims=True)
    fx = jnp.array([[-1, 0, 1], [-2, 0, 2], [-1, 0, 1]], jnp.float32)
    fy = jnp.array([[-1, -2, -1], [0, 0, 0], [1, 2, 1]], jnp.float32)
    pad = jnp.pad(gray, ((0, 0), (0, 0), (1, 1), (1, 1)))

    def corr(k):
        out = jnp.zeros((N, 1, h, w), jnp.float32)
        for di in range(3):
            for dj in range(3):
                out = out + k[di, dj] * pad[:, :, di:di + h, dj:dj + w]
        return out

    grads = jnp.concatenate([corr(fx), corr(fy)], axis=1)
    mask = jnp.exp(-jnp.abs(grads))
    return jnp.tile(mask, (1, 2, 1, 1))


# ----------------------------------- main -------------------------------------

if __name__ == "__main__":
    key = jax.random.PRNGKey(0)
    # Small but representative: h=w=16 after /8, Nb*w hits 128 lanes and the
    # grid has an even number (2) of steps.
    N, C, H, W = 16, 3, 128, 128
    image = jax.random.uniform(key, (N, C, H, W), jnp.float32,
                               minval=-1.0, maxval=1.0)

    out = jax.block_until_ready(mask_generator(image))

    assert out.shape == (N, 4, H // SCALE, W // SCALE), out.shape
    assert out.dtype == jnp.float32

    ref = jax.block_until_ready(mask_generator_ref(image))
    np.testing.assert_allclose(np.asarray(out), np.asarray(ref),
                               rtol=2e-2, atol=2e-2)

    print("KERNEL_OK")
</pallas_src>

<mosaic_0001>
module attributes {stable_mosaic.version = 11 : i64} {
  func.func @_mask_kernel(%arg0: i32, %arg1: memref<8x384x128xf32, #tpu.memory_space<vmem>>, %arg2: memref<128x16xbf16, #tpu.memory_space<vmem>>, %arg3: memref<16x384xbf16, #tpu.memory_space<vmem>>, %arg4: memref<1x2x16x128xf32, #tpu.memory_space<vmem>>, %arg5: memref<384x128xbf16, #tpu.memory_space<vmem>>) attributes {dimension_semantics = [#tpu.dimension_semantics<parallel>], iteration_bounds = array<i64: 2>, scalar_prefetch = 0 : i64, scratch_operands = 1 : i64, tpu.core_type = #tpu.core_type<tc>, window_params = [{transform_indices = @transform_0, window_bounds = array<i64: 8, 384, 128>}, {pipeline_mode = #tpu.pipeline_mode<synchronous>, transform_indices = @transform_1, window_bounds = array<i64: 128, 16>}, {pipeline_mode = #tpu.pipeline_mode<synchronous>, transform_indices = @transform_2, window_bounds = array<i64: 16, 384>}, {transform_indices = @transform_3, window_bounds = array<i64: 1, 2, 16, 128>}]} {
    %c0 = arith.constant 0 : index
    %c0_0 = arith.constant 0 : index
    %0 = vector.load %arg2[%c0, %c0_0] : memref<128x16xbf16, #tpu.memory_space<vmem>>, vector<128x16xbf16>
    %c0_1 = arith.constant 0 : index
    %c0_2 = arith.constant 0 : index
    %c0_3 = arith.constant 0 : index
    %1 = vector.load %arg1[%c0_1, %c0_2, %c0_3] : memref<8x384x128xf32, #tpu.memory_space<vmem>>, vector<1x384x128xf32>
    %2 = vector.shape_cast %1 : vector<1x384x128xf32> to vector<384x128xf32>
    %3 = arith.truncf %2 : vector<384x128xf32> to vector<384x128xbf16>
    %cst = arith.constant dense<0.000000e+00> : vector<384x16xf32>
    %4 = tpu.matmul %3, %0, %cst {dimension_numbers = #tpu.dot_dimension_numbers<[1], [0], [0], [1], [0, 0, 1, 1], [], []>} : vector<384x128xbf16>, vector<128x16xbf16>, vector<384x16xf32> -> vector<384x16xf32>
    %5 = arith.truncf %4 : vector<384x16xf32> to vector<384x16xbf16>
    %c0_4 = arith.constant 0 : index
    %c0_5 = arith.constant 0 : index
    %6 = vector.load %arg5[%c0_4, %c0_5] : memref<384x128xbf16, #tpu.memory_space<vmem>>, vector<384x16xbf16>
    tpu.vector_store %arg5[%c0_4, %c0_5], %5 {strides = array<i32>} : memref<384x128xbf16, #tpu.memory_space<vmem>>, vector<384x16xbf16>,
    %c1 = arith.constant 1 : index
    %c0_6 = arith.constant 0 : index
    %c0_7 = arith.constant 0 : index
    %7 = vector.load %arg1[%c1, %c0_6, %c0_7] : memref<8x384x128xf32, #tpu.memory_space<vmem>>, vector<1x384x128xf32>
    %8 = vector.shape_cast %7 : vector<1x384x128xf32> to vector<384x128xf32>
    %9 = arith.truncf %8 : vector<384x128xf32> to vector<384x128xbf16>
    %cst_8 = arith.constant dense<0.000000e+00> : vector<384x16xf32>
    %10 = tpu.matmul %9, %0, %cst_8 {dimension_numbers = #tpu.dot_dimension_numbers<[1], [0], [0], [1], [0, 0, 1, 1], [], []>} : vector<384x128xbf16>, vector<128x16xbf16>, vector<384x16xf32> -> vector<384x16xf32>
    %11 = arith.truncf %10 : vector<384x16xf32> to vector<384x16xbf16>
    %c0_9 = arith.constant 0 : index
    %c16 = arith.constant 16 : index
    %12 = vector.load %arg5[%c0_9, %c16] : memref<384x128xbf16, #tpu.memory_space<vmem>>, vector<384x16xbf16>
    tpu.vector_store %arg5[%c0_9, %c16], %11 {strides = array<i32>} : memref<384x128xbf16, #tpu.memory_space<vmem>>, vector<384x16xbf16>,
    %c2 = arith.constant 2 : index
    %c0_10 = arith.constant 0 : index
    %c0_11 = arith.constant 0 : index
    %13 = vector.load %arg1[%c2, %c0_10, %c0_11] : memref<8x384x128xf32, #tpu.memory_space<vmem>>, vector<1x384x128xf32>
    %14 = vector.shape_cast %13 : vector<1x384x128xf32> to vector<384x128xf32>
    %15 = arith.truncf %14 : vector<384x128xf32> to vector<384x128xbf16>
    %cst_12 = arith.constant dense<0.000000e+00> : vector<384x16xf32>
    %16 = tpu.matmul %15, %0, %cst_12 {dimension_numbers = #tpu.dot_dimension_numbers<[1], [0], [0], [1], [0, 0, 1, 1], [], []>} : vector<384x128xbf16>, vector<128x16xbf16>, vector<384x16xf32> -> vector<384x16xf32>
    %17 = arith.truncf %16 : vector<384x16xf32> to vector<384x16xbf16>
    %c0_13 = arith.constant 0 : index
    %c32 = arith.constant 32 : index
    %18 = vector.load %arg5[%c0_13, %c32] : memref<384x128xbf16, #tpu.memory_space<vmem>>, vector<384x16xbf16>
    tpu.vector_store %arg5[%c0_13, %c32], %17 {strides = array<i32>} : memref<384x128xbf16, #tpu.memory_space<vmem>>, vector<384x16xbf16>,
    %c3 = arith.constant 3 : index
    %c0_14 = arith.constant 0 : index
    %c0_15 = arith.constant 0 : index
    %19 = vector.load %arg1[%c3, %c0_14, %c0_15] : memref<8x384x128xf32, #tpu.memory_space<vmem>>, vector<1x384x128xf32>
    %20 = vector.shape_cast %19 : vector<1x384x128xf32> to vector<384x128xf32>
    %21 = arith.truncf %20 : vector<384x128xf32> to vector<384x128xbf16>
    %cst_16 = arith.constant dense<0.000000e+00> : vector<384x16xf32>
    %22 = tpu.matmul %21, %0, %cst_16 {dimension_numbers = #tpu.dot_dimension_numbers<[1], [0], [0], [1], [0, 0, 1, 1], [], []>} : vector<384x128xbf16>, vector<128x16xbf16>, vector<384x16xf32> -> vector<384x16xf32>
    %23 = arith.truncf %22 : vector<384x16xf32> to vector<384x16xbf16>
    %c0_17 = arith.constant 0 : index
    %c48 = arith.constant 48 : index
    %24 = vector.load %arg5[%c0_17, %c48] : memref<384x128xbf16, #tpu.memory_space<vmem>>, vector<384x16xbf16>
    tpu.vector_store %arg5[%c0_17, %c48], %23 {strides = array<i32>} : memref<384x128xbf16, #tpu.memory_space<vmem>>, vector<384x16xbf16>,
    %c4 = arith.constant 4 : index
    %c0_18 = arith.constant 0 : index
    %c0_19 = arith.constant 0 : index
    %25 = vector.load %arg1[%c4, %c0_18, %c0_19] : memref<8x384x128xf32, #tpu.memory_space<vmem>>, vector<1x384x128xf32>
    %26 = vector.shape_cast %25 : vector<1x384x128xf32> to vector<384x128xf32>
    %27 = arith.truncf %26 : vector<384x128xf32> to vector<384x128xbf16>
    %cst_20 = arith.constant dense<0.000000e+00> : vector<384x16xf32>
    %28 = tpu.matmul %27, %0, %cst_20 {dimension_numbers = #tpu.dot_dimension_numbers<[1], [0], [0], [1], [0, 0, 1, 1], [], []>} : vector<384x128xbf16>, vector<128x16xbf16>, vector<384x16xf32> -> vector<384x16xf32>
    %29 = arith.truncf %28 : vector<384x16xf32> to vector<384x16xbf16>
    %c0_21 = arith.constant 0 : index
    %c64 = arith.constant 64 : index
    %30 = vector.load %arg5[%c0_21, %c64] : memref<384x128xbf16, #tpu.memory_space<vmem>>, vector<384x16xbf16>
    tpu.vector_store %arg5[%c0_21, %c64], %29 {strides = array<i32>} : memref<384x128xbf16, #tpu.memory_space<vmem>>, vector<384x16xbf16>,
    %c5 = arith.constant 5 : index
    %c0_22 = arith.constant 0 : index
    %c0_23 = arith.constant 0 : index
    %31 = vector.load %arg1[%c5, %c0_22, %c0_23] : memref<8x384x128xf32, #tpu.memory_space<vmem>>, vector<1x384x128xf32>
    %32 = vector.shape_cast %31 : vector<1x384x128xf32> to vector<384x128xf32>
    %33 = arith.truncf %32 : vector<384x128xf32> to vector<384x128xbf16>
    %cst_24 = arith.constant dense<0.000000e+00> : vector<384x16xf32>
    %34 = tpu.matmul %33, %0, %cst_24 {dimension_numbers = #tpu.dot_dimension_numbers<[1], [0], [0], [1], [0, 0, 1, 1], [], []>} : vector<384x128xbf16>, vector<128x16xbf16>, vector<384x16xf32> -> vector<384x16xf32>
    %35 = arith.truncf %34 : vector<384x16xf32> to vector<384x16xbf16>
    %c0_25 = arith.constant 0 : index
    %c80 = arith.constant 80 : index
    %36 = vector.load %arg5[%c0_25, %c80] : memref<384x128xbf16, #tpu.memory_space<vmem>>, vector<384x16xbf16>
    tpu.vector_store %arg5[%c0_25, %c80], %35 {strides = array<i32>} : memref<384x128xbf16, #tpu.memory_space<vmem>>, vector<384x16xbf16>,
    %c6 = arith.constant 6 : index
    %c0_26 = arith.constant 0 : index
    %c0_27 = arith.constant 0 : index
    %37 = vector.load %arg1[%c6, %c0_26, %c0_27] : memref<8x384x128xf32, #tpu.memory_space<vmem>>, vector<1x384x128xf32>
    %38 = vector.shape_cast %37 : vector<1x384x128xf32> to vector<384x128xf32>
    %39 = arith.truncf %38 : vector<384x128xf32> to vector<384x128xbf16>
    %cst_28 = arith.constant dense<0.000000e+00> : vector<384x16xf32>
    %40 = tpu.matmul %39, %0, %cst_28 {dimension_numbers = #tpu.dot_dimension_numbers<[1], [0], [0], [1], [0, 0, 1, 1], [], []>} : vector<384x128xbf16>, vector<128x16xbf16>, vector<384x16xf32> -> vector<384x16xf32>
    %41 = arith.truncf %40 : vector<384x16xf32> to vector<384x16xbf16>
    %c0_29 = arith.constant 0 : index
    %c96 = arith.constant 96 : index
    %42 = vector.load %arg5[%c0_29, %c96] : memref<384x128xbf16, #tpu.memory_space<vmem>>, vector<384x16xbf16>
    tpu.vector_store %arg5[%c0_29, %c96], %41 {strides = array<i32>} : memref<384x128xbf16, #tpu.memory_space<vmem>>, vector<384x16xbf16>,
    %c7 = arith.constant 7 : index
    %c0_30 = arith.constant 0 : index
    %c0_31 = arith.constant 0 : index
    %43 = vector.load %arg1[%c7, %c0_30, %c0_31] : memref<8x384x128xf32, #tpu.memory_space<vmem>>, vector<1x384x128xf32>
    %44 = vector.shape_cast %43 : vector<1x384x128xf32> to vector<384x128xf32>
    %45 = arith.truncf %44 : vector<384x128xf32> to vector<384x128xbf16>
    %cst_32 = arith.constant dense<0.000000e+00> : vector<384x16xf32>
    %46 = tpu.matmul %45, %0, %cst_32 {dimension_numbers = #tpu.dot_dimension_numbers<[1], [0], [0], [1], [0, 0, 1, 1], [], []>} : vector<384x128xbf16>, vector<128x16xbf16>, vector<384x16xf32> -> vector<384x16xf32>
    %47 = arith.truncf %46 : vector<384x16xf32> to vector<384x16xbf16>
    %c0_33 = arith.constant 0 : index
    %c112 = arith.constant 112 : index
    %48 = vector.load %arg5[%c0_33, %c112] : memref<384x128xbf16, #tpu.memory_space<vmem>>, vector<384x16xbf16>
    tpu.vector_store %arg5[%c0_33, %c112], %47 {strides = array<i32>} : memref<384x128xbf16, #tpu.memory_space<vmem>>, vector<384x16xbf16>,
    %c0_34 = arith.constant 0 : index
    %c0_35 = arith.constant 0 : index
    %49 = vector.load %arg3[%c0_34, %c0_35] : memref<16x384xbf16, #tpu.memory_space<vmem>>, vector<16x384xbf16>
    %c0_36 = arith.constant 0 : index
    %c0_37 = arith.constant 0 : index
    %50 = vector.load %arg5[%c0_36, %c0_37] : memref<384x128xbf16, #tpu.memory_space<vmem>>, vector<384x128xbf16>
    %cst_38 = arith.constant dense<0.000000e+00> : vector<16x128xf32>
    %51 = tpu.matmul %49, %50, %cst_38 {dimension_numbers = #tpu.dot_dimension_numbers<[1], [0], [0], [1], [0, 0, 1, 1], [], []>} : vector<16x384xbf16>, vector<384x128xbf16>, vector<16x128xf32> -> vector<16x128xf32>
    %cst_39 = arith.constant 4.999500e-01 : f32
    %52 = vector.broadcast %cst_39 : f32 to vector<16x128xf32>
    %53 = arith.addf %51, %52 : vector<16x128xf32>
    %54 = tpu.iota {dimensions = array<i32: 1>} : vector<16x128xi32>
    %c16_i32 = arith.constant 16 : i32
    %c0_i32 = arith.constant 0 : i32
    %55 = arith.cmpi eq, %c16_i32, %c0_i32 : i32
    %c1_i32 = arith.constant 1 : i32
    %56 = arith.select %55, %c1_i32, %c16_i32 : i32
    %57 = vector.broadcast %56 : i32 to vector<16x128xi32>
    %58 = arith.remsi %54, %57 : vector<16x128xi32>
    %c0_i32_40 = arith.constant 0 : i32
    %59 = vector.broadcast %c0_i32_40 : i32 to vector<16x128xi32>
    %60 = arith.cmpi ne, %58, %59 : vector<16x128xi32>
    %c0_i32_41 = arith.constant 0 : i32
    %61 = vector.broadcast %c0_i32_41 : i32 to vector<16x128xi32>
    %62 = arith.cmpi slt, %58, %61 : vector<16x128xi32>
    %c0_i32_42 = arith.constant 0 : i32
    %63 = arith.cmpi slt, %56, %c0_i32_42 : i32
    %64 = vector.broadcast %63 : i1 to vector<16x128xi1>
    %65 = vector.broadcast %64 : vector<16x128xi1> to vector<16x128xi1>
    %66 = arith.xori %62, %65 : vector<16x128xi1>
    %67 = arith.andi %66, %60 : vector<16x128xi1>
    %68 = vector.broadcast %56 : i32 to vector<16x128xi32>
    %69 = arith.addi %58, %68 : vector<16x128xi32>
    %70 = arith.select %67, %69, %58 : vector<16x128xi1>, vector<16x128xi32>
    %71 = tpu.iota {dimensions = array<i32: 0>} : vector<16x128xi32>
    %c15_i32 = arith.constant 15 : i32
    %72 = vector.broadcast %c15_i32 : i32 to vector<16x128xi32>
    %73 = arith.cmpi ne, %70, %72 : vector<16x128xi32>
    %c0_i32_43 = arith.constant 0 : i32
    %74 = vector.broadcast %c0_i32_43 : i32 to vector<16x128xi32>
    %75 = arith.cmpi ne, %70, %74 : vector<16x128xi32>
    %c15_i32_44 = arith.constant 15 : i32
    %76 = vector.broadcast %c15_i32_44 : i32 to vector<16x128xi32>
    %77 = arith.cmpi ne, %71, %76 : vector<16x128xi32>
    %c0_i32_45 = arith.constant 0 : i32
    %78 = vector.broadcast %c0_i32_45 : i32 to vector<16x128xi32>
    %79 = arith.cmpi ne, %71, %78 : vector<16x128xi32>
    %c127_i32 = arith.constant 127 : i32
    %80 = tpu.dynamic_rotate %53 by %c127_i32 dim 1 : vector<16x128xf32>, i32 -> vector<16x128xf32>
    %cst_46 = arith.constant 0.000000e+00 : f32
    %81 = vector.broadcast %cst_46 : f32 to vector<16x128xf32>
    %82 = arith.select %73, %80, %81 : vector<16x128xi1>, vector<16x128xf32>
    %c1_i32_47 = arith.constant 1 : i32
    %83 = tpu.dynamic_rotate %53 by %c1_i32_47 dim 1 : vector<16x128xf32>, i32 -> vector<16x128xf32>
    %cst_48 = arith.constant 0.000000e+00 : f32
    %84 = vector.broadcast %cst_48 : f32 to vector<16x128xf32>
    %85 = arith.select %75, %83, %84 : vector<16x128xi1>, vector<16x128xf32>
    %86 = arith.subf %82, %85 : vector<16x128xf32>
    %cst_49 = arith.constant 2.000000e+00 : f32
    %87 = vector.broadcast %cst_49 : f32 to vector<16x128xf32>
    %88 = arith.mulf %87, %53 : vector<16x128xf32>
    %89 = arith.addf %85, %88 : vector<16x128xf32>
    %90 = arith.addf %89, %82 : vector<16x128xf32>
    %c1_i32_50 = arith.constant 1 : i32
    %91 = tpu.dynamic_rotate %86 by %c1_i32_50 dim 0 : vector<16x128xf32>, i32 -> vector<16x128xf32>
    %cst_51 = arith.constant 0.000000e+00 : f32
    %92 = vector.broadcast %cst_51 : f32 to vector<16x128xf32>
    %93 = arith.select %79, %91, %92 : vector<16x128xi1>, vector<16x128xf32>
    %cst_52 = arith.constant 2.000000e+00 : f32
    %94 = vector.broadcast %cst_52 : f32 to vector<16x128xf32>
    %95 = arith.mulf %94, %86 : vector<16x128xf32>
    %96 = arith.addf %93, %95 : vector<16x128xf32>
    %c15_i32_53 = arith.constant 15 : i32
    %97 = tpu.dynamic_rotate %86 by %c15_i32_53 dim 0 : vector<16x128xf32>, i32 -> vector<16x128xf32>
    %cst_54 = arith.constant 0.000000e+00 : f32
    %98 = vector.broadcast %cst_54 : f32 to vector<16x128xf32>
    %99 = arith.select %77, %97, %98 : vector<16x128xi1>, vector<16x128xf32>
    %100 = arith.addf %96, %99 : vector<16x128xf32>
    %c15_i32_55 = arith.constant 15 : i32
    %101 = tpu.dynamic_rotate %90 by %c15_i32_55 dim 0 : vector<16x128xf32>, i32 -> vector<16x128xf32>
    %cst_56 = arith.constant 0.000000e+00 : f32
    %102 = vector.broadcast %cst_56 : f32 to vector<16x128xf32>
    %103 = arith.select %77, %101, %102 : vector<16x128xi1>, vector<16x128xf32>
    %c1_i32_57 = arith.constant 1 : i32
    %104 = tpu.dynamic_rotate %90 by %c1_i32_57 dim 0 : vector<16x128xf32>, i32 -> vector<16x128xf32>
    %cst_58 = arith.constant 0.000000e+00 : f32
    %105 = vector.broadcast %cst_58 : f32 to vector<16x128xf32>
    %106 = arith.select %79, %104, %105 : vector<16x128xi1>, vector<16x128xf32>
    %107 = arith.subf %103, %106 : vector<16x128xf32>
    %108 = math.absf %100 : vector<16x128xf32>
    %cst_59 = arith.constant 0.000000e+00 : f32
    %109 = vector.broadcast %cst_59 : f32 to vector<16x128xf32>
    %110 = arith.subf %109, %108 : vector<16x128xf32>
    %111 = math.exp %110 : vector<16x128xf32>
    %c0_60 = arith.constant 0 : index
    %c0_61 = arith.constant 0 : index
    %c0_62 = arith.constant 0 : index
    %c0_63 = arith.constant 0 : index
    %112 = vector.load %arg4[%c0_60, %c0_61, %c0_62, %c0_63] : memref<1x2x16x128xf32, #tpu.memory_space<vmem>>, vector<1x1x16x128xf32>
    %113 = vector.shape_cast %112 : vector<1x1x16x128xf32> to vector<16x128xf32>
    %114 = vector.shape_cast %111 : vector<16x128xf32> to vector<1x1x16x128xf32>
    tpu.vector_store %arg4[%c0_60, %c0_61, %c0_62, %c0_63], %114 {strides = array<i32>} : memref<1x2x16x128xf32, #tpu.memory_space<vmem>>, vector<1x1x16x128xf32>,
    %115 = math.absf %107 : vector<16x128xf32>
    %cst_64 = arith.constant 0.000000e+00 : f32
    %116 = vector.broadcast %cst_64 : f32 to vector<16x128xf32>
    %117 = arith.subf %116, %115 : vector<16x128xf32>
    %118 = math.exp %117 : vector<16x128xf32>
    %c0_65 = arith.constant 0 : index
    %c1_66 = arith.constant 1 : index
    %c0_67 = arith.constant 0 : index
    %c0_68 = arith.constant 0 : index
    %119 = vector.load %arg4[%c0_65, %c1_66, %c0_67, %c0_68] : memref<1x2x16x128xf32, #tpu.memory_space<vmem>>, vector<1x1x16x128xf32>
    %120 = vector.shape_cast %119 : vector<1x1x16x128xf32> to vector<16x128xf32>
    %121 = vector.shape_cast %118 : vector<16x128xf32> to vector<1x1x16x128xf32>
    tpu.vector_store %arg4[%c0_65, %c1_66, %c0_67, %c0_68], %121 {strides = array<i32>} : memref<1x2x16x128xf32, #tpu.memory_space<vmem>>, vector<1x1x16x128xf32>,
    return
  }
  func.func @transform_0(%arg0: i32) -> (i32, i32, i32) {
    %c0_i32 = arith.constant 0 : i32
    %c0_i32_0 = arith.constant 0 : i32
    %c0_i32_1 = arith.constant 0 : i32
    return %arg0, %c0_i32, %c0_i32_0 : i32, i32, i32
  }
  func.func @transform_1(%arg0: i32) -> (i32, i32) {
    %c0_i32 = arith.constant 0 : i32
    %c0_i32_0 = arith.constant 0 : i32
    %c0_i32_1 = arith.constant 0 : i32
    return %c0_i32, %c0_i32_0 : i32, i32
  }
  func.func @transform_2(%arg0: i32) -> (i32, i32) {
    %c0_i32 = arith.constant 0 : i32
    %c0_i32_0 = arith.constant 0 : i32
    %c0_i32_1 = arith.constant 0 : i32
    return %c0_i32, %c0_i32_0 : i32, i32
  }
  func.func @transform_3(%arg0: i32) -> (i32, i32, i32, i32) {
    %c0_i32 = arith.constant 0 : i32
    %c0_i32_0 = arith.constant 0 : i32
    %c0_i32_1 = arith.constant 0 : i32
    %c0_i32_2 = arith.constant 0 : i32
    return %arg0, %c0_i32, %c0_i32_0, %c0_i32_1 : i32, i32, i32, i32
  }
}

</mosaic_0001>

<llo_original>
// kernel: tpu_custom_call.1
$region0: #{tpu_custom_call.1}
  #allocation0 [shape = 'u32[]', space=smem, size = 0x4, offset = 0x4, fixed_abs, tag = 'smem constant byte address 0x4 - core index']
  #allocation1 [shape = 'u32[144,128]{1,0:T(1,128)}', space=vmem, size = 0x12000, scoped, tag = 'internal scratch']
  #allocation2 [shape = 'bf16[384,128]{1,0:T(8,128)(2,1)}', space=vmem, size = 0x18000, scoped, tag = 'scratch operand']
  %s0 = inlined_call_operand.hbm [shape: f32[16,384,128], index: 0, kind: input, shape index: {}]
  %s1 = inlined_call_operand.vmem [shape: bf16[128,16], index: 1, kind: input, shape index: {}]
  %s2 = inlined_call_operand.hbm [shape: bf16[16,384], index: 2, kind: input, shape index: {}]
  %s3 = inlined_call_operand.hbm [shape: f32[2,2,16,128], index: 3, kind: output, shape index: {}]
  %s4 = sld [smem:[#allocation0]]
  $region53: #{tpu_custom_call.1} parent=0
    _
  %s6 = ssub.s32 1, %s4
  %s7 = scalar_select 0, %s6, %s4
  $region1: #{tpu_custom_call.1} parent=0
    #allocation3 [shape = 'u8[3145728]{0}', space=vmem, size = 0x300000, scoped, tag = 'input window, operand 0']
    #allocation4 [shape = 's32[2]{0}', space=sflag, size = 0x8, scoped, tag = 'scoped memory for tpu_custom_call.1']
    #allocation5 [shape = 's32[2]{0}', space=sflag, size = 0x8, scoped, tag = 'scoped memory for tpu_custom_call.1']
    #allocation6 [shape = 'u8[12288]{0}', space=vmem, size = 0x3000, scoped, tag = 'input window, operand 2, single buffered']
    #allocation7 [shape = 's32[1]{0}', space=sflag, size = 0x4, scoped, tag = 'scoped memory for tpu_custom_call.1']
    #allocation8 [shape = 'u8[32768]{0}', space=vmem, size = 0x8000, scoped, tag = 'output window, operand 0']
    %8 = vsyncpa [#allocation4], 0
    %s9 = scalar_lea.sflag [#allocation4], 1
    %10 = vsyncpa %s9, 0
    %11 = vsyncpa [#allocation7], 0
    %12 = vsyncpa [#allocation5], 0
    %s13 = scalar_lea.sflag [#allocation5], 1
    %14 = vsyncpa %s13, 0
    loop: start=0, step=1, limit=4
    $region2: #{tpu_custom_call.1} parent=1 // loop_pre_header
      _
    $region3: #{tpu_custom_call.1} parent=1 // loop_header
      %s16 = sphi 0, %s20
      %p17 = scmp.ge.s32.totalorder %s16, 4
      %s26 = sphi 0, %s28
      %s29 = sphi 0, %s26
      %s30 = sphi 0, %s29
      %s46 = sphi 0, %s30
      %s50 = sphi 0, %s50
      %s52 = sphi 0, %s50
      %s53 = sphi 0, %s52
      %s67 = sphi 0, %s53
      %s71 = sphi 0, %s71
      %s73 = sphi 0, %s71
      %s74 = sphi 0, %s73
      %s88 = sphi 0, %s74
      %s94 = sphi 0, %s96
      %s97 = sphi 0, %s94
      %s98 = sphi 0, %s97
      %s114 = sphi 0, %s98
    $region4: #{tpu_custom_call.1} parent=1 // loop_header_branch
      %19 = sbr.rel (%p17) target = $region8
    $region5: #{tpu_custom_call.1} parent=1 // loop_body
      %s21 = ssub.s32 %s16, 1
      %s22 = ssub.s32 %s16, 2
      %s23 = sadd.s32 %s16, 1
      %s24 = ssub.s32 %s16, %s23
      %p25 = scmp.eq.s32.totalorder %s24, 0
      %s27 = sadd.s32 %s26, 1
      %s28 = scalar_select %p25, %s26, %s27
      %p31 = pneg %p25
      %p32 = scmp.eq.s32.totalorder %s16, 1
      %p33 = por %p31, %p32
      %p34 = scmp.ne.s32.totalorder %s26, %s29
      %p35 = scmp.eq.s32.totalorder %s16, 0
      %p36 = por %p34, %p35
      %p37 = scmp.ne.s32.totalorder %s26, %s29
      %p38 = scmp.eq.s32.totalorder %s21, 1
      %p39 = por %p37, %p38
      %p40 = scmp.ne.s32.totalorder %s29, %s30
      %p41 = scmp.eq.s32.totalorder %s21, 0
      %p42 = por %p40, %p41
      %p43 = scmp.ne.s32.totalorder %s29, %s30
      %p44 = scmp.eq.s32.totalorder %s22, 1
      %p45 = por %p43, %p44
      %p47 = scmp.ne.s32.totalorder %s30, %s46
      %p48 = scmp.eq.s32.totalorder %s22, 0
      %p49 = por %p47, %p48
      %s51 = sadd.s32 %s50, 1
      %p54 = scmp.eq.s32.totalorder %s16, 1
      %p55 = scmp.ne.s32.totalorder %s50, %s52
      %p56 = scmp.eq.s32.totalorder %s16, 0
      %p57 = por %p55, %p56
      %p58 = scmp.ne.s32.totalorder %s50, %s52
      %p59 = scmp.eq.s32.totalorder %s21, 1
      %p60 = por %p58, %p59
      %p61 = scmp.ne.s32.totalorder %s52, %s53
      %p62 = scmp.eq.s32.totalorder %s21, 0
      %p63 = por %p61, %p62
      %p64 = scmp.ne.s32.totalorder %s52, %s53
      %p65 = scmp.eq.s32.totalorder %s22, 1
      %p66 = por %p64, %p65
      %p68 = scmp.ne.s32.totalorder %s53, %s67
      %p69 = scmp.eq.s32.totalorder %s22, 0
      %p70 = por %p68, %p69
      %s72 = sadd.s32 %s71, 1
      %p75 = scmp.eq.s32.totalorder %s16, 1
      %p76 = scmp.ne.s32.totalorder %s71, %s73
      %p77 = scmp.eq.s32.totalorder %s16, 0
      %p78 = por %p76, %p77
      %p79 = scmp.ne.s32.totalorder %s71, %s73
      %p80 = scmp.eq.s32.totalorder %s21, 1
      %p81 = por %p79, %p80
      %p82 = scmp.ne.s32.totalorder %s73, %s74
      %p83 = scmp.eq.s32.totalorder %s21, 0
      %p84 = por %p82, %p83
      %p85 = scmp.ne.s32.totalorder %s73, %s74
      %p86 = scmp.eq.s32.totalorder %s22, 1
      %p87 = por %p85, %p86
      %p89 = scmp.ne.s32.totalorder %s74, %s88
      %p90 = scmp.eq.s32.totalorder %s22, 0
      %p91 = por %p89, %p90
      %s92 = ssub.s32 %s16, %s23
      %p93 = scmp.eq.s32.totalorder %s92, 0
      %s95 = sadd.s32 %s94, 1
      %s96 = scalar_select %p93, %s94, %s95
      %p99 = pneg %p93
      %p100 = scmp.eq.s32.totalorder %s16, 1
      %p101 = por %p99, %p100
      %p102 = scmp.ne.s32.totalorder %s94, %s97
      %p103 = scmp.eq.s32.totalorder %s16, 0
      %p104 = por %p102, %p103
      %p105 = scmp.ne.s32.totalorder %s94, %s97
      %p106 = scmp.eq.s32.totalorder %s21, 1
      %p107 = por %p105, %p106
      %p108 = scmp.ne.s32.totalorder %s97, %s98
      %p109 = scmp.eq.s32.totalorder %s21, 0
      %p110 = por %p108, %p109
      %p111 = scmp.ne.s32.totalorder %s97, %s98
      %p112 = scmp.eq.s32.totalorder %s22, 1
      %p113 = por %p111, %p112
      %p115 = scmp.ne.s32.totalorder %s98, %s114
      %p116 = scmp.eq.s32.totalorder %s22, 0
      %p117 = por %p115, %p116
      %p118 = scmp.le.s32.totalorder 1, %s16
      %p119 = scmp.lt.s32.totalorder %s16, 3
      %p120 = pnand %p118, %p119
      %p121 = pneg %p120
      // Predicated region
      $region9: #{tpu_custom_call.1} parent=5 // pred_check
        _
      $region10: #{tpu_custom_call.1} parent=5 // pred_check_branch
        %123 = sbr.rel (%p120) target = $region12
      $region11: #{tpu_custom_call.1} parent=5 // pred_region
        %s124 = ssub.s32 %s16, 1
        // Predicated region
        $region13: #{tpu_custom_call.1} parent=11 // pred_check
          %p125 = pneg %p63
        $region14: #{tpu_custom_call.1} parent=11 // pred_check_branch
          %127 = sbr.rel (%p125) target = $region16
        $region15: #{tpu_custom_call.1} parent=11 // pred_region
          _
        $region16: #{tpu_custom_call.1} parent=11 // pred_fallthru
          _
        // Predicated region
        $region17: #{tpu_custom_call.1} parent=11 // pred_check
          %p128 = pneg %p84
        $region18: #{tpu_custom_call.1} parent=11 // pred_check_branch
          %130 = sbr.rel (%p128) target = $region20
        $region19: #{tpu_custom_call.1} parent=11 // pred_region
          %s132 = ssub.s32 384, 384
          %133 = vsyncadd [#allocation7], %s132
          %s134 = sshll.u32 [#allocation6], 4
          %s135 = int_to_ptr.vmem [resolvable:$true] %s134
          %140 = dma.hbm_to_vmem [thread:$0]  %s2, 384, %s135, [#allocation7], 192, 192, 12
        $region20: #{tpu_custom_call.1} parent=11 // pred_fallthru
          _
      $region12: #{tpu_custom_call.1} parent=5 // pred_fallthru
        _
      %p141 = scmp.lt.s32.totalorder %s16, 2
      // Predicated region
      $region21: #{tpu_custom_call.1} parent=5 // pred_check
        %p142 = pneg %p141
      $region22: #{tpu_custom_call.1} parent=5 // pred_check_branch
        %144 = sbr.rel (%p142) target = $region24
      $region23: #{tpu_custom_call.1} parent=5 // pred_region
        // Predicated region
        $region25: #{tpu_custom_call.1} parent=23 // pred_check
          %p145 = pneg %p36
        $region26: #{tpu_custom_call.1} parent=23 // pred_check_branch
          %147 = sbr.rel (%p145) target = $region28
        $region27: #{tpu_custom_call.1} parent=23 // pred_region
          %s148 = sand.u32 %s26, 1
          %s149 = scalar_lea.sflag [#allocation4], %s148
          %s150 = sand.u32 %s26, 1
          %s151 = smul.addr %s150, 3072
          %s152 = scalar_lea.vmem [#allocation3], %s151
          %s153 = smul.u32 8, %s16
          %s155 = ssub.s32 49152, 49152
          %156 = vsyncadd %s149, %s155
          %s157 = smul.addr %s153, 48
          %s158 = smul.addr %s157, 128
          %s159 = scalar_lea.hbm %s0, %s158
          %s160 = sshll.u32 %s152, 4
          %s161 = int_to_ptr.vmem [resolvable:$true] %s160
          %166 = dma.hbm_to_vmem [thread:$0]  %s159, 49152, %s161, %s149, 128, 128, 8
        $region28: #{tpu_custom_call.1} parent=23 // pred_fallthru
          _
      $region24: #{tpu_custom_call.1} parent=5 // pred_fallthru
        _
      %p167 = scmp.le.s32.totalorder 1, %s16
      %p168 = scmp.lt.s32.totalorder %s16, 3
      %p169 = pnand %p167, %p168
      %p170 = pneg %p169
      // Predicated region
      $region29: #{tpu_custom_call.1} parent=5 // pred_check
        _
      $region30: #{tpu_custom_call.1} parent=5 // pred_check_branch
        %172 = sbr.rel (%p169) target = $region32
      $region31: #{tpu_custom_call.1} parent=5 // pred_region
        %s173 = ssub.s32 %s16, 1
        %s174 = sand.u32 %s29, 1
        %s175 = scalar_lea.sflag [#allocation4], %s174
        %s176 = sand.u32 %s29, 1
        %s177 = smul.addr %s176, 3072
        %s178 = scalar_lea.vmem [#allocation3], %s177
        // Predicated region
        $region33: #{tpu_custom_call.1} parent=31 // pred_check
          %p179 = pneg %p42
        $region34: #{tpu_custom_call.1} parent=31 // pred_check_branch
          %181 = sbr.rel (%p179) target = $region36
        $region35: #{tpu_custom_call.1} parent=31 // pred_region
          %182 = dma.done %s175, 49152
        $region36: #{tpu_custom_call.1} parent=31 // pred_fallthru
          _
        // Predicated region
        $region37: #{tpu_custom_call.1} parent=31 // pred_check
          %p183 = pneg %p84
        $region38: #{tpu_custom_call.1} parent=31 // pred_check_branch
          %185 = sbr.rel (%p183) target = $region40
        $region39: #{tpu_custom_call.1} parent=31 // pred_region
          %186 = dma.done [#allocation7], 384
        $region40: #{tpu_custom_call.1} parent=31 // pred_fallthru
          _
        %s187 = sand.u32 %s29, 1
        %s188 = scalar_lea.sflag [#allocation4], %s187
        %s189 = sand.u32 %s29, 1
        %s190 = smul.addr %s189, 3072
        %s191 = scalar_lea.vmem [#allocation3], %s190
        %p192 = pneg %p42
        %p193 = pneg %p39
        %p194 = pneg %p63
        %p195 = pneg %p60
        %p196 = pneg %p84
        %p197 = pneg %p81
        %p198 = pneg %p110
        %p199 = pneg %p107
        %s200 = sand.u32 %s97, 1
        %s201 = scalar_lea.sflag [#allocation5], %s200
        %s202 = sand.u32 %s97, 1
        %s203 = smul.addr %s202, 32
        %s204 = scalar_lea.vmem [#allocation8], %s203
        %s205 = smul.u32 8, %s21
        %v207 = vld [vmem:[%s1] sm:$0xf]
        %v208 = vld [vmem:[%s1 + $0x4] sm:$0xf]
        %v209 = vld [vmem:[%s1 + $0x8] sm:$0xf]
        %v210 = vld [vmem:[%s1 + $0xc] sm:$0xf]
        %v211 = vld [vmem:[%s1 + $0x10] sm:$0xf]
        %v212 = vld [vmem:[%s1 + $0x14] sm:$0xf]
        %v213 = vld [vmem:[%s1 + $0x18] sm:$0xf]
        %v214 = vld [vmem:[%s1 + $0x1c] sm:$0xf]
        %v215 = vld [vmem:[%s1 + $0x20] sm:$0xf]
        %v216 = vld [vmem:[%s1 + $0x24] sm:$0xf]
        %v217 = vld [vmem:[%s1 + $0x28] sm:$0xf]
        %v218 = vld [vmem:[%s1 + $0x2c] sm:$0xf]
        %v219 = vld [vmem:[%s1 + $0x30] sm:$0xf]
        %v220 = vld [vmem:[%s1 + $0x34] sm:$0xf]
        %v221 = vld [vmem:[%s1 + $0x38] sm:$0xf]
        %v222 = vld [vmem:[%s1 + $0x3c] sm:$0xf]
        %v223 = vld [vmem:[%s178] sm:$0xff]
        %v224 = vld [vmem:[%s178 + $0x8] sm:$0xff]
        %v225 = vld [vmem:[%s178 + $0x10] sm:$0xff]
        %v226 = vld [vmem:[%s178 + $0x18] sm:$0xff]
        %v227 = vld [vmem:[%s178 + $0x20] sm:$0xff]
        %v228 = vld [vmem:[%s178 + $0x28] sm:$0xff]
        %v229 = vld [vmem:[%s178 + $0x30] sm:$0xff]
        %v230 = vld [vmem:[%s178 + $0x38] sm:$0xff]
        %v231 = vld [vmem:[%s178 + $0x40] sm:$0xff]
        %v232 = vld [vmem:[%s178 + $0x48] sm:$0xff]
        %v233 = vld [vmem:[%s178 + $0x50] sm:$0xff]
        %v234 = vld [vmem:[%s178 + $0x58] sm:$0xff]
        %v235 = vld [vmem:[%s178 + $0x60] sm:$0xff]
        %v236 = vld [vmem:[%s178 + $0x68] sm:$0xff]
        %v237 = vld [vmem:[%s178 + $0x70] sm:$0xff]
        %v238 = vld [vmem:[%s178 + $0x78] sm:$0xff]
        %v239 = vld [vmem:[%s178 + $0x80] sm:$0xff]
        %v240 = vld [vmem:[%s178 + $0x88] sm:$0xff]
        %v241 = vld [vmem:[%s178 + $0x90] sm:$0xff]
        %v242 = vld [vmem:[%s178 + $0x98] sm:$0xff]
        %v243 = vld [vmem:[%s178 + $0xa0] sm:$0xff]
        %v244 = vld [vmem:[%s178 + $0xa8] sm:$0xff]
        %v245 = vld [vmem:[%s178 + $0xb0] sm:$0xff]
        %v246 = vld [vmem:[%s178 + $0xb8] sm:$0xff]
        %v247 = vld [vmem:[%s178 + $0xc0] sm:$0xff]
        %v248 = vld [vmem:[%s178 + $0xc8] sm:$0xff]
        %v249 = vld [vmem:[%s178 + $0xd0] sm:$0xff]
        %v250 = vld [vmem:[%s178 + $0xd8] sm:$0xff]
        %v251 = vld [vmem:[%s178 + $0xe0] sm:$0xff]
        %v252 = vld [vmem:[%s178 + $0xe8] sm:$0xff]
        %v253 = vld [vmem:[%s178 + $0xf0] sm:$0xff]
        %v254 = vld [vmem:[%s178 + $0xf8] sm:$0xff]
        %v255 = vld [vmem:[%s178 + $0x100] sm:$0xff]
        %v256 = vld [vmem:[%s178 + $0x108] sm:$0xff]
        %v257 = vld [vmem:[%s178 + $0x110] sm:$0xff]
        %v258 = vld [vmem:[%s178 + $0x118] sm:$0xff]
        %v259 = vld [vmem:[%s178 + $0x120] sm:$0xff]
        %v260 = vld [vmem:[%s178 + $0x128] sm:$0xff]
        %v261 = vld [vmem:[%s178 + $0x130] sm:$0xff]
        %v262 = vld [vmem:[%s178 + $0x138] sm:$0xff]
        %v263 = vld [vmem:[%s178 + $0x140] sm:$0xff]
        %v264 = vld [vmem:[%s178 + $0x148] sm:$0xff]
        %v265 = vld [vmem:[%s178 + $0x150] sm:$0xff]
        %v266 = vld [vmem:[%s178 + $0x158] sm:$0xff]
        %v267 = vld [vmem:[%s178 + $0x160] sm:$0xff]
        %v268 = vld [vmem:[%s178 + $0x168] sm:$0xff]
        %v269 = vld [vmem:[%s178 + $0x170] sm:$0xff]
        %v270 = vld [vmem:[%s178 + $0x178] sm:$0xff]
        %v271 = vpack.c.bf16 %v224, %v223
        %v272 = vpack.c.bf16 %v226, %v225
        %v273 = vpack.c.bf16 %v228, %v227
        %v274 = vpack.c.bf16 %v230, %v229
        %v275 = vpack.c.bf16 %v232, %v231
        %v276 = vpack.c.bf16 %v234, %v233
        %v277 = vpack.c.bf16 %v236, %v235
        %v278 = vpack.c.bf16 %v238, %v237
        %v279 = vpack.c.bf16 %v240, %v239
        %v280 = vpack.c.bf16 %v242, %v241
        %v281 = vpack.c.bf16 %v244, %v243
        %v282 = vpack.c.bf16 %v246, %v245
        %v283 = vpack.c.bf16 %v248, %v247
        %v284 = vpack.c.bf16 %v250, %v249
        %v285 = vpack.c.bf16 %v252, %v251
        %v286 = vpack.c.bf16 %v254, %v253
        %v287 = vpack.c.bf16 %v256, %v255
        %v288 = vpack.c.bf16 %v258, %v257
        %v289 = vpack.c.bf16 %v260, %v259
        %v290 = vpack.c.bf16 %v262, %v261
        %v291 = vpack.c.bf16 %v264, %v263
        %v292 = vpack.c.bf16 %v266, %v265
        %v293 = vpack.c.bf16 %v268, %v267
        %v294 = vpack.c.bf16 %v270, %v269
        %v311 = vunpack.c.l.b16 %v207
        %v312 = vunpack.c.l.b16 %v208
        %v313 = vunpack.c.l.b16 %v209
        %v314 = vunpack.c.l.b16 %v210
        %v315 = vunpack.c.l.b16 %v211
        %v316 = vunpack.c.l.b16 %v212
        %v317 = vunpack.c.l.b16 %v213
        %v318 = vunpack.c.l.b16 %v214
        %v319 = vunpack.c.l.b16 %v215
        %v320 = vunpack.c.l.b16 %v216
        %v321 = vunpack.c.l.b16 %v217
        %v322 = vunpack.c.l.b16 %v218
        %v323 = vunpack.c.l.b16 %v219
        %v324 = vunpack.c.l.b16 %v220
        %v325 = vunpack.c.l.b16 %v221
        %v326 = vunpack.c.l.b16 %v222
        %v327 = vpack.c.b16 %v312, %v311
        %v328 = vpack.c.b16 %v314, %v313
        %v329 = vpack.c.b16 %v316, %v315
        %v330 = vpack.c.b16 %v318, %v317
        %v331 = vpack.c.b16 %v320, %v319
        %v332 = vpack.c.b16 %v322, %v321
        %v333 = vpack.c.b16 %v324, %v323
        %v334 = vpack.c.b16 %v326, %v325
        %343 = vmatprep.subr.bf16.mxu0 0
        %344 = vmatpush1.bf16.msra.mxu0 %v334
        %345 = vmatprep.subr.bf16.mxu0 0
        %346 = vmatpush1.bf16.msra.mxu0 %v333
        %347 = vmatprep.subr.bf16.mxu0 0
        %348 = vmatpush1.bf16.msra.mxu0 %v332
        %349 = vmatprep.subr.bf16.mxu0 0
        %350 = vmatpush1.bf16.msra.mxu0 %v331
        %351 = vmatprep.subr.bf16.mxu0 0
        %352 = vmatpush1.bf16.msra.mxu0 %v330
        %353 = vmatprep.subr.bf16.mxu0 0
        %354 = vmatpush1.bf16.msra.mxu0 %v329
        %355 = vmatprep.subr.bf16.mxu0 0
        %356 = vmatpush1.bf16.msra.mxu0 %v328
        %357 = vmatprep.subr.bf16.mxu0 0
        %358 = vmatpush1.bf16.msra.mxu0 %v327
        %359 = vmatprep.subr.bf16.mxu0 0
        %360 = vmatpush2.bf16.msra.mxu0 0
        %361 = vmatprep.subr.bf16.mxu0 0
        %362 = vmatpush2.bf16.msra.mxu0 0
        %363 = vmatprep.subr.bf16.mxu0 0
        %364 = vmatpush2.bf16.msra.mxu0 0
        %365 = vmatprep.subr.bf16.mxu0 0
        %366 = vmatpush2.bf16.msra.mxu0 0
        %367 = vmatprep.subr.bf16.mxu0 0
        %368 = vmatpush2.bf16.msra.mxu0 0
        %369 = vmatprep.subr.bf16.mxu0 0
        %370 = vmatpush2.bf16.msra.mxu0 0
        %371 = vmatprep.subr.bf16.mxu0 0
        %372 = vmatpush2.bf16.msra.mxu0 0
        %373 = vmatprep.subr.bf16.mxu0 0
        %374 = vmatpush2.bf16.msra.mxu0 0
        %375 = vmatprep.mubr.bf16.mxu0 0
        %376 = vmatmul.mubr.bf16.gmra.mxu0 %v271
        %v377 = vpop.f32.mrf.mxu0
        %v378 = vadd.f32 0.0, %v377
        %v379 = vpop.f32.mrf.mxu0
        %v380 = vpop.f32.mrf.mxu0
        %v381 = vadd.f32 0.0, %v380
        %v382 = vpop.f32.mrf.mxu0
        %383 = vmatprep.mubr.bf16.mxu0 0
        %384 = vmatmul.mubr.bf16.gmra.mxu0 %v272
        %v385 = vpop.f32.mrf.mxu0
        %v386 = vadd.f32 0.0, %v385
        %v387 = vpop.f32.mrf.mxu0
        %v388 = vpop.f32.mrf.mxu0
        %v389 = vadd.f32 0.0, %v388
        %v390 = vpop.f32.mrf.mxu0
        %391 = vmatprep.mubr.bf16.mxu0 0
        %392 = vmatmul.mubr.bf16.gmra.mxu0 %v273
        %v393 = vpop.f32.mrf.mxu0
        %v394 = vadd.f32 0.0, %v393
        %v395 = vpop.f32.mrf.mxu0
        %v396 = vpop.f32.mrf.mxu0
        %v397 = vadd.f32 0.0, %v396
        %v398 = vpop.f32.mrf.mxu0
        %399 = vmatprep.mubr.bf16.mxu0 0
        %400 = vmatmul.mubr.bf16.gmra.mxu0 %v274
        %v401 = vpop.f32.mrf.mxu0
        %v402 = vadd.f32 0.0, %v401
        %v403 = vpop.f32.mrf.mxu0
        %v404 = vpop.f32.mrf.mxu0
        %v405 = vadd.f32 0.0, %v404
        %v406 = vpop.f32.mrf.mxu0
        %407 = vmatprep.mubr.bf16.mxu0 0
        %408 = vmatmul.mubr.bf16.gmra.mxu0 %v275
        %v409 = vpop.f32.mrf.mxu0
        %v410 = vadd.f32 0.0, %v409
        %v411 = vpop.f32.mrf.mxu0
        %v412 = vpop.f32.mrf.mxu0
        %v413 = vadd.f32 0.0, %v412
        %v414 = vpop.f32.mrf.mxu0
        %415 = vmatprep.mubr.bf16.mxu0 0
        %416 = vmatmul.mubr.bf16.gmra.mxu0 %v276
        %v417 = vpop.f32.mrf.mxu0
        %v418 = vadd.f32 0.0, %v417
        %v419 = vpop.f32.mrf.mxu0
        %v420 = vpop.f32.mrf.mxu0
        %v421 = vadd.f32 0.0, %v420
        %v422 = vpop.f32.mrf.mxu0
        %423 = vmatprep.mubr.bf16.mxu0 0
        %424 = vmatmul.mubr.bf16.gmra.mxu0 %v277
        %v425 = vpop.f32.mrf.mxu0
        %v426 = vadd.f32 0.0, %v425
        %v427 = vpop.f32.mrf.mxu0
        %v428 = vpop.f32.mrf.mxu0
        %v429 = vadd.f32 0.0, %v428
        %v430 = vpop.f32.mrf.mxu0
        %431 = vmatprep.mubr.bf16.mxu0 0
        %432 = vmatmul.mubr.bf16.gmra.mxu0 %v278
        %v433 = vpop.f32.mrf.mxu0
        %v434 = vadd.f32 0.0, %v433
        %v435 = vpop.f32.mrf.mxu0
        %v436 = vpop.f32.mrf.mxu0
        %v437 = vadd.f32 0.0, %v436
        %v438 = vpop.f32.mrf.mxu0
        %439 = vmatprep.mubr.bf16.mxu0 0
        %440 = vmatmul.mubr.bf16.gmra.mxu0 %v279
        %v441 = vpop.f32.mrf.mxu0
        %v442 = vadd.f32 0.0, %v441
        %v443 = vpop.f32.mrf.mxu0
        %v444 = vpop.f32.mrf.mxu0
        %v445 = vadd.f32 0.0, %v444
        %v446 = vpop.f32.mrf.mxu0
        %447 = vmatprep.mubr.bf16.mxu0 0
        %448 = vmatmul.mubr.bf16.gmra.mxu0 %v280
        %v449 = vpop.f32.mrf.mxu0
        %v450 = vadd.f32 0.0, %v449
        %v451 = vpop.f32.mrf.mxu0
        %v452 = vpop.f32.mrf.mxu0
        %v453 = vadd.f32 0.0, %v452
        %v454 = vpop.f32.mrf.mxu0
        %455 = vmatprep.mubr.bf16.mxu0 0
        %456 = vmatmul.mubr.bf16.gmra.mxu0 %v281
        %v457 = vpop.f32.mrf.mxu0
        %v458 = vadd.f32 0.0, %v457
        %v459 = vpop.f32.mrf.mxu0
        %v460 = vpop.f32.mrf.mxu0
        %v461 = vadd.f32 0.0, %v460
        %v462 = vpop.f32.mrf.mxu0
        %463 = vmatprep.mubr.bf16.mxu0 0
        %464 = vmatmul.mubr.bf16.gmra.mxu0 %v282
        %v465 = vpop.f32.mrf.mxu0
        %v466 = vadd.f32 0.0, %v465
        %v467 = vpop.f32.mrf.mxu0
        %v468 = vpop.f32.mrf.mxu0
        %v469 = vadd.f32 0.0, %v468
        %v470 = vpop.f32.mrf.mxu0
        %471 = vmatprep.mubr.bf16.mxu0 0
        %472 = vmatmul.mubr.bf16.gmra.mxu0 %v283
        %v473 = vpop.f32.mrf.mxu0
        %v474 = vadd.f32 0.0, %v473
        %v475 = vpop.f32.mrf.mxu0
        %v476 = vpop.f32.mrf.mxu0
        %v477 = vadd.f32 0.0, %v476
        %v478 = vpop.f32.mrf.mxu0
        %479 = vmatprep.mubr.bf16.mxu0 0
        %480 = vmatmul.mubr.bf16.gmra.mxu0 %v284
        %v481 = vpop.f32.mrf.mxu0
        %v482 = vadd.f32 0.0, %v481
        %v483 = vpop.f32.mrf.mxu0
        %v484 = vpop.f32.mrf.mxu0
        %v485 = vadd.f32 0.0, %v484
        %v486 = vpop.f32.mrf.mxu0
        %487 = vmatprep.mubr.bf16.mxu0 0
        %488 = vmatmul.mubr.bf16.gmra.mxu0 %v285
        %v489 = vpop.f32.mrf.mxu0
        %v490 = vadd.f32 0.0, %v489
        %v491 = vpop.f32.mrf.mxu0
        %v492 = vpop.f32.mrf.mxu0
        %v493 = vadd.f32 0.0, %v492
        %v494 = vpop.f32.mrf.mxu0
        %495 = vmatprep.mubr.bf16.mxu0 0
        %496 = vmatmul.mubr.bf16.gmra.mxu0 %v286
        %v497 = vpop.f32.mrf.mxu0
        %v498 = vadd.f32 0.0, %v497
        %v499 = vpop.f32.mrf.mxu0
        %v500 = vpop.f32.mrf.mxu0
        %v501 = vadd.f32 0.0, %v500
        %v502 = vpop.f32.mrf.mxu0
        %503 = vmatprep.mubr.bf16.mxu0 0
        %504 = vmatmul.mubr.bf16.gmra.mxu0 %v287
        %v505 = vpop.f32.mrf.mxu0
        %v506 = vadd.f32 0.0, %v505
        %v507 = vpop.f32.mrf.mxu0
        %v508 = vpop.f32.mrf.mxu0
        %v509 = vadd.f32 0.0, %v508
        %v510 = vpop.f32.mrf.mxu0
        %511 = vmatprep.mubr.bf16.mxu0 0
        %512 = vmatmul.mubr.bf16.gmra.mxu0 %v288
        %v513 = vpop.f32.mrf.mxu0
        %v514 = vadd.f32 0.0, %v513
        %v515 = vpop.f32.mrf.mxu0
        %v516 = vpop.f32.mrf.mxu0
        %v517 = vadd.f32 0.0, %v516
        %v518 = vpop.f32.mrf.mxu0
        %519 = vmatprep.mubr.bf16.mxu0 0
        %520 = vmatmul.mubr.bf16.gmra.mxu0 %v289
        %v521 = vpop.f32.mrf.mxu0
        %v522 = vadd.f32 0.0, %v521
        %v523 = vpop.f32.mrf.mxu0
        %v524 = vpop.f32.mrf.mxu0
        %v525 = vadd.f32 0.0, %v524
        %v526 = vpop.f32.mrf.mxu0
        %527 = vmatprep.mubr.bf16.mxu0 0
        %528 = vmatmul.mubr.bf16.gmra.mxu0 %v290
        %v529 = vpop.f32.mrf.mxu0
        %v530 = vadd.f32 0.0, %v529
        %v531 = vpop.f32.mrf.mxu0
        %v532 = vpop.f32.mrf.mxu0
        %v533 = vadd.f32 0.0, %v532
        %v534 = vpop.f32.mrf.mxu0
        %535 = vmatprep.mubr.bf16.mxu0 0
        %536 = vmatmul.mubr.bf16.gmra.mxu0 %v291
        %v537 = vpop.f32.mrf.mxu0
        %v538 = vadd.f32 0.0, %v537
        %v539 = vpop.f32.mrf.mxu0
        %v540 = vpop.f32.mrf.mxu0
        %v541 = vadd.f32 0.0, %v540
        %v542 = vpop.f32.mrf.mxu0
        %543 = vmatprep.mubr.bf16.mxu0 0
        %544 = vmatmul.mubr.bf16.gmra.mxu0 %v292
        %v545 = vpop.f32.mrf.mxu0
        %v546 = vadd.f32 0.0, %v545
        %v547 = vpop.f32.mrf.mxu0
        %v548 = vpop.f32.mrf.mxu0
        %v549 = vadd.f32 0.0, %v548
        %v550 = vpop.f32.mrf.mxu0
        %551 = vmatprep.mubr.bf16.mxu0 0
        %552 = vmatmul.mubr.bf16.gmra.mxu0 %v293
        %v553 = vpop.f32.mrf.mxu0
        %v554 = vadd.f32 0.0, %v553
        %v555 = vpop.f32.mrf.mxu0
        %v556 = vpop.f32.mrf.mxu0
        %v557 = vadd.f32 0.0, %v556
        %v558 = vpop.f32.mrf.mxu0
        %559 = vmatprep.mubr.bf16.mxu0 0
        %560 = vmatmul.mubr.bf16.gmra.mxu0 %v294
        %v561 = vpop.f32.mrf.mxu0
        %v562 = vadd.f32 0.0, %v561
        %v563 = vpop.f32.mrf.mxu0
        %v564 = vpop.f32.mrf.mxu0
        %v565 = vadd.f32 0.0, %v564
        %v566 = vpop.f32.mrf.mxu0
        %567 = vdwg.mxu0
        %v568 = vpack.c.bf16 %v381, %v378
        %v569 = vpack.c.bf16 %v389, %v386
        %v570 = vpack.c.bf16 %v397, %v394
        %v571 = vpack.c.bf16 %v405, %v402
        %v572 = vpack.c.bf16 %v413, %v410
        %v573 = vpack.c.bf16 %v421, %v418
        %v574 = vpack.c.bf16 %v429, %v426
        %v575 = vpack.c.bf16 %v437, %v434
        %v576 = vpack.c.bf16 %v445, %v442
        %v577 = vpack.c.bf16 %v453, %v450
        %v578 = vpack.c.bf16 %v461, %v458
        %v579 = vpack.c.bf16 %v469, %v466
        %v580 = vpack.c.bf16 %v477, %v474
        %v581 = vpack.c.bf16 %v485, %v482
        %v582 = vpack.c.bf16 %v493, %v490
        %v583 = vpack.c.bf16 %v501, %v498
        %v584 = vpack.c.bf16 %v509, %v506
        %v585 = vpack.c.bf16 %v517, %v514
        %v586 = vpack.c.bf16 %v525, %v522
        %v587 = vpack.c.bf16 %v533, %v530
        %v588 = vpack.c.bf16 %v541, %v538
        %v589 = vpack.c.bf16 %v549, %v546
        %v590 = vpack.c.bf16 %v557, %v554
        %v591 = vpack.c.bf16 %v565, %v562
        %v616 = vunpack.c.l.b16 %v568
        %v617 = vunpack.c.h.b16 %v568
        %v618 = vunpack.c.l.b16 %v569
        %v619 = vunpack.c.h.b16 %v569
        %v620 = vunpack.c.l.b16 %v570
        %v621 = vunpack.c.h.b16 %v570
        %v622 = vunpack.c.l.b16 %v571
        %v623 = vunpack.c.h.b16 %v571
        %v624 = vunpack.c.l.b16 %v572
        %v625 = vunpack.c.h.b16 %v572
        %v626 = vunpack.c.l.b16 %v573
        %v627 = vunpack.c.h.b16 %v573
        %v628 = vunpack.c.l.b16 %v574
        %v629 = vunpack.c.h.b16 %v574
        %v630 = vunpack.c.l.b16 %v575
        %v631 = vunpack.c.h.b16 %v575
        %v632 = vunpack.c.l.b16 %v576
        %v633 = vunpack.c.h.b16 %v576
        %v634 = vunpack.c.l.b16 %v577
        %v635 = vunpack.c.h.b16 %v577
        %v636 = vunpack.c.l.b16 %v578
        %v637 = vunpack.c.h.b16 %v578
        %v638 = vunpack.c.l.b16 %v579
        %v639 = vunpack.c.h.b16 %v579
        %v640 = vunpack.c.l.b16 %v580
        %v641 = vunpack.c.h.b16 %v580
        %v642 = vunpack.c.l.b16 %v581
        %v643 = vunpack.c.h.b16 %v581
        %v644 = vunpack.c.l.b16 %v582
        %v645 = vunpack.c.h.b16 %v582
        %v646 = vunpack.c.l.b16 %v583
        %v647 = vunpack.c.h.b16 %v583
        %v648 = vunpack.c.l.b16 %v584
        %v649 = vunpack.c.h.b16 %v584
        %v650 = vunpack.c.l.b16 %v585
        %v651 = vunpack.c.h.b16 %v585
        %v652 = vunpack.c.l.b16 %v586
        %v653 = vunpack.c.h.b16 %v586
        %v654 = vunpack.c.l.b16 %v587
        %v655 = vunpack.c.h.b16 %v587
        %v656 = vunpack.c.l.b16 %v588
        %v657 = vunpack.c.h.b16 %v588
        %v658 = vunpack.c.l.b16 %v589
        %v659 = vunpack.c.h.b16 %v589
        %v660 = vunpack.c.l.b16 %v590
        %v661 = vunpack.c.h.b16 %v590
        %v662 = vunpack.c.l.b16 %v591
        %v663 = vunpack.c.h.b16 %v591
        %v664 = vpack.c.b16 %v616, %v616
        %v665 = vpack.c.b16 %v617, %v617
        %v666 = vpack.c.b16 %v618, %v618
        %v667 = vpack.c.b16 %v619, %v619
        %v668 = vpack.c.b16 %v620, %v620
        %v669 = vpack.c.b16 %v621, %v621
        %v670 = vpack.c.b16 %v622, %v622
        %v671 = vpack.c.b16 %v623, %v623
        %v672 = vpack.c.b16 %v624, %v624
        %v673 = vpack.c.b16 %v625, %v625
        %v674 = vpack.c.b16 %v626, %v626
        %v675 = vpack.c.b16 %v627, %v627
        %v676 = vpack.c.b16 %v628, %v628
        %v677 = vpack.c.b16 %v629, %v629
        %v678 = vpack.c.b16 %v630, %v630
        %v679 = vpack.c.b16 %v631, %v631
        %v680 = vpack.c.b16 %v632, %v632
        %v681 = vpack.c.b16 %v633, %v633
        %v682 = vpack.c.b16 %v634, %v634
        %v683 = vpack.c.b16 %v635, %v635
        %v684 = vpack.c.b16 %v636, %v636
        %v685 = vpack.c.b16 %v637, %v637
        %v686 = vpack.c.b16 %v638, %v638
        %v687 = vpack.c.b16 %v639, %v639
        %v688 = vpack.c.b16 %v640, %v640
        %v689 = vpack.c.b16 %v641, %v641
        %v690 = vpack.c.b16 %v642, %v642
        %v691 = vpack.c.b16 %v643, %v643
        %v692 = vpack.c.b16 %v644, %v644
        %v693 = vpack.c.b16 %v645, %v645
        %v694 = vpack.c.b16 %v646, %v646
        %v695 = vpack.c.b16 %v647, %v647
        %v696 = vpack.c.b16 %v648, %v648
        %v697 = vpack.c.b16 %v649, %v649
        %v698 = vpack.c.b16 %v650, %v650
        %v699 = vpack.c.b16 %v651, %v651
        %v700 = vpack.c.b16 %v652, %v652
        %v701 = vpack.c.b16 %v653, %v653
        %v702 = vpack.c.b16 %v654, %v654
        %v703 = vpack.c.b16 %v655, %v655
        %v704 = vpack.c.b16 %v656, %v656
        %v705 = vpack.c.b16 %v657, %v657
        %v706 = vpack.c.b16 %v658, %v658
        %v707 = vpack.c.b16 %v659, %v659
        %v708 = vpack.c.b16 %v660, %v660
        %v709 = vpack.c.b16 %v661, %v661
        %v710 = vpack.c.b16 %v662, %v662
        %v711 = vpack.c.b16 %v663, %v663
        %vm760 = vcmask 125952
        %761 = vst.msk [vmem:[#allocation2] sm:$0xf] %vm760, %v664
        %762 = vst.msk [vmem:[#allocation2 + $0x4] sm:$0xf] %vm760, %v665
        %763 = vst.msk [vmem:[#allocation2 + $0x8] sm:$0xf] %vm760, %v666
        %764 = vst.msk [vmem:[#allocation2 + $0xc] sm:$0xf] %vm760, %v667
        %765 = vst.msk [vmem:[#allocation2 + $0x10] sm:$0xf] %vm760, %v668
        %766 = vst.msk [vmem:[#allocation2 + $0x14] sm:$0xf] %vm760, %v669
        %767 = vst.msk [vmem:[#allocation2 + $0x18] sm:$0xf] %vm760, %v670
        %768 = vst.msk [vmem:[#allocation2 + $0x1c] sm:$0xf] %vm760, %v671
        %769 = vst.msk [vmem:[#allocation2 + $0x20] sm:$0xf] %vm760, %v672
        %770 = vst.msk [vmem:[#allocation2 + $0x24] sm:$0xf] %vm760, %v673
        %771 = vst.msk [vmem:[#allocation2 + $0x28] sm:$0xf] %vm760, %v674
        %772 = vst.msk [vmem:[#allocation2 + $0x2c] sm:$0xf] %vm760, %v675
        %773 = vst.msk [vmem:[#allocation2 + $0x30] sm:$0xf] %vm760, %v676
        %774 = vst.msk [vmem:[#allocation2 + $0x34] sm:$0xf] %vm760, %v677
        %775 = vst.msk [vmem:[#allocation2 + $0x38] sm:$0xf] %vm760, %v678
        %776 = vst.msk [vmem:[#allocation2 + $0x3c] sm:$0xf] %vm760, %v679
        %777 = vst.msk [vmem:[#allocation2 + $0x40] sm:$0xf] %vm760, %v680
        %778 = vst.msk [vmem:[#allocation2 + $0x44] sm:$0xf] %vm760, %v681
        %779 = vst.msk [vmem:[#allocation2 + $0x48] sm:$0xf] %vm760, %v682
        %780 = vst.msk [vmem:[#allocation2 + $0x4c] sm:$0xf] %vm760, %v683
        %781 = vst.msk [vmem:[#allocation2 + $0x50] sm:$0xf] %vm760, %v684
        %782 = vst.msk [vmem:[#allocation2 + $0x54] sm:$0xf] %vm760, %v685
        %783 = vst.msk [vmem:[#allocation2 + $0x58] sm:$0xf] %vm760, %v686
        %784 = vst.msk [vmem:[#allocation2 + $0x5c] sm:$0xf] %vm760, %v687
        %785 = vst.msk [vmem:[#allocation2 + $0x60] sm:$0xf] %vm760, %v688
        %786 = vst.msk [vmem:[#allocation2 + $0x64] sm:$0xf] %vm760, %v689
        %787 = vst.msk [vmem:[#allocation2 + $0x68] sm:$0xf] %vm760, %v690
        %788 = vst.msk [vmem:[#allocation2 + $0x6c] sm:$0xf] %vm760, %v691
        %789 = vst.msk [vmem:[#allocation2 + $0x70] sm:$0xf] %vm760, %v692
        %790 = vst.msk [vmem:[#allocation2 + $0x74] sm:$0xf] %vm760, %v693
        %791 = vst.msk [vmem:[#allocation2 + $0x78] sm:$0xf] %vm760, %v694
        %792 = vst.msk [vmem:[#allocation2 + $0x7c] sm:$0xf] %vm760, %v695
        %793 = vst.msk [vmem:[#allocation2 + $0x80] sm:$0xf] %vm760, %v696
        %794 = vst.msk [vmem:[#allocation2 + $0x84] sm:$0xf] %vm760, %v697
        %795 = vst.msk [vmem:[#allocation2 + $0x88] sm:$0xf] %vm760, %v698
        %796 = vst.msk [vmem:[#allocation2 + $0x8c] sm:$0xf] %vm760, %v699
        %797 = vst.msk [vmem:[#allocation2 + $0x90] sm:$0xf] %vm760, %v700
        %798 = vst.msk [vmem:[#allocation2 + $0x94] sm:$0xf] %vm760, %v701
        %799 = vst.msk [vmem:[#allocation2 + $0x98] sm:$0xf] %vm760, %v702
        %800 = vst.msk [vmem:[#allocation2 + $0x9c] sm:$0xf] %vm760, %v703
        %801 = vst.msk [vmem:[#allocation2 + $0xa0] sm:$0xf] %vm760, %v704
        %802 = vst.msk [vmem:[#allocation2 + $0xa4] sm:$0xf] %vm760, %v705
        %803 = vst.msk [vmem:[#allocation2 + $0xa8] sm:$0xf] %vm760, %v706
        %804 = vst.msk [vmem:[#allocation2 + $0xac] sm:$0xf] %vm760, %v707
        %805 = vst.msk [vmem:[#allocation2 + $0xb0] sm:$0xf] %vm760, %v708
        %806 = vst.msk [vmem:[#allocation2 + $0xb4] sm:$0xf] %vm760, %v709
        %807 = vst.msk [vmem:[#allocation2 + $0xb8] sm:$0xf] %vm760, %v710
        %808 = vst.msk [vmem:[#allocation2 + $0xbc] sm:$0xf] %vm760, %v711
        %s809 = scalar_lea.vmem %s178, 384 [#allocation3]
        %v810 = vld [vmem:[%s809] sm:$0xff]
        %v811 = vld [vmem:[%s809 + $0x8] sm:$0xff]
        %v812 = vld [vmem:[%s809 + $0x10] sm:$0xff]
        %v813 = vld [vmem:[%s809 + $0x18] sm:$0xff]
        %v814 = vld [vmem:[%s809 + $0x20] sm:$0xff]
        %v815 = vld [vmem:[%s809 + $0x28] sm:$0xff]
        %v816 = vld [vmem:[%s809 + $0x30] sm:$0xff]
        %v817 = vld [vmem:[%s809 + $0x38] sm:$0xff]
        %v818 = vld [vmem:[%s809 + $0x40] sm:$0xff]
        %v819 = vld [vmem:[%s809 + $0x48] sm:$0xff]
        %v820 = vld [vmem:[%s809 + $0x50] sm:$0xff]
        %v821 = vld [vmem:[%s809 + $0x58] sm:$0xff]
        %v822 = vld [vmem:[%s809 + $0x60] sm:$0xff]
        %v823 = vld [vmem:[%s809 + $0x68] sm:$0xff]
        %v824 = vld [vmem:[%s809 + $0x70] sm:$0xff]
        %v825 = vld [vmem:[%s809 + $0x78] sm:$0xff]
        %v826 = vld [vmem:[%s809 + $0x80] sm:$0xff]
        %v827 = vld [vmem:[%s809 + $0x88] sm:$0xff]
        %v828 = vld [vmem:[%s809 + $0x90] sm:$0xff]
        %v829 = vld [vmem:[%s809 + $0x98] sm:$0xff]
        %v830 = vld [vmem:[%s809 + $0xa0] sm:$0xff]
        %v831 = vld [vmem:[%s809 + $0xa8] sm:$0xff]
        %v832 = vld [vmem:[%s809 + $0xb0] sm:$0xff]
        %v833 = vld [vmem:[%s809 + $0xb8] sm:$0xff]
        %v834 = vld [vmem:[%s809 + $0xc0] sm:$0xff]
        %v835 = vld [vmem:[%s809 + $0xc8] sm:$0xff]
        %v836 = vld [vmem:[%s809 + $0xd0] sm:$0xff]
        %v837 = vld [vmem:[%s809 + $0xd8] sm:$0xff]
        %v838 = vld [vmem:[%s809 + $0xe0] sm:$0xff]
        %v839 = vld [vmem:[%s809 + $0xe8] sm:$0xff]
        %v840 = vld [vmem:[%s809 + $0xf0] sm:$0xff]
        %v841 = vld [vmem:[%s809 + $0xf8] sm:$0xff]
        %v842 = vld [vmem:[%s809 + $0x100] sm:$0xff]
        %v843 = vld [vmem:[%s809 + $0x108] sm:$0xff]
        %v844 = vld [vmem:[%s809 + $0x110] sm:$0xff]
        %v845 = vld [vmem:[%s809 + $0x118] sm:$0xff]
        %v846 = vld [vmem:[%s809 + $0x120] sm:$0xff]
        %v847 = vld [vmem:[%s809 + $0x128] sm:$0xff]
        %v848 = vld [vmem:[%s809 + $0x130] sm:$0xff]
        %v849 = vld [vmem:[%s809 + $0x138] sm:$0xff]
        %v850 = vld [vmem:[%s809 + $0x140] sm:$0xff]
        %v851 = vld [vmem:[%s809 + $0x148] sm:$0xff]
        %v852 = vld [vmem:[%s809 + $0x150] sm:$0xff]
        %v853 = vld [vmem:[%s809 + $0x158] sm:$0xff]
        %v854 = vld [vmem:[%s809 + $0x160] sm:$0xff]
        %v855 = vld [vmem:[%s809 + $0x168] sm:$0xff]
        %v856 = vld [vmem:[%s809 + $0x170] sm:$0xff]
        %v857 = vld [vmem:[%s809 + $0x178] sm:$0xff]
        %v858 = vpack.c.bf16 %v811, %v810
        %v859 = vpack.c.bf16 %v813, %v812
        %v860 = vpack.c.bf16 %v815, %v814
        %v861 = vpack.c.bf16 %v817, %v816
        %v862 = vpack.c.bf16 %v819, %v818
        %v863 = vpack.c.bf16 %v821, %v820
        %v864 = vpack.c.bf16 %v823, %v822
        %v865 = vpack.c.bf16 %v825, %v824
        %v866 = vpack.c.bf16 %v827, %v826
        %v867 = vpack.c.bf16 %v829, %v828
        %v868 = vpack.c.bf16 %v831, %v830
        %v869 = vpack.c.bf16 %v833, %v832
        %v870 = vpack.c.bf16 %v835, %v834
        %v871 = vpack.c.bf16 %v837, %v836
        %v872 = vpack.c.bf16 %v839, %v838
        %v873 = vpack.c.bf16 %v841, %v840
        %v874 = vpack.c.bf16 %v843, %v842
        %v875 = vpack.c.bf16 %v845, %v844
        %v876 = vpack.c.bf16 %v847, %v846
        %v877 = vpack.c.bf16 %v849, %v848
        %v878 = vpack.c.bf16 %v851, %v850
        %v879 = vpack.c.bf16 %v853, %v852
        %v880 = vpack.c.bf16 %v855, %v854
        %v881 = vpack.c.bf16 %v857, %v856
        %882 = vmatprep.subr.bf16.mxu0 0
        %883 = vmatpush1.bf16.msra.mxu0 %v334
        %884 = vmatprep.subr.bf16.mxu0 0
        %885 = vmatpush1.bf16.msra.mxu0 %v333
        %886 = vmatprep.subr.bf16.mxu0 0
        %887 = vmatpush1.bf16.msra.mxu0 %v332
        %888 = vmatprep.subr.bf16.mxu0 0
        %889 = vmatpush1.bf16.msra.mxu0 %v331
        %890 = vmatprep.subr.bf16.mxu0 0
        %891 = vmatpush1.bf16.msra.mxu0 %v330
        %892 = vmatprep.subr.bf16.mxu0 0
        %893 = vmatpush1.bf16.msra.mxu0 %v329
        %894 = vmatprep.subr.bf16.mxu0 0
        %895 = vmatpush1.bf16.msra.mxu0 %v328
        %896 = vmatprep.subr.bf16.mxu0 0
        %897 = vmatpush1.bf16.msra.mxu0 %v327
        %898 = vmatprep.subr.bf16.mxu0 0
        %899 = vmatpush2.bf16.msra.mxu0 0
        %900 = vmatprep.subr.bf16.mxu0 0
        %901 = vmatpush2.bf16.msra.mxu0 0
        %902 = vmatprep.subr.bf16.mxu0 0
        %903 = vmatpush2.bf16.msra.mxu0 0
        %904 = vmatprep.subr.bf16.mxu0 0
        %905 = vmatpush2.bf16.msra.mxu0 0
        %906 = vmatprep.subr.bf16.mxu0 0
        %907 = vmatpush2.bf16.msra.mxu0 0
        %908 = vmatprep.subr.bf16.mxu0 0
        %909 = vmatpush2.bf16.msra.mxu0 0
        %910 = vmatprep.subr.bf16.mxu0 0
        %911 = vmatpush2.bf16.msra.mxu0 0
        %912 = vmatprep.subr.bf16.mxu0 0
        %913 = vmatpush2.bf16.msra.mxu0 0
        %914 = vmatprep.mubr.bf16.mxu0 0
        %915 = vmatmul.mubr.bf16.gmra.mxu0 %v858
        %v916 = vpop.f32.mrf.mxu0
        %v917 = vadd.f32 0.0, %v916
        %v918 = vpop.f32.mrf.mxu0
        %v919 = vpop.f32.mrf.mxu0
        %v920 = vadd.f32 0.0, %v919
        %v921 = vpop.f32.mrf.mxu0
        %922 = vmatprep.mubr.bf16.mxu0 0
        %923 = vmatmul.mubr.bf16.gmra.mxu0 %v859
        %v924 = vpop.f32.mrf.mxu0
        %v925 = vadd.f32 0.0, %v924
        %v926 = vpop.f32.mrf.mxu0
        %v927 = vpop.f32.mrf.mxu0
        %v928 = vadd.f32 0.0, %v927
        %v929 = vpop.f32.mrf.mxu0
        %930 = vmatprep.mubr.bf16.mxu0 0
        %931 = vmatmul.mubr.bf16.gmra.mxu0 %v860
        %v932 = vpop.f32.mrf.mxu0
        %v933 = vadd.f32 0.0, %v932
        %v934 = vpop.f32.mrf.mxu0
        %v935 = vpop.f32.mrf.mxu0
        %v936 = vadd.f32 0.0, %v935
        %v937 = vpop.f32.mrf.mxu0
        %938 = vmatprep.mubr.bf16.mxu0 0
        %939 = vmatmul.mubr.bf16.gmra.mxu0 %v861
        %v940 = vpop.f32.mrf.mxu0
        %v941 = vadd.f32 0.0, %v940
        %v942 = vpop.f32.mrf.mxu0
        %v943 = vpop.f32.mrf.mxu0
        %v944 = vadd.f32 0.0, %v943
        %v945 = vpop.f32.mrf.mxu0
        %946 = vmatprep.mubr.bf16.mxu0 0
        %947 = vmatmul.mubr.bf16.gmra.mxu0 %v862
        %v948 = vpop.f32.mrf.mxu0
        %v949 = vadd.f32 0.0, %v948
        %v950 = vpop.f32.mrf.mxu0
        %v951 = vpop.f32.mrf.mxu0
        %v952 = vadd.f32 0.0, %v951
        %v953 = vpop.f32.mrf.mxu0
        %954 = vmatprep.mubr.bf16.mxu0 0
        %955 = vmatmul.mubr.bf16.gmra.mxu0 %v863
        %v956 = vpop.f32.mrf.mxu0
        %v957 = vadd.f32 0.0, %v956
        %v958 = vpop.f32.mrf.mxu0
        %v959 = vpop.f32.mrf.mxu0
        %v960 = vadd.f32 0.0, %v959
        %v961 = vpop.f32.mrf.mxu0
        %962 = vmatprep.mubr.bf16.mxu0 0
        %963 = vmatmul.mubr.bf16.gmra.mxu0 %v864
        %v964 = vpop.f32.mrf.mxu0
        %v965 = vadd.f32 0.0, %v964
        %v966 = vpop.f32.mrf.mxu0
        %v967 = vpop.f32.mrf.mxu0
        %v968 = vadd.f32 0.0, %v967
        %v969 = vpop.f32.mrf.mxu0
        %970 = vmatprep.mubr.bf16.mxu0 0
        %971 = vmatmul.mubr.bf16.gmra.mxu0 %v865
        %v972 = vpop.f32.mrf.mxu0
        %v973 = vadd.f32 0.0, %v972
        %v974 = vpop.f32.mrf.mxu0
        %v975 = vpop.f32.mrf.mxu0
        %v976 = vadd.f32 0.0, %v975
        %v977 = vpop.f32.mrf.mxu0
        %978 = vmatprep.mubr.bf16.mxu0 0
        %979 = vmatmul.mubr.bf16.gmra.mxu0 %v866
        %v980 = vpop.f32.mrf.mxu0
        %v981 = vadd.f32 0.0, %v980
        %v982 = vpop.f32.mrf.mxu0
        %v983 = vpop.f32.mrf.mxu0
        %v984 = vadd.f32 0.0, %v983
        %v985 = vpop.f32.mrf.mxu0
        %986 = vmatprep.mubr.bf16.mxu0 0
        %987 = vmatmul.mubr.bf16.gmra.mxu0 %v867
        %v988 = vpop.f32.mrf.mxu0
        %v989 = vadd.f32 0.0, %v988
        %v990 = vpop.f32.mrf.mxu0
        %v991 = vpop.f32.mrf.mxu0
        %v992 = vadd.f32 0.0, %v991
        %v993 = vpop.f32.mrf.mxu0
        %994 = vmatprep.mubr.bf16.mxu0 0
        %995 = vmatmul.mubr.bf16.gmra.mxu0 %v868
        %v996 = vpop.f32.mrf.mxu0
        %v997 = vadd.f32 0.0, %v996
        %v998 = vpop.f32.mrf.mxu0
        %v999 = vpop.f32.mrf.mxu0
        %v1000 = vadd.f32 0.0, %v999
        %v1001 = vpop.f32.mrf.mxu0
        %1002 = vmatprep.mubr.bf16.mxu0 0
        %1003 = vmatmul.mubr.bf16.gmra.mxu0 %v869
        %v1004 = vpop.f32.mrf.mxu0
        %v1005 = vadd.f32 0.0, %v1004
        %v1006 = vpop.f32.mrf.mxu0
        %v1007 = vpop.f32.mrf.mxu0
        %v1008 = vadd.f32 0.0, %v1007
        %v1009 = vpop.f32.mrf.mxu0
        %1010 = vmatprep.mubr.bf16.mxu0 0
        %1011 = vmatmul.mubr.bf16.gmra.mxu0 %v870
        %v1012 = vpop.f32.mrf.mxu0
        %v1013 = vadd.f32 0.0, %v1012
        %v1014 = vpop.f32.mrf.mxu0
        %v1015 = vpop.f32.mrf.mxu0
        %v1016 = vadd.f32 0.0, %v1015
        %v1017 = vpop.f32.mrf.mxu0
        %1018 = vmatprep.mubr.bf16.mxu0 0
        %1019 = vmatmul.mubr.bf16.gmra.mxu0 %v871
        %v1020 = vpop.f32.mrf.mxu0
        %v1021 = vadd.f32 0.0, %v1020
        %v1022 = vpop.f32.mrf.mxu0
        %v1023 = vpop.f32.mrf.mxu0
        %v1024 = vadd.f32 0.0, %v1023
        %v1025 = vpop.f32.mrf.mxu0
        %1026 = vmatprep.mubr.bf16.mxu0 0
        %1027 = vmatmul.mubr.bf16.gmra.mxu0 %v872
        %v1028 = vpop.f32.mrf.mxu0
        %v1029 = vadd.f32 0.0, %v1028
        %v1030 = vpop.f32.mrf.mxu0
        %v1031 = vpop.f32.mrf.mxu0
        %v1032 = vadd.f32 0.0, %v1031
        %v1033 = vpop.f32.mrf.mxu0
        %1034 = vmatprep.mubr.bf16.mxu0 0
        %1035 = vmatmul.mubr.bf16.gmra.mxu0 %v873
        %v1036 = vpop.f32.mrf.mxu0
        %v1037 = vadd.f32 0.0, %v1036
        %v1038 = vpop.f32.mrf.mxu0
        %v1039 = vpop.f32.mrf.mxu0
        %v1040 = vadd.f32 0.0, %v1039
        %v1041 = vpop.f32.mrf.mxu0
        %1042 = vmatprep.mubr.bf16.mxu0 0
        %1043 = vmatmul.mubr.bf16.gmra.mxu0 %v874
        %v1044 = vpop.f32.mrf.mxu0
        %v1045 = vadd.f32 0.0, %v1044
        %v1046 = vpop.f32.mrf.mxu0
        %v1047 = vpop.f32.mrf.mxu0
        %v1048 = vadd.f32 0.0, %v1047
        %v1049 = vpop.f32.mrf.mxu0
        %1050 = vmatprep.mubr.bf16.mxu0 0
        %1051 = vmatmul.mubr.bf16.gmra.mxu0 %v875
        %v1052 = vpop.f32.mrf.mxu0
        %v1053 = vadd.f32 0.0, %v1052
        %v1054 = vpop.f32.mrf.mxu0
        %v1055 = vpop.f32.mrf.mxu0
        %v1056 = vadd.f32 0.0, %v1055
        %v1057 = vpop.f32.mrf.mxu0
        %1058 = vmatprep.mubr.bf16.mxu0 0
        %1059 = vmatmul.mubr.bf16.gmra.mxu0 %v876
        %v1060 = vpop.f32.mrf.mxu0
        %v1061 = vadd.f32 0.0, %v1060
        %v1062 = vpop.f32.mrf.mxu0
        %v1063 = vpop.f32.mrf.mxu0
        %v1064 = vadd.f32 0.0, %v1063
        %v1065 = vpop.f32.mrf.mxu0
        %1066 = vmatprep.mubr.bf16.mxu0 0
        %1067 = vmatmul.mubr.bf16.gmra.mxu0 %v877
        %v1068 = vpop.f32.mrf.mxu0
        %v1069 = vadd.f32 0.0, %v1068
        %v1070 = vpop.f32.mrf.mxu0
        %v1071 = vpop.f32.mrf.mxu0
        %v1072 = vadd.f32 0.0, %v1071
        %v1073 = vpop.f32.mrf.mxu0
        %1074 = vmatprep.mubr.bf16.mxu0 0
        %1075 = vmatmul.mubr.bf16.gmra.mxu0 %v878
        %v1076 = vpop.f32.mrf.mxu0
        %v1077 = vadd.f32 0.0, %v1076
        %v1078 = vpop.f32.mrf.mxu0
        %v1079 = vpop.f32.mrf.mxu0
        %v1080 = vadd.f32 0.0, %v1079
        %v1081 = vpop.f32.mrf.mxu0
        %1082 = vmatprep.mubr.bf16.mxu0 0
        %1083 = vmatmul.mubr.bf16.gmra.mxu0 %v879
        %v1084 = vpop.f32.mrf.mxu0
        %v1085 = vadd.f32 0.0, %v1084
        %v1086 = vpop.f32.mrf.mxu0
        %v1087 = vpop.f32.mrf.mxu0
        %v1088 = vadd.f32 0.0, %v1087
        %v1089 = vpop.f32.mrf.mxu0
        %1090 = vmatprep.mubr.bf16.mxu0 0
        %1091 = vmatmul.mubr.bf16.gmra.mxu0 %v880
        %v1092 = vpop.f32.mrf.mxu0
        %v1093 = vadd.f32 0.0, %v1092
        %v1094 = vpop.f32.mrf.mxu0
        %v1095 = vpop.f32.mrf.mxu0
        %v1096 = vadd.f32 0.0, %v1095
        %v1097 = vpop.f32.mrf.mxu0
        %1098 = vmatprep.mubr.bf16.mxu0 0
        %1099 = vmatmul.mubr.bf16.gmra.mxu0 %v881
        %v1100 = vpop.f32.mrf.mxu0
        %v1101 = vadd.f32 0.0, %v1100
        %v1102 = vpop.f32.mrf.mxu0
        %v1103 = vpop.f32.mrf.mxu0
        %v1104 = vadd.f32 0.0, %v1103
        %v1105 = vpop.f32.mrf.mxu0
        %1106 = vdwg.mxu0
        %v1107 = vpack.c.bf16 %v920, %v917
        %v1108 = vpack.c.bf16 %v928, %v925
        %v1109 = vpack.c.bf16 %v936, %v933
        %v1110 = vpack.c.bf16 %v944, %v941
        %v1111 = vpack.c.bf16 %v952, %v949
        %v1112 = vpack.c.bf16 %v960, %v957
        %v1113 = vpack.c.bf16 %v968, %v965
        %v1114 = vpack.c.bf16 %v976, %v973
        %v1115 = vpack.c.bf16 %v984, %v981
        %v1116 = vpack.c.bf16 %v992, %v989
        %v1117 = vpack.c.bf16 %v1000, %v997
        %v1118 = vpack.c.bf16 %v1008, %v1005
        %v1119 = vpack.c.bf16 %v1016, %v1013
        %v1120 = vpack.c.bf16 %v1024, %v1021
        %v1121 = vpack.c.bf16 %v1032, %v1029
        %v1122 = vpack.c.bf16 %v1040, %v1037
        %v1123 = vpack.c.bf16 %v1048, %v1045
        %v1124 = vpack.c.bf16 %v1056, %v1053
        %v1125 = vpack.c.bf16 %v1064, %v1061
        %v1126 = vpack.c.bf16 %v1072, %v1069
        %v1127 = vpack.c.bf16 %v1080, %v1077
        %v1128 = vpack.c.bf16 %v1088, %v1085
        %v1129 = vpack.c.bf16 %v1096, %v1093
        %v1130 = vpack.c.bf16 %v1104, %v1101
        %v1155 = vunpack.c.l.b16 %v1107
        %v1156 = vunpack.c.h.b16 %v1107
        %v1157 = vunpack.c.l.b16 %v1108
        %v1158 = vunpack.c.h.b16 %v1108
        %v1159 = vunpack.c.l.b16 %v1109
        %v1160 = vunpack.c.h.b16 %v1109
        %v1161 = vunpack.c.l.b16 %v1110
        %v1162 = vunpack.c.h.b16 %v1110
        %v1163 = vunpack.c.l.b16 %v1111
        %v1164 = vunpack.c.h.b16 %v1111
        %v1165 = vunpack.c.l.b16 %v1112
        %v1166 = vunpack.c.h.b16 %v1112
        %v1167 = vunpack.c.l.b16 %v1113
        %v1168 = vunpack.c.h.b16 %v1113
        %v1169 = vunpack.c.l.b16 %v1114
        %v1170 = vunpack.c.h.b16 %v1114
        %v1171 = vunpack.c.l.b16 %v1115
        %v1172 = vunpack.c.h.b16 %v1115
        %v1173 = vunpack.c.l.b16 %v1116
        %v1174 = vunpack.c.h.b16 %v1116
        %v1175 = vunpack.c.l.b16 %v1117
        %v1176 = vunpack.c.h.b16 %v1117
        %v1177 = vunpack.c.l.b16 %v1118
        %v1178 = vunpack.c.h.b16 %v1118
        %v1179 = vunpack.c.l.b16 %v1119
        %v1180 = vunpack.c.h.b16 %v1119
        %v1181 = vunpack.c.l.b16 %v1120
        %v1182 = vunpack.c.h.b16 %v1120
        %v1183 = vunpack.c.l.b16 %v1121
        %v1184 = vunpack.c.h.b16 %v1121
        %v1185 = vunpack.c.l.b16 %v1122
        %v1186 = vunpack.c.h.b16 %v1122
        %v1187 = vunpack.c.l.b16 %v1123
        %v1188 = vunpack.c.h.b16 %v1123
        %v1189 = vunpack.c.l.b16 %v1124
        %v1190 = vunpack.c.h.b16 %v1124
        %v1191 = vunpack.c.l.b16 %v1125
        %v1192 = vunpack.c.h.b16 %v1125
        %v1193 = vunpack.c.l.b16 %v1126
        %v1194 = vunpack.c.h.b16 %v1126
        %v1195 = vunpack.c.l.b16 %v1127
        %v1196 = vunpack.c.h.b16 %v1127
        %v1197 = vunpack.c.l.b16 %v1128
        %v1198 = vunpack.c.h.b16 %v1128
        %v1199 = vunpack.c.l.b16 %v1129
        %v1200 = vunpack.c.h.b16 %v1129
        %v1201 = vunpack.c.l.b16 %v1130
        %v1202 = vunpack.c.h.b16 %v1130
        %v1203 = vpack.c.b16 %v1155, %v1155
        %v1204 = vpack.c.b16 %v1156, %v1156
        %v1205 = vpack.c.b16 %v1157, %v1157
        %v1206 = vpack.c.b16 %v1158, %v1158
        %v1207 = vpack.c.b16 %v1159, %v1159
        %v1208 = vpack.c.b16 %v1160, %v1160
        %v1209 = vpack.c.b16 %v1161, %v1161
        %v1210 = vpack.c.b16 %v1162, %v1162
        %v1211 = vpack.c.b16 %v1163, %v1163
        %v1212 = vpack.c.b16 %v1164, %v1164
        %v1213 = vpack.c.b16 %v1165, %v1165
        %v1214 = vpack.c.b16 %v1166, %v1166
        %v1215 = vpack.c.b16 %v1167, %v1167
        %v1216 = vpack.c.b16 %v1168, %v1168
        %v1217 = vpack.c.b16 %v1169, %v1169
        %v1218 = vpack.c.b16 %v1170, %v1170
        %v1219 = vpack.c.b16 %v1171, %v1171
        %v1220 = vpack.c.b16 %v1172, %v1172
        %v1221 = vpack.c.b16 %v1173, %v1173
        %v1222 = vpack.c.b16 %v1174, %v1174
        %v1223 = vpack.c.b16 %v1175, %v1175
        %v1224 = vpack.c.b16 %v1176, %v1176
        %v1225 = vpack.c.b16 %v1177, %v1177
        %v1226 = vpack.c.b16 %v1178, %v1178
        %v1227 = vpack.c.b16 %v1179, %v1179
        %v1228 = vpack.c.b16 %v1180, %v1180
        %v1229 = vpack.c.b16 %v1181, %v1181
        %v1230 = vpack.c.b16 %v1182, %v1182
        %v1231 = vpack.c.b16 %v1183, %v1183
        %v1232 = vpack.c.b16 %v1184, %v1184
        %v1233 = vpack.c.b16 %v1185, %v1185
        %v1234 = vpack.c.b16 %v1186, %v1186
        %v1235 = vpack.c.b16 %v1187, %v1187
        %v1236 = vpack.c.b16 %v1188, %v1188
        %v1237 = vpack.c.b16 %v1189, %v1189
        %v1238 = vpack.c.b16 %v1190, %v1190
        %v1239 = vpack.c.b16 %v1191, %v1191
        %v1240 = vpack.c.b16 %v1192, %v1192
        %v1241 = vpack.c.b16 %v1193, %v1193
        %v1242 = vpack.c.b16 %v1194, %v1194
        %v1243 = vpack.c.b16 %v1195, %v1195
        %v1244 = vpack.c.b16 %v1196, %v1196
        %v1245 = vpack.c.b16 %v1197, %v1197
        %v1246 = vpack.c.b16 %v1198, %v1198
        %v1247 = vpack.c.b16 %v1199, %v1199
        %v1248 = vpack.c.b16 %v1200, %v1200
        %v1249 = vpack.c.b16 %v1201, %v1201
        %v1250 = vpack.c.b16 %v1202, %v1202
        %1251 = vrot.lane.b32.xlu0 %v1203, 16
        %v1252 = vpop.permute.xlu0 %1251
        %1253 = vrot.lane.b32.xlu0 %v1204, 16
        %v1254 = vpop.permute.xlu0 %1253
        %1255 = vrot.lane.b32.xlu0 %v1205, 16
        %v1256 = vpop.permute.xlu0 %1255
        %1257 = vrot.lane.b32.xlu0 %v1206, 16
        %v1258 = vpop.permute.xlu0 %1257
        %1259 = vrot.lane.b32.xlu0 %v1207, 16
        %v1260 = vpop.permute.xlu0 %1259
        %1261 = vrot.lane.b32.xlu0 %v1208, 16
        %v1262 = vpop.permute.xlu0 %1261
        %1263 = vrot.lane.b32.xlu0 %v1209, 16
        %v1264 = vpop.permute.xlu0 %1263
        %1265 = vrot.lane.b32.xlu0 %v1210, 16
        %v1266 = vpop.permute.xlu0 %1265
        %1267 = vrot.lane.b32.xlu0 %v1211, 16
        %v1268 = vpop.permute.xlu0 %1267
        %1269 = vrot.lane.b32.xlu0 %v1212, 16
        %v1270 = vpop.permute.xlu0 %1269
        %1271 = vrot.lane.b32.xlu0 %v1213, 16
        %v1272 = vpop.permute.xlu0 %1271
        %1273 = vrot.lane.b32.xlu0 %v1214, 16
        %v1274 = vpop.permute.xlu0 %1273
        %1275 = vrot.lane.b32.xlu0 %v1215, 16
        %v1276 = vpop.permute.xlu0 %1275
        %1277 = vrot.lane.b32.xlu0 %v1216, 16
        %v1278 = vpop.permute.xlu0 %1277
        %1279 = vrot.lane.b32.xlu0 %v1217, 16
        %v1280 = vpop.permute.xlu0 %1279
        %1281 = vrot.lane.b32.xlu0 %v1218, 16
        %v1282 = vpop.permute.xlu0 %1281
        %1283 = vrot.lane.b32.xlu0 %v1219, 16
        %v1284 = vpop.permute.xlu0 %1283
        %1285 = vrot.lane.b32.xlu0 %v1220, 16
        %v1286 = vpop.permute.xlu0 %1285
        %1287 = vrot.lane.b32.xlu0 %v1221, 16
        %v1288 = vpop.permute.xlu0 %1287
        %1289 = vrot.lane.b32.xlu0 %v1222, 16
        %v1290 = vpop.permute.xlu0 %1289
        %1291 = vrot.lane.b32.xlu0 %v1223, 16
        %v1292 = vpop.permute.xlu0 %1291
        %1293 = vrot.lane.b32.xlu0 %v1224, 16
        %v1294 = vpop.permute.xlu0 %1293
        %1295 = vrot.lane.b32.xlu0 %v1225, 16
        %v1296 = vpop.permute.xlu0 %1295
        %1297 = vrot.lane.b32.xlu0 %v1226, 16
        %v1298 = vpop.permute.xlu0 %1297
        %1299 = vrot.lane.b32.xlu0 %v1227, 16
        %v1300 = vpop.permute.xlu0 %1299
        %1301 = vrot.lane.b32.xlu0 %v1228, 16
        %v1302 = vpop.permute.xlu0 %1301
        %1303 = vrot.lane.b32.xlu0 %v1229, 16
        %v1304 = vpop.permute.xlu0 %1303
        %1305 = vrot.lane.b32.xlu0 %v1230, 16
        %v1306 = vpop.permute.xlu0 %1305
        %1307 = vrot.lane.b32.xlu0 %v1231, 16
        %v1308 = vpop.permute.xlu0 %1307
        %1309 = vrot.lane.b32.xlu0 %v1232, 16
        %v1310 = vpop.permute.xlu0 %1309
        %1311 = vrot.lane.b32.xlu0 %v1233, 16
        %v1312 = vpop.permute.xlu0 %1311
        %1313 = vrot.lane.b32.xlu0 %v1234, 16
        %v1314 = vpop.permute.xlu0 %1313
        %1315 = vrot.lane.b32.xlu0 %v1235, 16
        %v1316 = vpop.permute.xlu0 %1315
        %1317 = vrot.lane.b32.xlu0 %v1236, 16
        %v1318 = vpop.permute.xlu0 %1317
        %1319 = vrot.lane.b32.xlu0 %v1237, 16
        %v1320 = vpop.permute.xlu0 %1319
        %1321 = vrot.lane.b32.xlu0 %v1238, 16
        %v1322 = vpop.permute.xlu0 %1321
        %1323 = vrot.lane.b32.xlu0 %v1239, 16
        %v1324 = vpop.permute.xlu0 %1323
        %1325 = vrot.lane.b32.xlu0 %v1240, 16
        %v1326 = vpop.permute.xlu0 %1325
        %1327 = vrot.lane.b32.xlu0 %v1241, 16
        %v1328 = vpop.permute.xlu0 %1327
        %1329 = vrot.lane.b32.xlu0 %v1242, 16
        %v1330 = vpop.permute.xlu0 %1329
        %1331 = vrot.lane.b32.xlu0 %v1243, 16
        %v1332 = vpop.permute.xlu0 %1331
        %1333 = vrot.lane.b32.xlu0 %v1244, 16
        %v1334 = vpop.permute.xlu0 %1333
        %1335 = vrot.lane.b32.xlu0 %v1245, 16
        %v1336 = vpop.permute.xlu0 %1335
        %1337 = vrot.lane.b32.xlu0 %v1246, 16
        %v1338 = vpop.permute.xlu0 %1337
        %1339 = vrot.lane.b32.xlu0 %v1247, 16
        %v1340 = vpop.permute.xlu0 %1339
        %1341 = vrot.lane.b32.xlu0 %v1248, 16
        %v1342 = vpop.permute.xlu0 %1341
        %1343 = vrot.lane.b32.xlu0 %v1249, 16
        %v1344 = vpop.permute.xlu0 %1343
        %1345 = vrot.lane.b32.xlu0 %v1250, 16
        %v1346 = vpop.permute.xlu0 %1345
        %vm1395 = vcmask 257152
        %1396 = vst.msk [vmem:[#allocation2] sm:$0xf] %vm1395, %v1252
        %1397 = vst.msk [vmem:[#allocation2 + $0x4] sm:$0xf] %vm1395, %v1254
        %1398 = vst.msk [vmem:[#allocation2 + $0x8] sm:$0xf] %vm1395, %v1256
        %1399 = vst.msk [vmem:[#allocation2 + $0xc] sm:$0xf] %vm1395, %v1258
        %1400 = vst.msk [vmem:[#allocation2 + $0x10] sm:$0xf] %vm1395, %v1260
        %1401 = vst.msk [vmem:[#allocation2 + $0x14] sm:$0xf] %vm1395, %v1262
        %1402 = vst.msk [vmem:[#allocation2 + $0x18] sm:$0xf] %vm1395, %v1264
        %1403 = vst.msk [vmem:[#allocation2 + $0x1c] sm:$0xf] %vm1395, %v1266
        %1404 = vst.msk [vmem:[#allocation2 + $0x20] sm:$0xf] %vm1395, %v1268
        %1405 = vst.msk [vmem:[#allocation2 + $0x24] sm:$0xf] %vm1395, %v1270
        %1406 = vst.msk [vmem:[#allocation2 + $0x28] sm:$0xf] %vm1395, %v1272
        %1407 = vst.msk [vmem:[#allocation2 + $0x2c] sm:$0xf] %vm1395, %v1274
        %1408 = vst.msk [vmem:[#allocation2 + $0x30] sm:$0xf] %vm1395, %v1276
        %1409 = vst.msk [vmem:[#allocation2 + $0x34] sm:$0xf] %vm1395, %v1278
        %1410 = vst.msk [vmem:[#allocation2 + $0x38] sm:$0xf] %vm1395, %v1280
        %1411 = vst.msk [vmem:[#allocation2 + $0x3c] sm:$0xf] %vm1395, %v1282
        %1412 = vst.msk [vmem:[#allocation2 + $0x40] sm:$0xf] %vm1395, %v1284
        %1413 = vst.msk [vmem:[#allocation2 + $0x44] sm:$0xf] %vm1395, %v1286
        %1414 = vst.msk [vmem:[#allocation2 + $0x48] sm:$0xf] %vm1395, %v1288
        %1415 = vst.msk [vmem:[#allocation2 + $0x4c] sm:$0xf] %vm1395, %v1290
        %1416 = vst.msk [vmem:[#allocation2 + $0x50] sm:$0xf] %vm1395, %v1292
        %1417 = vst.msk [vmem:[#allocation2 + $0x54] sm:$0xf] %vm1395, %v1294
        %1418 = vst.msk [vmem:[#allocation2 + $0x58] sm:$0xf] %vm1395, %v1296
        %1419 = vst.msk [vmem:[#allocation2 + $0x5c] sm:$0xf] %vm1395, %v1298
        %1420 = vst.msk [vmem:[#allocation2 + $0x60] sm:$0xf] %vm1395, %v1300
        %1421 = vst.msk [vmem:[#allocation2 + $0x64] sm:$0xf] %vm1395, %v1302
        %1422 = vst.msk [vmem:[#allocation2 + $0x68] sm:$0xf] %vm1395, %v1304
        %1423 = vst.msk [vmem:[#allocation2 + $0x6c] sm:$0xf] %vm1395, %v1306
        %1424 = vst.msk [vmem:[#allocation2 + $0x70] sm:$0xf] %vm1395, %v1308
        %1425 = vst.msk [vmem:[#allocation2 + $0x74] sm:$0xf] %vm1395, %v1310
        %1426 = vst.msk [vmem:[#allocation2 + $0x78] sm:$0xf] %vm1395, %v1312
        %1427 = vst.msk [vmem:[#allocation2 + $0x7c] sm:$0xf] %vm1395, %v1314
        %1428 = vst.msk [vmem:[#allocation2 + $0x80] sm:$0xf] %vm1395, %v1316
        %1429 = vst.msk [vmem:[#allocation2 + $0x84] sm:$0xf] %vm1395, %v1318
        %1430 = vst.msk [vmem:[#allocation2 + $0x88] sm:$0xf] %vm1395, %v1320
        %1431 = vst.msk [vmem:[#allocation2 + $0x8c] sm:$0xf] %vm1395, %v1322
        %1432 = vst.msk [vmem:[#allocation2 + $0x90] sm:$0xf] %vm1395, %v1324
        %1433 = vst.msk [vmem:[#allocation2 + $0x94] sm:$0xf] %vm1395, %v1326
        %1434 = vst.msk [vmem:[#allocation2 + $0x98] sm:$0xf] %vm1395, %v1328
        %1435 = vst.msk [vmem:[#allocation2 + $0x9c] sm:$0xf] %vm1395, %v1330
        %1436 = vst.msk [vmem:[#allocation2 + $0xa0] sm:$0xf] %vm1395, %v1332
        %1437 = vst.msk [vmem:[#allocation2 + $0xa4] sm:$0xf] %vm1395, %v1334
        %1438 = vst.msk [vmem:[#allocation2 + $0xa8] sm:$0xf] %vm1395, %v1336
        %1439 = vst.msk [vmem:[#allocation2 + $0xac] sm:$0xf] %vm1395, %v1338
        %1440 = vst.msk [vmem:[#allocation2 + $0xb0] sm:$0xf] %vm1395, %v1340
        %1441 = vst.msk [vmem:[#allocation2 + $0xb4] sm:$0xf] %vm1395, %v1342
        %1442 = vst.msk [vmem:[#allocation2 + $0xb8] sm:$0xf] %vm1395, %v1344
        %1443 = vst.msk [vmem:[#allocation2 + $0xbc] sm:$0xf] %vm1395, %v1346
        %s1444 = scalar_lea.vmem %s178, 768 [#allocation3]
        %v1445 = vld [vmem:[%s1444] sm:$0xff]
        %v1446 = vld [vmem:[%s1444 + $0x8] sm:$0xff]
        %v1447 = vld [vmem:[%s1444 + $0x10] sm:$0xff]
        %v1448 = vld [vmem:[%s1444 + $0x18] sm:$0xff]
        %v1449 = vld [vmem:[%s1444 + $0x20] sm:$0xff]
        %v1450 = vld [vmem:[%s1444 + $0x28] sm:$0xff]
        %v1451 = vld [vmem:[%s1444 + $0x30] sm:$0xff]
        %v1452 = vld [vmem:[%s1444 + $0x38] sm:$0xff]
        %v1453 = vld [vmem:[%s1444 + $0x40] sm:$0xff]
        %v1454 = vld [vmem:[%s1444 + $0x48] sm:$0xff]
        %v1455 = vld [vmem:[%s1444 + $0x50] sm:$0xff]
        %v1456 = vld [vmem:[%s1444 + $0x58] sm:$0xff]
        %v1457 = vld [vmem:[%s1444 + $0x60] sm:$0xff]
        %v1458 = vld [vmem:[%s1444 + $0x68] sm:$0xff]
        %v1459 = vld [vmem:[%s1444 + $0x70] sm:$0xff]
        %v1460 = vld [vmem:[%s1444 + $0x78] sm:$0xff]
        %v1461 = vld [vmem:[%s1444 + $0x80] sm:$0xff]
        %v1462 = vld [vmem:[%s1444 + $0x88] sm:$0xff]
        %v1463 = vld [vmem:[%s1444 + $0x90] sm:$0xff]
        %v1464 = vld [vmem:[%s1444 + $0x98] sm:$0xff]
        %v1465 = vld [vmem:[%s1444 + $0xa0] sm:$0xff]
        %v1466 = vld [vmem:[%s1444 + $0xa8] sm:$0xff]
        %v1467 = vld [vmem:[%s1444 + $0xb0] sm:$0xff]
        %v1468 = vld [vmem:[%s1444 + $0xb8] sm:$0xff]
        %v1469 = vld [vmem:[%s1444 + $0xc0] sm:$0xff]
        %v1470 = vld [vmem:[%s1444 + $0xc8] sm:$0xff]
        %v1471 = vld [vmem:[%s1444 + $0xd0] sm:$0xff]
        %v1472 = vld [vmem:[%s1444 + $0xd8] sm:$0xff]
        %v1473 = vld [vmem:[%s1444 + $0xe0] sm:$0xff]
        %v1474 = vld [vmem:[%s1444 + $0xe8] sm:$0xff]
        %v1475 = vld [vmem:[%s1444 + $0xf0] sm:$0xff]
        %v1476 = vld [vmem:[%s1444 + $0xf8] sm:$0xff]
        %v1477 = vld [vmem:[%s1444 + $0x100] sm:$0xff]
        %v1478 = vld [vmem:[%s1444 + $0x108] sm:$0xff]
        %v1479 = vld [vmem:[%s1444 + $0x110] sm:$0xff]
        %v1480 = vld [vmem:[%s1444 + $0x118] sm:$0xff]
        %v1481 = vld [vmem:[%s1444 + $0x120] sm:$0xff]
        %v1482 = vld [vmem:[%s1444 + $0x128] sm:$0xff]
        %v1483 = vld [vmem:[%s1444 + $0x130] sm:$0xff]
        %v1484 = vld [vmem:[%s1444 + $0x138] sm:$0xff]
        %v1485 = vld [vmem:[%s1444 + $0x140] sm:$0xff]
        %v1486 = vld [vmem:[%s1444 + $0x148] sm:$0xff]
        %v1487 = vld [vmem:[%s1444 + $0x150] sm:$0xff]
        %v1488 = vld [vmem:[%s1444 + $0x158] sm:$0xff]
        %v1489 = vld [vmem:[%s1444 + $0x160] sm:$0xff]
        %v1490 = vld [vmem:[%s1444 + $0x168] sm:$0xff]
        %v1491 = vld [vmem:[%s1444 + $0x170] sm:$0xff]
        %v1492 = vld [vmem:[%s1444 + $0x178] sm:$0xff]
        %v1493 = vpack.c.bf16 %v1446, %v1445
        %v1494 = vpack.c.bf16 %v1448, %v1447
        %v1495 = vpack.c.bf16 %v1450, %v1449
        %v1496 = vpack.c.bf16 %v1452, %v1451
        %v1497 = vpack.c.bf16 %v1454, %v1453
        %v1498 = vpack.c.bf16 %v1456, %v1455
        %v1499 = vpack.c.bf16 %v1458, %v1457
        %v1500 = vpack.c.bf16 %v1460, %v1459
        %v1501 = vpack.c.bf16 %v1462, %v1461
        %v1502 = vpack.c.bf16 %v1464, %v1463
        %v1503 = vpack.c.bf16 %v1466, %v1465
        %v1504 = vpack.c.bf16 %v1468, %v1467
        %v1505 = vpack.c.bf16 %v1470, %v1469
        %v1506 = vpack.c.bf16 %v1472, %v1471
        %v1507 = vpack.c.bf16 %v1474, %v1473
        %v1508 = vpack.c.bf16 %v1476, %v1475
        %v1509 = vpack.c.bf16 %v1478, %v1477
        %v1510 = vpack.c.bf16 %v1480, %v1479
        %v1511 = vpack.c.bf16 %v1482, %v1481
        %v1512 = vpack.c.bf16 %v1484, %v1483
        %v1513 = vpack.c.bf16 %v1486, %v1485
        %v1514 = vpack.c.bf16 %v1488, %v1487
        %v1515 = vpack.c.bf16 %v1490, %v1489
        %v1516 = vpack.c.bf16 %v1492, %v1491
        %1517 = vmatprep.subr.bf16.mxu0 0
        %1518 = vmatpush1.bf16.msra.mxu0 %v334
        %1519 = vmatprep.subr.bf16.mxu0 0
        %1520 = vmatpush1.bf16.msra.mxu0 %v333
        %1521 = vmatprep.subr.bf16.mxu0 0
        %1522 = vmatpush1.bf16.msra.mxu0 %v332
        %1523 = vmatprep.subr.bf16.mxu0 0
        %1524 = vmatpush1.bf16.msra.mxu0 %v331
        %1525 = vmatprep.subr.bf16.mxu0 0
        %1526 = vmatpush1.bf16.msra.mxu0 %v330
        %1527 = vmatprep.subr.bf16.mxu0 0
        %1528 = vmatpush1.bf16.msra.mxu0 %v329
        %1529 = vmatprep.subr.bf16.mxu0 0
        %1530 = vmatpush1.bf16.msra.mxu0 %v328
        %1531 = vmatprep.subr.bf16.mxu0 0
        %1532 = vmatpush1.bf16.msra.mxu0 %v327
        %1533 = vmatprep.subr.bf16.mxu0 0
        %1534 = vmatpush2.bf16.msra.mxu0 0
        %1535 = vmatprep.subr.bf16.mxu0 0
        %1536 = vmatpush2.bf16.msra.mxu0 0
        %1537 = vmatprep.subr.bf16.mxu0 0
        %1538 = vmatpush2.bf16.msra.mxu0 0
        %1539 = vmatprep.subr.bf16.mxu0 0
        %1540 = vmatpush2.bf16.msra.mxu0 0
        %1541 = vmatprep.subr.bf16.mxu0 0
        %1542 = vmatpush2.bf16.msra.mxu0 0
        %1543 = vmatprep.subr.bf16.mxu0 0
        %1544 = vmatpush2.bf16.msra.mxu0 0
        %1545 = vmatprep.subr.bf16.mxu0 0
        %1546 = vmatpush2.bf16.msra.mxu0 0
        %1547 = vmatprep.subr.bf16.mxu0 0
        %1548 = vmatpush2.bf16.msra.mxu0 0
        %1549 = vmatprep.mubr.bf16.mxu0 0
        %1550 = vmatmul.mubr.bf16.gmra.mxu0 %v1493
        %v1551 = vpop.f32.mrf.mxu0
        %v1552 = vadd.f32 0.0, %v1551
        %v1553 = vpop.f32.mrf.mxu0
        %v1554 = vpop.f32.mrf.mxu0
        %v1555 = vadd.f32 0.0, %v1554
        %v1556 = vpop.f32.mrf.mxu0
        %1557 = vmatprep.mubr.bf16.mxu0 0
        %1558 = vmatmul.mubr.bf16.gmra.mxu0 %v1494
        %v1559 = vpop.f32.mrf.mxu0
        %v1560 = vadd.f32 0.0, %v1559
        %v1561 = vpop.f32.mrf.mxu0
        %v1562 = vpop.f32.mrf.mxu0
        %v1563 = vadd.f32 0.0, %v1562
        %v1564 = vpop.f32.mrf.mxu0
        %1565 = vmatprep.mubr.bf16.mxu0 0
        %1566 = vmatmul.mubr.bf16.gmra.mxu0 %v1495
        %v1567 = vpop.f32.mrf.mxu0
        %v1568 = vadd.f32 0.0, %v1567
        %v1569 = vpop.f32.mrf.mxu0
        %v1570 = vpop.f32.mrf.mxu0
        %v1571 = vadd.f32 0.0, %v1570
        %v1572 = vpop.f32.mrf.mxu0
        %1573 = vmatprep.mubr.bf16.mxu0 0
        %1574 = vmatmul.mubr.bf16.gmra.mxu0 %v1496
        %v1575 = vpop.f32.mrf.mxu0
        %v1576 = vadd.f32 0.0, %v1575
        %v1577 = vpop.f32.mrf.mxu0
        %v1578 = vpop.f32.mrf.mxu0
        %v1579 = vadd.f32 0.0, %v1578
        %v1580 = vpop.f32.mrf.mxu0
        %1581 = vmatprep.mubr.bf16.mxu0 0
        %1582 = vmatmul.mubr.bf16.gmra.mxu0 %v1497
        %v1583 = vpop.f32.mrf.mxu0
        %v1584 = vadd.f32 0.0, %v1583
        %v1585 = vpop.f32.mrf.mxu0
        %v1586 = vpop.f32.mrf.mxu0
        %v1587 = vadd.f32 0.0, %v1586
        %v1588 = vpop.f32.mrf.mxu0
        %1589 = vmatprep.mubr.bf16.mxu0 0
        %1590 = vmatmul.mubr.bf16.gmra.mxu0 %v1498
        %v1591 = vpop.f32.mrf.mxu0
        %v1592 = vadd.f32 0.0, %v1591
        %v1593 = vpop.f32.mrf.mxu0
        %v1594 = vpop.f32.mrf.mxu0
        %v1595 = vadd.f32 0.0, %v1594
        %v1596 = vpop.f32.mrf.mxu0
        %1597 = vmatprep.mubr.bf16.mxu0 0
        %1598 = vmatmul.mubr.bf16.gmra.mxu0 %v1499
        %v1599 = vpop.f32.mrf.mxu0
        %v1600 = vadd.f32 0.0, %v1599
        %v1601 = vpop.f32.mrf.mxu0
        %v1602 = vpop.f32.mrf.mxu0
        %v1603 = vadd.f32 0.0, %v1602
        %v1604 = vpop.f32.mrf.mxu0
        %1605 = vmatprep.mubr.bf16.mxu0 0
        %1606 = vmatmul.mubr.bf16.gmra.mxu0 %v1500
        %v1607 = vpop.f32.mrf.mxu0
        %v1608 = vadd.f32 0.0, %v1607
        %v1609 = vpop.f32.mrf.mxu0
        %v1610 = vpop.f32.mrf.mxu0
        %v1611 = vadd.f32 0.0, %v1610
        %v1612 = vpop.f32.mrf.mxu0
        %1613 = vmatprep.mubr.bf16.mxu0 0
        %1614 = vmatmul.mubr.bf16.gmra.mxu0 %v1501
        %v1615 = vpop.f32.mrf.mxu0
        %v1616 = vadd.f32 0.0, %v1615
        %v1617 = vpop.f32.mrf.mxu0
        %v1618 = vpop.f32.mrf.mxu0
        %v1619 = vadd.f32 0.0, %v1618
        %v1620 = vpop.f32.mrf.mxu0
        %1621 = vmatprep.mubr.bf16.mxu0 0
        %1622 = vmatmul.mubr.bf16.gmra.mxu0 %v1502
        %v1623 = vpop.f32.mrf.mxu0
        %v1624 = vadd.f32 0.0, %v1623
        %v1625 = vpop.f32.mrf.mxu0
        %v1626 = vpop.f32.mrf.mxu0
        %v1627 = vadd.f32 0.0, %v1626
        %v1628 = vpop.f32.mrf.mxu0
        %1629 = vmatprep.mubr.bf16.mxu0 0
        %1630 = vmatmul.mubr.bf16.gmra.mxu0 %v1503
        %v1631 = vpop.f32.mrf.mxu0
        %v1632 = vadd.f32 0.0, %v1631
        %v1633 = vpop.f32.mrf.mxu0
        %v1634 = vpop.f32.mrf.mxu0
        %v1635 = vadd.f32 0.0, %v1634
        %v1636 = vpop.f32.mrf.mxu0
        %1637 = vmatprep.mubr.bf16.mxu0 0
        %1638 = vmatmul.mubr.bf16.gmra.mxu0 %v1504
        %v1639 = vpop.f32.mrf.mxu0
        %v1640 = vadd.f32 0.0, %v1639
        %v1641 = vpop.f32.mrf.mxu0
        %v1642 = vpop.f32.mrf.mxu0
        %v1643 = vadd.f32 0.0, %v1642
        %v1644 = vpop.f32.mrf.mxu0
        %1645 = vmatprep.mubr.bf16.mxu0 0
        %1646 = vmatmul.mubr.bf16.gmra.mxu0 %v1505
        %v1647 = vpop.f32.mrf.mxu0
        %v1648 = vadd.f32 0.0, %v1647
        %v1649 = vpop.f32.mrf.mxu0
        %v1650 = vpop.f32.mrf.mxu0
        %v1651 = vadd.f32 0.0, %v1650
        %v1652 = vpop.f32.mrf.mxu0
        %1653 = vmatprep.mubr.bf16.mxu0 0
        %1654 = vmatmul.mubr.bf16.gmra.mxu0 %v1506
        %v1655 = vpop.f32.mrf.mxu0
        %v1656 = vadd.f32 0.0, %v1655
        %v1657 = vpop.f32.mrf.mxu0
        %v1658 = vpop.f32.mrf.mxu0
        %v1659 = vadd.f32 0.0, %v1658
        %v1660 = vpop.f32.mrf.mxu0
        %1661 = vmatprep.mubr.bf16.mxu0 0
        %1662 = vmatmul.mubr.bf16.gmra.mxu0 %v1507
        %v1663 = vpop.f32.mrf.mxu0
        %v1664 = vadd.f32 0.0, %v1663
        %v1665 = vpop.f32.mrf.mxu0
        %v1666 = vpop.f32.mrf.mxu0
        %v1667 = vadd.f32 0.0, %v1666
        %v1668 = vpop.f32.mrf.mxu0
        %1669 = vmatprep.mubr.bf16.mxu0 0
        %1670 = vmatmul.mubr.bf16.gmra.mxu0 %v1508
        %v1671 = vpop.f32.mrf.mxu0
        %v1672 = vadd.f32 0.0, %v1671
        %v1673 = vpop.f32.mrf.mxu0
        %v1674 = vpop.f32.mrf.mxu0
        %v1675 = vadd.f32 0.0, %v1674
        %v1676 = vpop.f32.mrf.mxu0
        %1677 = vmatprep.mubr.bf16.mxu0 0
        %1678 = vmatmul.mubr.bf16.gmra.mxu0 %v1509
        %v1679 = vpop.f32.mrf.mxu0
        %v1680 = vadd.f32 0.0, %v1679
        %v1681 = vpop.f32.mrf.mxu0
        %v1682 = vpop.f32.mrf.mxu0
        %v1683 = vadd.f32 0.0, %v1682
        %v1684 = vpop.f32.mrf.mxu0
        %1685 = vmatprep.mubr.bf16.mxu0 0
        %1686 = vmatmul.mubr.bf16.gmra.mxu0 %v1510
        %v1687 = vpop.f32.mrf.mxu0
        %v1688 = vadd.f32 0.0, %v1687
        %v1689 = vpop.f32.mrf.mxu0
        %v1690 = vpop.f32.mrf.mxu0
        %v1691 = vadd.f32 0.0, %v1690
        %v1692 = vpop.f32.mrf.mxu0
        %1693 = vmatprep.mubr.bf16.mxu0 0
        %1694 = vmatmul.mubr.bf16.gmra.mxu0 %v1511
        %v1695 = vpop.f32.mrf.mxu0
        %v1696 = vadd.f32 0.0, %v1695
        %v1697 = vpop.f32.mrf.mxu0
        %v1698 = vpop.f32.mrf.mxu0
        %v1699 = vadd.f32 0.0, %v1698
        %v1700 = vpop.f32.mrf.mxu0
        %1701 = vmatprep.mubr.bf16.mxu0 0
        %1702 = vmatmul.mubr.bf16.gmra.mxu0 %v1512
        %v1703 = vpop.f32.mrf.mxu0
        %v1704 = vadd.f32 0.0, %v1703
        %v1705 = vpop.f32.mrf.mxu0
        %v1706 = vpop.f32.mrf.mxu0
        %v1707 = vadd.f32 0.0, %v1706
        %v1708 = vpop.f32.mrf.mxu0
        %1709 = vmatprep.mubr.bf16.mxu0 0
        %1710 = vmatmul.mubr.bf16.gmra.mxu0 %v1513
        %v1711 = vpop.f32.mrf.mxu0
        %v1712 = vadd.f32 0.0, %v1711
        %v1713 = vpop.f32.mrf.mxu0
        %v1714 = vpop.f32.mrf.mxu0
        %v1715 = vadd.f32 0.0, %v1714
        %v1716 = vpop.f32.mrf.mxu0
        %1717 = vmatprep.mubr.bf16.mxu0 0
        %1718 = vmatmul.mubr.bf16.gmra.mxu0 %v1514
        %v1719 = vpop.f32.mrf.mxu0
        %v1720 = vadd.f32 0.0, %v1719
        %v1721 = vpop.f32.mrf.mxu0
        %v1722 = vpop.f32.mrf.mxu0
        %v1723 = vadd.f32 0.0, %v1722
        %v1724 = vpop.f32.mrf.mxu0
        %1725 = vmatprep.mubr.bf16.mxu0 0
        %1726 = vmatmul.mubr.bf16.gmra.mxu0 %v1515
        %v1727 = vpop.f32.mrf.mxu0
        %v1728 = vadd.f32 0.0, %v1727
        %v1729 = vpop.f32.mrf.mxu0
        %v1730 = vpop.f32.mrf.mxu0
        %v1731 = vadd.f32 0.0, %v1730
        %v1732 = vpop.f32.mrf.mxu0
        %1733 = vmatprep.mubr.bf16.mxu0 0
        %1734 = vmatmul.mubr.bf16.gmra.mxu0 %v1516
        %v1735 = vpop.f32.mrf.mxu0
        %v1736 = vadd.f32 0.0, %v1735
        %v1737 = vpop.f32.mrf.mxu0
        %v1738 = vpop.f32.mrf.mxu0
        %v1739 = vadd.f32 0.0, %v1738
        %v1740 = vpop.f32.mrf.mxu0
        %1741 = vdwg.mxu0
        %v1742 = vpack.c.bf16 %v1555, %v1552
        %v1743 = vpack.c.bf16 %v1563, %v1560
        %v1744 = vpack.c.bf16 %v1571, %v1568
        %v1745 = vpack.c.bf16 %v1579, %v1576
        %v1746 = vpack.c.bf16 %v1587, %v1584
        %v1747 = vpack.c.bf16 %v1595, %v1592
        %v1748 = vpack.c.bf16 %v1603, %v1600
        %v1749 = vpack.c.bf16 %v1611, %v1608
        %v1750 = vpack.c.bf16 %v1619, %v1616
        %v1751 = vpack.c.bf16 %v1627, %v1624
        %v1752 = vpack.c.bf16 %v1635, %v1632
        %v1753 = vpack.c.bf16 %v1643, %v1640
        %v1754 = vpack.c.bf16 %v1651, %v1648
        %v1755 = vpack.c.bf16 %v1659, %v1656
        %v1756 = vpack.c.bf16 %v1667, %v1664
        %v1757 = vpack.c.bf16 %v1675, %v1672
        %v1758 = vpack.c.bf16 %v1683, %v1680
        %v1759 = vpack.c.bf16 %v1691, %v1688
        %v1760 = vpack.c.bf16 %v1699, %v1696
        %v1761 = vpack.c.bf16 %v1707, %v1704
        %v1762 = vpack.c.bf16 %v1715, %v1712
        %v1763 = vpack.c.bf16 %v1723, %v1720
        %v1764 = vpack.c.bf16 %v1731, %v1728
        %v1765 = vpack.c.bf16 %v1739, %v1736
        %v1790 = vunpack.c.l.b16 %v1742
        %v1791 = vunpack.c.h.b16 %v1742
        %v1792 = vunpack.c.l.b16 %v1743
        %v1793 = vunpack.c.h.b16 %v1743
        %v1794 = vunpack.c.l.b16 %v1744
        %v1795 = vunpack.c.h.b16 %v1744
        %v1796 = vunpack.c.l.b16 %v1745
        %v1797 = vunpack.c.h.b16 %v1745
        %v1798 = vunpack.c.l.b16 %v1746
        %v1799 = vunpack.c.h.b16 %v1746
        %v1800 = vunpack.c.l.b16 %v1747
        %v1801 = vunpack.c.h.b16 %v1747
        %v1802 = vunpack.c.l.b16 %v1748
        %v1803 = vunpack.c.h.b16 %v1748
        %v1804 = vunpack.c.l.b16 %v1749
        %v1805 = vunpack.c.h.b16 %v1749
        %v1806 = vunpack.c.l.b16 %v1750
        %v1807 = vunpack.c.h.b16 %v1750
        %v1808 = vunpack.c.l.b16 %v1751
        %v1809 = vunpack.c.h.b16 %v1751
        %v1810 = vunpack.c.l.b16 %v1752
        %v1811 = vunpack.c.h.b16 %v1752
        %v1812 = vunpack.c.l.b16 %v1753
        %v1813 = vunpack.c.h.b16 %v1753
        %v1814 = vunpack.c.l.b16 %v1754
        %v1815 = vunpack.c.h.b16 %v1754
        %v1816 = vunpack.c.l.b16 %v1755
        %v1817 = vunpack.c.h.b16 %v1755
        %v1818 = vunpack.c.l.b16 %v1756
        %v1819 = vunpack.c.h.b16 %v1756
        %v1820 = vunpack.c.l.b16 %v1757
        %v1821 = vunpack.c.h.b16 %v1757
        %v1822 = vunpack.c.l.b16 %v1758
        %v1823 = vunpack.c.h.b16 %v1758
        %v1824 = vunpack.c.l.b16 %v1759
        %v1825 = vunpack.c.h.b16 %v1759
        %v1826 = vunpack.c.l.b16 %v1760
        %v1827 = vunpack.c.h.b16 %v1760
        %v1828 = vunpack.c.l.b16 %v1761
        %v1829 = vunpack.c.h.b16 %v1761
        %v1830 = vunpack.c.l.b16 %v1762
        %v1831 = vunpack.c.h.b16 %v1762
        %v1832 = vunpack.c.l.b16 %v1763
        %v1833 = vunpack.c.h.b16 %v1763
        %v1834 = vunpack.c.l.b16 %v1764
        %v1835 = vunpack.c.h.b16 %v1764
        %v1836 = vunpack.c.l.b16 %v1765
        %v1837 = vunpack.c.h.b16 %v1765
        %v1838 = vpack.c.b16 %v1790, %v1790
        %v1839 = vpack.c.b16 %v1791, %v1791
        %v1840 = vpack.c.b16 %v1792, %v1792
        %v1841 = vpack.c.b16 %v1793, %v1793
        %v1842 = vpack.c.b16 %v1794, %v1794
        %v1843 = vpack.c.b16 %v1795, %v1795
        %v1844 = vpack.c.b16 %v1796, %v1796
        %v1845 = vpack.c.b16 %v1797, %v1797
        %v1846 = vpack.c.b16 %v1798, %v1798
        %v1847 = vpack.c.b16 %v1799, %v1799
        %v1848 = vpack.c.b16 %v1800, %v1800
        %v1849 = vpack.c.b16 %v1801, %v1801
        %v1850 = vpack.c.b16 %v1802, %v1802
        %v1851 = vpack.c.b16 %v1803, %v1803
        %v1852 = vpack.c.b16 %v1804, %v1804
        %v1853 = vpack.c.b16 %v1805, %v1805
        %v1854 = vpack.c.b16 %v1806, %v1806
        %v1855 = vpack.c.b16 %v1807, %v1807
        %v1856 = vpack.c.b16 %v1808, %v1808
        %v1857 = vpack.c.b16 %v1809, %v1809
        %v1858 = vpack.c.b16 %v1810, %v1810
        %v1859 = vpack.c.b16 %v1811, %v1811
        %v1860 = vpack.c.b16 %v1812, %v1812
        %v1861 = vpack.c.b16 %v1813, %v1813
        %v1862 = vpack.c.b16 %v1814, %v1814
        %v1863 = vpack.c.b16 %v1815, %v1815
        %v1864 = vpack.c.b16 %v1816, %v1816
        %v1865 = vpack.c.b16 %v1817, %v1817
        %v1866 = vpack.c.b16 %v1818, %v1818
        %v1867 = vpack.c.b16 %v1819, %v1819
        %v1868 = vpack.c.b16 %v1820, %v1820
        %v1869 = vpack.c.b16 %v1821, %v1821
        %v1870 = vpack.c.b16 %v1822, %v1822
        %v1871 = vpack.c.b16 %v1823, %v1823
        %v1872 = vpack.c.b16 %v1824, %v1824
        %v1873 = vpack.c.b16 %v1825, %v1825
        %v1874 = vpack.c.b16 %v1826, %v1826
        %v1875 = vpack.c.b16 %v1827, %v1827
        %v1876 = vpack.c.b16 %v1828, %v1828
        %v1877 = vpack.c.b16 %v1829, %v1829
        %v1878 = vpack.c.b16 %v1830, %v1830
        %v1879 = vpack.c.b16 %v1831, %v1831
        %v1880 = vpack.c.b16 %v1832, %v1832
        %v1881 = vpack.c.b16 %v1833, %v1833
        %v1882 = vpack.c.b16 %v1834, %v1834
        %v1883 = vpack.c.b16 %v1835, %v1835
        %v1884 = vpack.c.b16 %v1836, %v1836
        %v1885 = vpack.c.b16 %v1837, %v1837
        %1886 = vrot.lane.b32.xlu0 %v1838, 32
        %v1887 = vpop.permute.xlu0 %1886
        %1888 = vrot.lane.b32.xlu0 %v1839, 32
        %v1889 = vpop.permute.xlu0 %1888
        %1890 = vrot.lane.b32.xlu0 %v1840, 32
        %v1891 = vpop.permute.xlu0 %1890
        %1892 = vrot.lane.b32.xlu0 %v1841, 32
        %v1893 = vpop.permute.xlu0 %1892
        %1894 = vrot.lane.b32.xlu0 %v1842, 32
        %v1895 = vpop.permute.xlu0 %1894
        %1896 = vrot.lane.b32.xlu0 %v1843, 32
        %v1897 = vpop.permute.xlu0 %1896
        %1898 = vrot.lane.b32.xlu0 %v1844, 32
        %v1899 = vpop.permute.xlu0 %1898
        %1900 = vrot.lane.b32.xlu0 %v1845, 32
        %v1901 = vpop.permute.xlu0 %1900
        %1902 = vrot.lane.b32.xlu0 %v1846, 32
        %v1903 = vpop.permute.xlu0 %1902
        %1904 = vrot.lane.b32.xlu0 %v1847, 32
        %v1905 = vpop.permute.xlu0 %1904
        %1906 = vrot.lane.b32.xlu0 %v1848, 32
        %v1907 = vpop.permute.xlu0 %1906
        %1908 = vrot.lane.b32.xlu0 %v1849, 32
        %v1909 = vpop.permute.xlu0 %1908
        %1910 = vrot.lane.b32.xlu0 %v1850, 32
        %v1911 = vpop.permute.xlu0 %1910
        %1912 = vrot.lane.b32.xlu0 %v1851, 32
        %v1913 = vpop.permute.xlu0 %1912
        %1914 = vrot.lane.b32.xlu0 %v1852, 32
        %v1915 = vpop.permute.xlu0 %1914
        %1916 = vrot.lane.b32.xlu0 %v1853, 32
        %v1917 = vpop.permute.xlu0 %1916
        %1918 = vrot.lane.b32.xlu0 %v1854, 32
        %v1919 = vpop.permute.xlu0 %1918
        %1920 = vrot.lane.b32.xlu0 %v1855, 32
        %v1921 = vpop.permute.xlu0 %1920
        %1922 = vrot.lane.b32.xlu0 %v1856, 32
        %v1923 = vpop.permute.xlu0 %1922
        %1924 = vrot.lane.b32.xlu0 %v1857, 32
        %v1925 = vpop.permute.xlu0 %1924
        %1926 = vrot.lane.b32.xlu0 %v1858, 32
        %v1927 = vpop.permute.xlu0 %1926
        %1928 = vrot.lane.b32.xlu0 %v1859, 32
        %v1929 = vpop.permute.xlu0 %1928
        %1930 = vrot.lane.b32.xlu0 %v1860, 32
        %v1931 = vpop.permute.xlu0 %1930
        %1932 = vrot.lane.b32.xlu0 %v1861, 32
        %v1933 = vpop.permute.xlu0 %1932
        %1934 = vrot.lane.b32.xlu0 %v1862, 32
        %v1935 = vpop.permute.xlu0 %1934
        %1936 = vrot.lane.b32.xlu0 %v1863, 32
        %v1937 = vpop.permute.xlu0 %1936
        %1938 = vrot.lane.b32.xlu0 %v1864, 32
        %v1939 = vpop.permute.xlu0 %1938
        %1940 = vrot.lane.b32.xlu0 %v1865, 32
        %v1941 = vpop.permute.xlu0 %1940
        %1942 = vrot.lane.b32.xlu0 %v1866, 32
        %v1943 = vpop.permute.xlu0 %1942
        %1944 = vrot.lane.b32.xlu0 %v1867, 32
        %v1945 = vpop.permute.xlu0 %1944
        %1946 = vrot.lane.b32.xlu0 %v1868, 32
        %v1947 = vpop.permute.xlu0 %1946
        %1948 = vrot.lane.b32.xlu0 %v1869, 32
        %v1949 = vpop.permute.xlu0 %1948
        %1950 = vrot.lane.b32.xlu0 %v1870, 32
        %v1951 = vpop.permute.xlu0 %1950
        %1952 = vrot.lane.b32.xlu0 %v1871, 32
        %v1953 = vpop.permute.xlu0 %1952
        %1954 = vrot.lane.b32.xlu0 %v1872, 32
        %v1955 = vpop.permute.xlu0 %1954
        %1956 = vrot.lane.b32.xlu0 %v1873, 32
        %v1957 = vpop.permute.xlu0 %1956
        %1958 = vrot.lane.b32.xlu0 %v1874, 32
        %v1959 = vpop.permute.xlu0 %1958
        %1960 = vrot.lane.b32.xlu0 %v1875, 32
        %v1961 = vpop.permute.xlu0 %1960
        %1962 = vrot.lane.b32.xlu0 %v1876, 32
        %v1963 = vpop.permute.xlu0 %1962
        %1964 = vrot.lane.b32.xlu0 %v1877, 32
        %v1965 = vpop.permute.xlu0 %1964
        %1966 = vrot.lane.b32.xlu0 %v1878, 32
        %v1967 = vpop.permute.xlu0 %1966
        %1968 = vrot.lane.b32.xlu0 %v1879, 32
        %v1969 = vpop.permute.xlu0 %1968
        %1970 = vrot.lane.b32.xlu0 %v1880, 32
        %v1971 = vpop.permute.xlu0 %1970
        %1972 = vrot.lane.b32.xlu0 %v1881, 32
        %v1973 = vpop.permute.xlu0 %1972
        %1974 = vrot.lane.b32.xlu0 %v1882, 32
        %v1975 = vpop.permute.xlu0 %1974
        %1976 = vrot.lane.b32.xlu0 %v1883, 32
        %v1977 = vpop.permute.xlu0 %1976
        %1978 = vrot.lane.b32.xlu0 %v1884, 32
        %v1979 = vpop.permute.xlu0 %1978
        %1980 = vrot.lane.b32.xlu0 %v1885, 32
        %v1981 = vpop.permute.xlu0 %1980
        %vm2030 = vcmask 388352
        %2031 = vst.msk [vmem:[#allocation2] sm:$0xf] %vm2030, %v1887
        %2032 = vst.msk [vmem:[#allocation2 + $0x4] sm:$0xf] %vm2030, %v1889
        %2033 = vst.msk [vmem:[#allocation2 + $0x8] sm:$0xf] %vm2030, %v1891
        %2034 = vst.msk [vmem:[#allocation2 + $0xc] sm:$0xf] %vm2030, %v1893
        %2035 = vst.msk [vmem:[#allocation2 + $0x10] sm:$0xf] %vm2030, %v1895
        %2036 = vst.msk [vmem:[#allocation2 + $0x14] sm:$0xf] %vm2030, %v1897
        %2037 = vst.msk [vmem:[#allocation2 + $0x18] sm:$0xf] %vm2030, %v1899
        %2038 = vst.msk [vmem:[#allocation2 + $0x1c] sm:$0xf] %vm2030, %v1901
        %2039 = vst.msk [vmem:[#allocation2 + $0x20] sm:$0xf] %vm2030, %v1903
        %2040 = vst.msk [vmem:[#allocation2 + $0x24] sm:$0xf] %vm2030, %v1905
        %2041 = vst.msk [vmem:[#allocation2 + $0x28] sm:$0xf] %vm2030, %v1907
        %2042 = vst.msk [vmem:[#allocation2 + $0x2c] sm:$0xf] %vm2030, %v1909
        %2043 = vst.msk [vmem:[#allocation2 + $0x30] sm:$0xf] %vm2030, %v1911
        %2044 = vst.msk [vmem:[#allocation2 + $0x34] sm:$0xf] %vm2030, %v1913
        %2045 = vst.msk [vmem:[#allocation2 + $0x38] sm:$0xf] %vm2030, %v1915
        %2046 = vst.msk [vmem:[#allocation2 + $0x3c] sm:$0xf] %vm2030, %v1917
        %2047 = vst.msk [vmem:[#allocation2 + $0x40] sm:$0xf] %vm2030, %v1919
        %2048 = vst.msk [vmem:[#allocation2 + $0x44] sm:$0xf] %vm2030, %v1921
        %2049 = vst.msk [vmem:[#allocation2 + $0x48] sm:$0xf] %vm2030, %v1923
        %2050 = vst.msk [vmem:[#allocation2 + $0x4c] sm:$0xf] %vm2030, %v1925
        %2051 = vst.msk [vmem:[#allocation2 + $0x50] sm:$0xf] %vm2030, %v1927
        %2052 = vst.msk [vmem:[#allocation2 + $0x54] sm:$0xf] %vm2030, %v1929
        %2053 = vst.msk [vmem:[#allocation2 + $0x58] sm:$0xf] %vm2030, %v1931
        %2054 = vst.msk [vmem:[#allocation2 + $0x5c] sm:$0xf] %vm2030, %v1933
        %2055 = vst.msk [vmem:[#allocation2 + $0x60] sm:$0xf] %vm2030, %v1935
        %2056 = vst.msk [vmem:[#allocation2 + $0x64] sm:$0xf] %vm2030, %v1937
        %2057 = vst.msk [vmem:[#allocation2 + $0x68] sm:$0xf] %vm2030, %v1939
        %2058 = vst.msk [vmem:[#allocation2 + $0x6c] sm:$0xf] %vm2030, %v1941
        %2059 = vst.msk [vmem:[#allocation2 + $0x70] sm:$0xf] %vm2030, %v1943
        %2060 = vst.msk [vmem:[#allocation2 + $0x74] sm:$0xf] %vm2030, %v1945
        %2061 = vst.msk [vmem:[#allocation2 + $0x78] sm:$0xf] %vm2030, %v1947
        %2062 = vst.msk [vmem:[#allocation2 + $0x7c] sm:$0xf] %vm2030, %v1949
        %2063 = vst.msk [vmem:[#allocation2 + $0x80] sm:$0xf] %vm2030, %v1951
        %2064 = vst.msk [vmem:[#allocation2 + $0x84] sm:$0xf] %vm2030, %v1953
        %2065 = vst.msk [vmem:[#allocation2 + $0x88] sm:$0xf] %vm2030, %v1955
        %2066 = vst.msk [vmem:[#allocation2 + $0x8c] sm:$0xf] %vm2030, %v1957
        %2067 = vst.msk [vmem:[#allocation2 + $0x90] sm:$0xf] %vm2030, %v1959
        %2068 = vst.msk [vmem:[#allocation2 + $0x94] sm:$0xf] %vm2030, %v1961
        %2069 = vst.msk [vmem:[#allocation2 + $0x98] sm:$0xf] %vm2030, %v1963
        %2070 = vst.msk [vmem:[#allocation2 + $0x9c] sm:$0xf] %vm2030, %v1965
        %2071 = vst.msk [vmem:[#allocation2 + $0xa0] sm:$0xf] %vm2030, %v1967
        %2072 = vst.msk [vmem:[#allocation2 + $0xa4] sm:$0xf] %vm2030, %v1969
        %2073 = vst.msk [vmem:[#allocation2 + $0xa8] sm:$0xf] %vm2030, %v1971
        %2074 = vst.msk [vmem:[#allocation2 + $0xac] sm:$0xf] %vm2030, %v1973
        %2075 = vst.msk [vmem:[#allocation2 + $0xb0] sm:$0xf] %vm2030, %v1975
        %2076 = vst.msk [vmem:[#allocation2 + $0xb4] sm:$0xf] %vm2030, %v1977
        %2077 = vst.msk [vmem:[#allocation2 + $0xb8] sm:$0xf] %vm2030, %v1979
        %2078 = vst.msk [vmem:[#allocation2 + $0xbc] sm:$0xf] %vm2030, %v1981
        %s2079 = scalar_lea.vmem %s178, 1152 [#allocation3]
        %v2080 = vld [vmem:[%s2079] sm:$0xff]
        %v2081 = vld [vmem:[%s2079 + $0x8] sm:$0xff]
        %v2082 = vld [vmem:[%s2079 + $0x10] sm:$0xff]
        %v2083 = vld [vmem:[%s2079 + $0x18] sm:$0xff]
        %v2084 = vld [vmem:[%s2079 + $0x20] sm:$0xff]
        %v2085 = vld [vmem:[%s2079 + $0x28] sm:$0xff]
        %v2086 = vld [vmem:[%s2079 + $0x30] sm:$0xff]
        %v2087 = vld [vmem:[%s2079 + $0x38] sm:$0xff]
        %v2088 = vld [vmem:[%s2079 + $0x40] sm:$0xff]
        %v2089 = vld [vmem:[%s2079 + $0x48] sm:$0xff]
        %v2090 = vld [vmem:[%s2079 + $0x50] sm:$0xff]
        %v2091 = vld [vmem:[%s2079 + $0x58] sm:$0xff]
        %v2092 = vld [vmem:[%s2079 + $0x60] sm:$0xff]
        %v2093 = vld [vmem:[%s2079 + $0x68] sm:$0xff]
        %v2094 = vld [vmem:[%s2079 + $0x70] sm:$0xff]
        %v2095 = vld [vmem:[%s2079 + $0x78] sm:$0xff]
        %v2096 = vld [vmem:[%s2079 + $0x80] sm:$0xff]
        %v2097 = vld [vmem:[%s2079 + $0x88] sm:$0xff]
        %v2098 = vld [vmem:[%s2079 + $0x90] sm:$0xff]
        %v2099 = vld [vmem:[%s2079 + $0x98] sm:$0xff]
        %v2100 = vld [vmem:[%s2079 + $0xa0] sm:$0xff]
        %v2101 = vld [vmem:[%s2079 + $0xa8] sm:$0xff]
        %v2102 = vld [vmem:[%s2079 + $0xb0] sm:$0xff]
        %v2103 = vld [vmem:[%s2079 + $0xb8] sm:$0xff]
        %v2104 = vld [vmem:[%s2079 + $0xc0] sm:$0xff]
        %v2105 = vld [vmem:[%s2079 + $0xc8] sm:$0xff]
        %v2106 = vld [vmem:[%s2079 + $0xd0] sm:$0xff]
        %v2107 = vld [vmem:[%s2079 + $0xd8] sm:$0xff]
        %v2108 = vld [vmem:[%s2079 + $0xe0] sm:$0xff]
        %v2109 = vld [vmem:[%s2079 + $0xe8] sm:$0xff]
        %v2110 = vld [vmem:[%s2079 + $0xf0] sm:$0xff]
        %v2111 = vld [vmem:[%s2079 + $0xf8] sm:$0xff]
        %v2112 = vld [vmem:[%s2079 + $0x100] sm:$0xff]
        %v2113 = vld [vmem:[%s2079 + $0x108] sm:$0xff]
        %v2114 = vld [vmem:[%s2079 + $0x110] sm:$0xff]
        %v2115 = vld [vmem:[%s2079 + $0x118] sm:$0xff]
        %v2116 = vld [vmem:[%s2079 + $0x120] sm:$0xff]
        %v2117 = vld [vmem:[%s2079 + $0x128] sm:$0xff]
        %v2118 = vld [vmem:[%s2079 + $0x130] sm:$0xff]
        %v2119 = vld [vmem:[%s2079 + $0x138] sm:$0xff]
        %v2120 = vld [vmem:[%s2079 + $0x140] sm:$0xff]
        %v2121 = vld [vmem:[%s2079 + $0x148] sm:$0xff]
        %v2122 = vld [vmem:[%s2079 + $0x150] sm:$0xff]
        %v2123 = vld [vmem:[%s2079 + $0x158] sm:$0xff]
        %v2124 = vld [vmem:[%s2079 + $0x160] sm:$0xff]
        %v2125 = vld [vmem:[%s2079 + $0x168] sm:$0xff]
        %v2126 = vld [vmem:[%s2079 + $0x170] sm:$0xff]
        %v2127 = vld [vmem:[%s2079 + $0x178] sm:$0xff]
        %v2128 = vpack.c.bf16 %v2081, %v2080
        %v2129 = vpack.c.bf16 %v2083, %v2082
        %v2130 = vpack.c.bf16 %v2085, %v2084
        %v2131 = vpack.c.bf16 %v2087, %v2086
        %v2132 = vpack.c.bf16 %v2089, %v2088
        %v2133 = vpack.c.bf16 %v2091, %v2090
        %v2134 = vpack.c.bf16 %v2093, %v2092
        %v2135 = vpack.c.bf16 %v2095, %v2094
        %v2136 = vpack.c.bf16 %v2097, %v2096
        %v2137 = vpack.c.bf16 %v2099, %v2098
        %v2138 = vpack.c.bf16 %v2101, %v2100
        %v2139 = vpack.c.bf16 %v2103, %v2102
        %v2140 = vpack.c.bf16 %v2105, %v2104
        %v2141 = vpack.c.bf16 %v2107, %v2106
        %v2142 = vpack.c.bf16 %v2109, %v2108
        %v2143 = vpack.c.bf16 %v2111, %v2110
        %v2144 = vpack.c.bf16 %v2113, %v2112
        %v2145 = vpack.c.bf16 %v2115, %v2114
        %v2146 = vpack.c.bf16 %v2117, %v2116
        %v2147 = vpack.c.bf16 %v2119, %v2118
        %v2148 = vpack.c.bf16 %v2121, %v2120
        %v2149 = vpack.c.bf16 %v2123, %v2122
        %v2150 = vpack.c.bf16 %v2125, %v2124
        %v2151 = vpack.c.bf16 %v2127, %v2126
        %2152 = vmatprep.subr.bf16.mxu0 0
        %2153 = vmatpush1.bf16.msra.mxu0 %v334
        %2154 = vmatprep.subr.bf16.mxu0 0
        %2155 = vmatpush1.bf16.msra.mxu0 %v333
        %2156 = vmatprep.subr.bf16.mxu0 0
        %2157 = vmatpush1.bf16.msra.mxu0 %v332
        %2158 = vmatprep.subr.bf16.mxu0 0
        %2159 = vmatpush1.bf16.msra.mxu0 %v331
        %2160 = vmatprep.subr.bf16.mxu0 0
        %2161 = vmatpush1.bf16.msra.mxu0 %v330
        %2162 = vmatprep.subr.bf16.mxu0 0
        %2163 = vmatpush1.bf16.msra.mxu0 %v329
        %2164 = vmatprep.subr.bf16.mxu0 0
        %2165 = vmatpush1.bf16.msra.mxu0 %v328
        %2166 = vmatprep.subr.bf16.mxu0 0
        %2167 = vmatpush1.bf16.msra.mxu0 %v327
        %2168 = vmatprep.subr.bf16.mxu0 0
        %2169 = vmatpush2.bf16.msra.mxu0 0
        %2170 = vmatprep.subr.bf16.mxu0 0
        %2171 = vmatpush2.bf16.msra.mxu0 0
        %2172 = vmatprep.subr.bf16.mxu0 0
        %2173 = vmatpush2.bf16.msra.mxu0 0
        %2174 = vmatprep.subr.bf16.mxu0 0
        %2175 = vmatpush2.bf16.msra.mxu0 0
        %2176 = vmatprep.subr.bf16.mxu0 0
        %2177 = vmatpush2.bf16.msra.mxu0 0
        %2178 = vmatprep.subr.bf16.mxu0 0
        %2179 = vmatpush2.bf16.msra.mxu0 0
        %2180 = vmatprep.subr.bf16.mxu0 0
        %2181 = vmatpush2.bf16.msra.mxu0 0
        %2182 = vmatprep.subr.bf16.mxu0 0
        %2183 = vmatpush2.bf16.msra.mxu0 0
        %2184 = vmatprep.mubr.bf16.mxu0 0
        %2185 = vmatmul.mubr.bf16.gmra.mxu0 %v2128
        %v2186 = vpop.f32.mrf.mxu0
        %v2187 = vadd.f32 0.0, %v2186
        %v2188 = vpop.f32.mrf.mxu0
        %v2189 = vpop.f32.mrf.mxu0
        %v2190 = vadd.f32 0.0, %v2189
        %v2191 = vpop.f32.mrf.mxu0
        %2192 = vmatprep.mubr.bf16.mxu0 0
        %2193 = vmatmul.mubr.bf16.gmra.mxu0 %v2129
        %v2194 = vpop.f32.mrf.mxu0
        %v2195 = vadd.f32 0.0, %v2194
        %v2196 = vpop.f32.mrf.mxu0
        %v2197 = vpop.f32.mrf.mxu0
        %v2198 = vadd.f32 0.0, %v2197
        %v2199 = vpop.f32.mrf.mxu0
        %2200 = vmatprep.mubr.bf16.mxu0 0
        %2201 = vmatmul.mubr.bf16.gmra.mxu0 %v2130
        %v2202 = vpop.f32.mrf.mxu0
        %v2203 = vadd.f32 0.0, %v2202
        %v2204 = vpop.f32.mrf.mxu0
        %v2205 = vpop.f32.mrf.mxu0
        %v2206 = vadd.f32 0.0, %v2205
        %v2207 = vpop.f32.mrf.mxu0
        %2208 = vmatprep.mubr.bf16.mxu0 0
        %2209 = vmatmul.mubr.bf16.gmra.mxu0 %v2131
        %v2210 = vpop.f32.mrf.mxu0
        %v2211 = vadd.f32 0.0, %v2210
        %v2212 = vpop.f32.mrf.mxu0
        %v2213 = vpop.f32.mrf.mxu0
        %v2214 = vadd.f32 0.0, %v2213
        %v2215 = vpop.f32.mrf.mxu0
        %2216 = vmatprep.mubr.bf16.mxu0 0
        %2217 = vmatmul.mubr.bf16.gmra.mxu0 %v2132
        %v2218 = vpop.f32.mrf.mxu0
        %v2219 = vadd.f32 0.0, %v2218
        %v2220 = vpop.f32.mrf.mxu0
        %v2221 = vpop.f32.mrf.mxu0
        %v2222 = vadd.f32 0.0, %v2221
        %v2223 = vpop.f32.mrf.mxu0
        %2224 = vmatprep.mubr.bf16.mxu0 0
        %2225 = vmatmul.mubr.bf16.gmra.mxu0 %v2133
        %v2226 = vpop.f32.mrf.mxu0
        %v2227 = vadd.f32 0.0, %v2226
        %v2228 = vpop.f32.mrf.mxu0
        %v2229 = vpop.f32.mrf.mxu0
        %v2230 = vadd.f32 0.0, %v2229
        %v2231 = vpop.f32.mrf.mxu0
        %2232 = vmatprep.mubr.bf16.mxu0 0
        %2233 = vmatmul.mubr.bf16.gmra.mxu0 %v2134
        %v2234 = vpop.f32.mrf.mxu0
        %v2235 = vadd.f32 0.0, %v2234
        %v2236 = vpop.f32.mrf.mxu0
        %v2237 = vpop.f32.mrf.mxu0
        %v2238 = vadd.f32 0.0, %v2237
        %v2239 = vpop.f32.mrf.mxu0
        %2240 = vmatprep.mubr.bf16.mxu0 0
        %2241 = vmatmul.mubr.bf16.gmra.mxu0 %v2135
        %v2242 = vpop.f32.mrf.mxu0
        %v2243 = vadd.f32 0.0, %v2242
        %v2244 = vpop.f32.mrf.mxu0
        %v2245 = vpop.f32.mrf.mxu0
        %v2246 = vadd.f32 0.0, %v2245
        %v2247 = vpop.f32.mrf.mxu0
        %2248 = vmatprep.mubr.bf16.mxu0 0
        %2249 = vmatmul.mubr.bf16.gmra.mxu0 %v2136
        %v2250 = vpop.f32.mrf.mxu0
        %v2251 = vadd.f32 0.0, %v2250
        %v2252 = vpop.f32.mrf.mxu0
        %v2253 = vpop.f32.mrf.mxu0
        %v2254 = vadd.f32 0.0, %v2253
        %v2255 = vpop.f32.mrf.mxu0
        %2256 = vmatprep.mubr.bf16.mxu0 0
        %2257 = vmatmul.mubr.bf16.gmra.mxu0 %v2137
        %v2258 = vpop.f32.mrf.mxu0
        %v2259 = vadd.f32 0.0, %v2258
        %v2260 = vpop.f32.mrf.mxu0
        %v2261 = vpop.f32.mrf.mxu0
        %v2262 = vadd.f32 0.0, %v2261
        %v2263 = vpop.f32.mrf.mxu0
        %2264 = vmatprep.mubr.bf16.mxu0 0
        %2265 = vmatmul.mubr.bf16.gmra.mxu0 %v2138
        %v2266 = vpop.f32.mrf.mxu0
        %v2267 = vadd.f32 0.0, %v2266
        %v2268 = vpop.f32.mrf.mxu0
        %v2269 = vpop.f32.mrf.mxu0
        %v2270 = vadd.f32 0.0, %v2269
        %v2271 = vpop.f32.mrf.mxu0
        %2272 = vmatprep.mubr.bf16.mxu0 0
        %2273 = vmatmul.mubr.bf16.gmra.mxu0 %v2139
        %v2274 = vpop.f32.mrf.mxu0
        %v2275 = vadd.f32 0.0, %v2274
        %v2276 = vpop.f32.mrf.mxu0
        %v2277 = vpop.f32.mrf.mxu0
        %v2278 = vadd.f32 0.0, %v2277
        %v2279 = vpop.f32.mrf.mxu0
        %2280 = vmatprep.mubr.bf16.mxu0 0
        %2281 = vmatmul.mubr.bf16.gmra.mxu0 %v2140
        %v2282 = vpop.f32.mrf.mxu0
        %v2283 = vadd.f32 0.0, %v2282
        %v2284 = vpop.f32.mrf.mxu0
        %v2285 = vpop.f32.mrf.mxu0
        %v2286 = vadd.f32 0.0, %v2285
        %v2287 = vpop.f32.mrf.mxu0
        %2288 = vmatprep.mubr.bf16.mxu0 0
        %2289 = vmatmul.mubr.bf16.gmra.mxu0 %v2141
        %v2290 = vpop.f32.mrf.mxu0
        %v2291 = vadd.f32 0.0, %v2290
        %v2292 = vpop.f32.mrf.mxu0
        %v2293 = vpop.f32.mrf.mxu0
        %v2294 = vadd.f32 0.0, %v2293
        %v2295 = vpop.f32.mrf.mxu0
        %2296 = vmatprep.mubr.bf16.mxu0 0
        %2297 = vmatmul.mubr.bf16.gmra.mxu0 %v2142
        %v2298 = vpop.f32.mrf.mxu0
        %v2299 = vadd.f32 0.0, %v2298
        %v2300 = vpop.f32.mrf.mxu0
        %v2301 = vpop.f32.mrf.mxu0
        %v2302 = vadd.f32 0.0, %v2301
        %v2303 = vpop.f32.mrf.mxu0
        %2304 = vmatprep.mubr.bf16.mxu0 0
        %2305 = vmatmul.mubr.bf16.gmra.mxu0 %v2143
        %v2306 = vpop.f32.mrf.mxu0
        %v2307 = vadd.f32 0.0, %v2306
        %v2308 = vpop.f32.mrf.mxu0
        %v2309 = vpop.f32.mrf.mxu0
        %v2310 = vadd.f32 0.0, %v2309
        %v2311 = vpop.f32.mrf.mxu0
        %2312 = vmatprep.mubr.bf16.mxu0 0
        %2313 = vmatmul.mubr.bf16.gmra.mxu0 %v2144
        %v2314 = vpop.f32.mrf.mxu0
        %v2315 = vadd.f32 0.0, %v2314
        %v2316 = vpop.f32.mrf.mxu0
        %v2317 = vpop.f32.mrf.mxu0
        %v2318 = vadd.f32 0.0, %v2317
        %v2319 = vpop.f32.mrf.mxu0
        %2320 = vmatprep.mubr.bf16.mxu0 0
        %2321 = vmatmul.mubr.bf16.gmra.mxu0 %v2145
        %v2322 = vpop.f32.mrf.mxu0
        %v2323 = vadd.f32 0.0, %v2322
        %v2324 = vpop.f32.mrf.mxu0
        %v2325 = vpop.f32.mrf.mxu0
        %v2326 = vadd.f32 0.0, %v2325
        %v2327 = vpop.f32.mrf.mxu0
        %2328 = vmatprep.mubr.bf16.mxu0 0
        %2329 = vmatmul.mubr.bf16.gmra.mxu0 %v2146
        %v2330 = vpop.f32.mrf.mxu0
        %v2331 = vadd.f32 0.0, %v2330
        %v2332 = vpop.f32.mrf.mxu0
        %v2333 = vpop.f32.mrf.mxu0
        %v2334 = vadd.f32 0.0, %v2333
        %v2335 = vpop.f32.mrf.mxu0
        %2336 = vmatprep.mubr.bf16.mxu0 0
        %2337 = vmatmul.mubr.bf16.gmra.mxu0 %v2147
        %v2338 = vpop.f32.mrf.mxu0
        %v2339 = vadd.f32 0.0, %v2338
        %v2340 = vpop.f32.mrf.mxu0
        %v2341 = vpop.f32.mrf.mxu0
        %v2342 = vadd.f32 0.0, %v2341
        %v2343 = vpop.f32.mrf.mxu0
        %2344 = vmatprep.mubr.bf16.mxu0 0
        %2345 = vmatmul.mubr.bf16.gmra.mxu0 %v2148
        %v2346 = vpop.f32.mrf.mxu0
        %v2347 = vadd.f32 0.0, %v2346
        %v2348 = vpop.f32.mrf.mxu0
        %v2349 = vpop.f32.mrf.mxu0
        %v2350 = vadd.f32 0.0, %v2349
        %v2351 = vpop.f32.mrf.mxu0
        %2352 = vmatprep.mubr.bf16.mxu0 0
        %2353 = vmatmul.mubr.bf16.gmra.mxu0 %v2149
        %v2354 = vpop.f32.mrf.mxu0
        %v2355 = vadd.f32 0.0, %v2354
        %v2356 = vpop.f32.mrf.mxu0
        %v2357 = vpop.f32.mrf.mxu0
        %v2358 = vadd.f32 0.0, %v2357
        %v2359 = vpop.f32.mrf.mxu0
        %2360 = vmatprep.mubr.bf16.mxu0 0
        %2361 = vmatmul.mubr.bf16.gmra.mxu0 %v2150
        %v2362 = vpop.f32.mrf.mxu0
        %v2363 = vadd.f32 0.0, %v2362
        %v2364 = vpop.f32.mrf.mxu0
        %v2365 = vpop.f32.mrf.mxu0
        %v2366 = vadd.f32 0.0, %v2365
        %v2367 = vpop.f32.mrf.mxu0
        %2368 = vmatprep.mubr.bf16.mxu0 0
        %2369 = vmatmul.mubr.bf16.gmra.mxu0 %v2151
        %v2370 = vpop.f32.mrf.mxu0
        %v2371 = vadd.f32 0.0, %v2370
        %v2372 = vpop.f32.mrf.mxu0
        %v2373 = vpop.f32.mrf.mxu0
        %v2374 = vadd.f32 0.0, %v2373
        %v2375 = vpop.f32.mrf.mxu0
        %2376 = vdwg.mxu0
        %v2377 = vpack.c.bf16 %v2190, %v2187
        %v2378 = vpack.c.bf16 %v2198, %v2195
        %v2379 = vpack.c.bf16 %v2206, %v2203
        %v2380 = vpack.c.bf16 %v2214, %v2211
        %v2381 = vpack.c.bf16 %v2222, %v2219
        %v2382 = vpack.c.bf16 %v2230, %v2227
        %v2383 = vpack.c.bf16 %v2238, %v2235
        %v2384 = vpack.c.bf16 %v2246, %v2243
        %v2385 = vpack.c.bf16 %v2254, %v2251
        %v2386 = vpack.c.bf16 %v2262, %v2259
        %v2387 = vpack.c.bf16 %v2270, %v2267
        %v2388 = vpack.c.bf16 %v2278, %v2275
        %v2389 = vpack.c.bf16 %v2286, %v2283
        %v2390 = vpack.c.bf16 %v2294, %v2291
        %v2391 = vpack.c.bf16 %v2302, %v2299
        %v2392 = vpack.c.bf16 %v2310, %v2307
        %v2393 = vpack.c.bf16 %v2318, %v2315
        %v2394 = vpack.c.bf16 %v2326, %v2323
        %v2395 = vpack.c.bf16 %v2334, %v2331
        %v2396 = vpack.c.bf16 %v2342, %v2339
        %v2397 = vpack.c.bf16 %v2350, %v2347
        %v2398 = vpack.c.bf16 %v2358, %v2355
        %v2399 = vpack.c.bf16 %v2366, %v2363
        %v2400 = vpack.c.bf16 %v2374, %v2371
        %v2425 = vunpack.c.l.b16 %v2377
        %v2426 = vunpack.c.h.b16 %v2377
        %v2427 = vunpack.c.l.b16 %v2378
        %v2428 = vunpack.c.h.b16 %v2378
        %v2429 = vunpack.c.l.b16 %v2379
        %v2430 = vunpack.c.h.b16 %v2379
        %v2431 = vunpack.c.l.b16 %v2380
        %v2432 = vunpack.c.h.b16 %v2380
        %v2433 = vunpack.c.l.b16 %v2381
        %v2434 = vunpack.c.h.b16 %v2381
        %v2435 = vunpack.c.l.b16 %v2382
        %v2436 = vunpack.c.h.b16 %v2382
        %v2437 = vunpack.c.l.b16 %v2383
        %v2438 = vunpack.c.h.b16 %v2383
        %v2439 = vunpack.c.l.b16 %v2384
        %v2440 = vunpack.c.h.b16 %v2384
        %v2441 = vunpack.c.l.b16 %v2385
        %v2442 = vunpack.c.h.b16 %v2385
        %v2443 = vunpack.c.l.b16 %v2386
        %v2444 = vunpack.c.h.b16 %v2386
        %v2445 = vunpack.c.l.b16 %v2387
        %v2446 = vunpack.c.h.b16 %v2387
        %v2447 = vunpack.c.l.b16 %v2388
        %v2448 = vunpack.c.h.b16 %v2388
        %v2449 = vunpack.c.l.b16 %v2389
        %v2450 = vunpack.c.h.b16 %v2389
        %v2451 = vunpack.c.l.b16 %v2390
        %v2452 = vunpack.c.h.b16 %v2390
        %v2453 = vunpack.c.l.b16 %v2391
        %v2454 = vunpack.c.h.b16 %v2391
        %v2455 = vunpack.c.l.b16 %v2392
        %v2456 = vunpack.c.h.b16 %v2392
        %v2457 = vunpack.c.l.b16 %v2393
        %v2458 = vunpack.c.h.b16 %v2393
        %v2459 = vunpack.c.l.b16 %v2394
        %v2460 = vunpack.c.h.b16 %v2394
        %v2461 = vunpack.c.l.b16 %v2395
        %v2462 = vunpack.c.h.b16 %v2395
        %v2463 = vunpack.c.l.b16 %v2396
        %v2464 = vunpack.c.h.b16 %v2396
        %v2465 = vunpack.c.l.b16 %v2397
        %v2466 = vunpack.c.h.b16 %v2397
        %v2467 = vunpack.c.l.b16 %v2398
        %v2468 = vunpack.c.h.b16 %v2398
        %v2469 = vunpack.c.l.b16 %v2399
        %v2470 = vunpack.c.h.b16 %v2399
        %v2471 = vunpack.c.l.b16 %v2400
        %v2472 = vunpack.c.h.b16 %v2400
        %v2473 = vpack.c.b16 %v2425, %v2425
        %v2474 = vpack.c.b16 %v2426, %v2426
        %v2475 = vpack.c.b16 %v2427, %v2427
        %v2476 = vpack.c.b16 %v2428, %v2428
        %v2477 = vpack.c.b16 %v2429, %v2429
        %v2478 = vpack.c.b16 %v2430, %v2430
        %v2479 = vpack.c.b16 %v2431, %v2431
        %v2480 = vpack.c.b16 %v2432, %v2432
        %v2481 = vpack.c.b16 %v2433, %v2433
        %v2482 = vpack.c.b16 %v2434, %v2434
        %v2483 = vpack.c.b16 %v2435, %v2435
        %v2484 = vpack.c.b16 %v2436, %v2436
        %v2485 = vpack.c.b16 %v2437, %v2437
        %v2486 = vpack.c.b16 %v2438, %v2438
        %v2487 = vpack.c.b16 %v2439, %v2439
        %v2488 = vpack.c.b16 %v2440, %v2440
        %v2489 = vpack.c.b16 %v2441, %v2441
        %v2490 = vpack.c.b16 %v2442, %v2442
        %v2491 = vpack.c.b16 %v2443, %v2443
        %v2492 = vpack.c.b16 %v2444, %v2444
        %v2493 = vpack.c.b16 %v2445, %v2445
        %v2494 = vpack.c.b16 %v2446, %v2446
        %v2495 = vpack.c.b16 %v2447, %v2447
        %v2496 = vpack.c.b16 %v2448, %v2448
        %v2497 = vpack.c.b16 %v2449, %v2449
        %v2498 = vpack.c.b16 %v2450, %v2450
        %v2499 = vpack.c.b16 %v2451, %v2451
        %v2500 = vpack.c.b16 %v2452, %v2452
        %v2501 = vpack.c.b16 %v2453, %v2453
        %v2502 = vpack.c.b16 %v2454, %v2454
        %v2503 = vpack.c.b16 %v2455, %v2455
        %v2504 = vpack.c.b16 %v2456, %v2456
        %v2505 = vpack.c.b16 %v2457, %v2457
        %v2506 = vpack.c.b16 %v2458, %v2458
        %v2507 = vpack.c.b16 %v2459, %v2459
        %v2508 = vpack.c.b16 %v2460, %v2460
        %v2509 = vpack.c.b16 %v2461, %v2461
        %v2510 = vpack.c.b16 %v2462, %v2462
        %v2511 = vpack.c.b16 %v2463, %v2463
        %v2512 = vpack.c.b16 %v2464, %v2464
        %v2513 = vpack.c.b16 %v2465, %v2465
        %v2514 = vpack.c.b16 %v2466, %v2466
        %v2515 = vpack.c.b16 %v2467, %v2467
        %v2516 = vpack.c.b16 %v2468, %v2468
        %v2517 = vpack.c.b16 %v2469, %v2469
        %v2518 = vpack.c.b16 %v2470, %v2470
        %v2519 = vpack.c.b16 %v2471, %v2471
        %v2520 = vpack.c.b16 %v2472, %v2472
        %2521 = vrot.lane.b32.xlu0 %v2473, 48
        %v2522 = vpop.permute.xlu0 %2521
        %2523 = vrot.lane.b32.xlu0 %v2474, 48
        %v2524 = vpop.permute.xlu0 %2523
        %2525 = vrot.lane.b32.xlu0 %v2475, 48
        %v2526 = vpop.permute.xlu0 %2525
        %2527 = vrot.lane.b32.xlu0 %v2476, 48
        %v2528 = vpop.permute.xlu0 %2527
        %2529 = vrot.lane.b32.xlu0 %v2477, 48
        %v2530 = vpop.permute.xlu0 %2529
        %2531 = vrot.lane.b32.xlu0 %v2478, 48
        %v2532 = vpop.permute.xlu0 %2531
        %2533 = vrot.lane.b32.xlu0 %v2479, 48
        %v2534 = vpop.permute.xlu0 %2533
        %2535 = vrot.lane.b32.xlu0 %v2480, 48
        %v2536 = vpop.permute.xlu0 %2535
        %2537 = vrot.lane.b32.xlu0 %v2481, 48
        %v2538 = vpop.permute.xlu0 %2537
        %2539 = vrot.lane.b32.xlu0 %v2482, 48
        %v2540 = vpop.permute.xlu0 %2539
        %2541 = vrot.lane.b32.xlu0 %v2483, 48
        %v2542 = vpop.permute.xlu0 %2541
        %2543 = vrot.lane.b32.xlu0 %v2484, 48
        %v2544 = vpop.permute.xlu0 %2543
        %2545 = vrot.lane.b32.xlu0 %v2485, 48
        %v2546 = vpop.permute.xlu0 %2545
        %2547 = vrot.lane.b32.xlu0 %v2486, 48
        %v2548 = vpop.permute.xlu0 %2547
        %2549 = vrot.lane.b32.xlu0 %v2487, 48
        %v2550 = vpop.permute.xlu0 %2549
        %2551 = vrot.lane.b32.xlu0 %v2488, 48
        %v2552 = vpop.permute.xlu0 %2551
        %2553 = vrot.lane.b32.xlu0 %v2489, 48
        %v2554 = vpop.permute.xlu0 %2553
        %2555 = vrot.lane.b32.xlu0 %v2490, 48
        %v2556 = vpop.permute.xlu0 %2555
        %2557 = vrot.lane.b32.xlu0 %v2491, 48
        %v2558 = vpop.permute.xlu0 %2557
        %2559 = vrot.lane.b32.xlu0 %v2492, 48
        %v2560 = vpop.permute.xlu0 %2559
        %2561 = vrot.lane.b32.xlu0 %v2493, 48
        %v2562 = vpop.permute.xlu0 %2561
        %2563 = vrot.lane.b32.xlu0 %v2494, 48
        %v2564 = vpop.permute.xlu0 %2563
        %2565 = vrot.lane.b32.xlu0 %v2495, 48
        %v2566 = vpop.permute.xlu0 %2565
        %2567 = vrot.lane.b32.xlu0 %v2496, 48
        %v2568 = vpop.permute.xlu0 %2567
        %2569 = vrot.lane.b32.xlu0 %v2497, 48
        %v2570 = vpop.permute.xlu0 %2569
        %2571 = vrot.lane.b32.xlu0 %v2498, 48
        %v2572 = vpop.permute.xlu0 %2571
        %2573 = vrot.lane.b32.xlu0 %v2499, 48
        %v2574 = vpop.permute.xlu0 %2573
        %2575 = vrot.lane.b32.xlu0 %v2500, 48
        %v2576 = vpop.permute.xlu0 %2575
        %2577 = vrot.lane.b32.xlu0 %v2501, 48
        %v2578 = vpop.permute.xlu0 %2577
        %2579 = vrot.lane.b32.xlu0 %v2502, 48
        %v2580 = vpop.permute.xlu0 %2579
        %2581 = vrot.lane.b32.xlu0 %v2503, 48
        %v2582 = vpop.permute.xlu0 %2581
        %2583 = vrot.lane.b32.xlu0 %v2504, 48
        %v2584 = vpop.permute.xlu0 %2583
        %2585 = vrot.lane.b32.xlu0 %v2505, 48
        %v2586 = vpop.permute.xlu0 %2585
        %2587 = vrot.lane.b32.xlu0 %v2506, 48
        %v2588 = vpop.permute.xlu0 %2587
        %2589 = vrot.lane.b32.xlu0 %v2507, 48
        %v2590 = vpop.permute.xlu0 %2589
        %2591 = vrot.lane.b32.xlu0 %v2508, 48
        %v2592 = vpop.permute.xlu0 %2591
        %2593 = vrot.lane.b32.xlu0 %v2509, 48
        %v2594 = vpop.permute.xlu0 %2593
        %2595 = vrot.lane.b32.xlu0 %v2510, 48
        %v2596 = vpop.permute.xlu0 %2595
        %2597 = vrot.lane.b32.xlu0 %v2511, 48
        %v2598 = vpop.permute.xlu0 %2597
        %2599 = vrot.lane.b32.xlu0 %v2512, 48
        %v2600 = vpop.permute.xlu0 %2599
        %2601 = vrot.lane.b32.xlu0 %v2513, 48
        %v2602 = vpop.permute.xlu0 %2601
        %2603 = vrot.lane.b32.xlu0 %v2514, 48
        %v2604 = vpop.permute.xlu0 %2603
        %2605 = vrot.lane.b32.xlu0 %v2515, 48
        %v2606 = vpop.permute.xlu0 %2605
        %2607 = vrot.lane.b32.xlu0 %v2516, 48
        %v2608 = vpop.permute.xlu0 %2607
        %2609 = vrot.lane.b32.xlu0 %v2517, 48
        %v2610 = vpop.permute.xlu0 %2609
        %2611 = vrot.lane.b32.xlu0 %v2518, 48
        %v2612 = vpop.permute.xlu0 %2611
        %2613 = vrot.lane.b32.xlu0 %v2519, 48
        %v2614 = vpop.permute.xlu0 %2613
        %2615 = vrot.lane.b32.xlu0 %v2520, 48
        %v2616 = vpop.permute.xlu0 %2615
        %vm2665 = vcmask 519552
        %2666 = vst.msk [vmem:[#allocation2] sm:$0xf] %vm2665, %v2522
        %2667 = vst.msk [vmem:[#allocation2 + $0x4] sm:$0xf] %vm2665, %v2524
        %2668 = vst.msk [vmem:[#allocation2 + $0x8] sm:$0xf] %vm2665, %v2526
        %2669 = vst.msk [vmem:[#allocation2 + $0xc] sm:$0xf] %vm2665, %v2528
        %2670 = vst.msk [vmem:[#allocation2 + $0x10] sm:$0xf] %vm2665, %v2530
        %2671 = vst.msk [vmem:[#allocation2 + $0x14] sm:$0xf] %vm2665, %v2532
        %2672 = vst.msk [vmem:[#allocation2 + $0x18] sm:$0xf] %vm2665, %v2534
        %2673 = vst.msk [vmem:[#allocation2 + $0x1c] sm:$0xf] %vm2665, %v2536
        %2674 = vst.msk [vmem:[#allocation2 + $0x20] sm:$0xf] %vm2665, %v2538
        %2675 = vst.msk [vmem:[#allocation2 + $0x24] sm:$0xf] %vm2665, %v2540
        %2676 = vst.msk [vmem:[#allocation2 + $0x28] sm:$0xf] %vm2665, %v2542
        %2677 = vst.msk [vmem:[#allocation2 + $0x2c] sm:$0xf] %vm2665, %v2544
        %2678 = vst.msk [vmem:[#allocation2 + $0x30] sm:$0xf] %vm2665, %v2546
        %2679 = vst.msk [vmem:[#allocation2 + $0x34] sm:$0xf] %vm2665, %v2548
        %2680 = vst.msk [vmem:[#allocation2 + $0x38] sm:$0xf] %vm2665, %v2550
        %2681 = vst.msk [vmem:[#allocation2 + $0x3c] sm:$0xf] %vm2665, %v2552
        %2682 = vst.msk [vmem:[#allocation2 + $0x40] sm:$0xf] %vm2665, %v2554
        %2683 = vst.msk [vmem:[#allocation2 + $0x44] sm:$0xf] %vm2665, %v2556
        %2684 = vst.msk [vmem:[#allocation2 + $0x48] sm:$0xf] %vm2665, %v2558
        %2685 = vst.msk [vmem:[#allocation2 + $0x4c] sm:$0xf] %vm2665, %v2560
        %2686 = vst.msk [vmem:[#allocation2 + $0x50] sm:$0xf] %vm2665, %v2562
        %2687 = vst.msk [vmem:[#allocation2 + $0x54] sm:$0xf] %vm2665, %v2564
        %2688 = vst.msk [vmem:[#allocation2 + $0x58] sm:$0xf] %vm2665, %v2566
        %2689 = vst.msk [vmem:[#allocation2 + $0x5c] sm:$0xf] %vm2665, %v2568
        %2690 = vst.msk [vmem:[#allocation2 + $0x60] sm:$0xf] %vm2665, %v2570
        %2691 = vst.msk [vmem:[#allocation2 + $0x64] sm:$0xf] %vm2665, %v2572
        %2692 = vst.msk [vmem:[#allocation2 + $0x68] sm:$0xf] %vm2665, %v2574
        %2693 = vst.msk [vmem:[#allocation2 + $0x6c] sm:$0xf] %vm2665, %v2576
        %2694 = vst.msk [vmem:[#allocation2 + $0x70] sm:$0xf] %vm2665, %v2578
        %2695 = vst.msk [vmem:[#allocation2 + $0x74] sm:$0xf] %vm2665, %v2580
        %2696 = vst.msk [vmem:[#allocation2 + $0x78] sm:$0xf] %vm2665, %v2582
        %2697 = vst.msk [vmem:[#allocation2 + $0x7c] sm:$0xf] %vm2665, %v2584
        %2698 = vst.msk [vmem:[#allocation2 + $0x80] sm:$0xf] %vm2665, %v2586
        %2699 = vst.msk [vmem:[#allocation2 + $0x84] sm:$0xf] %vm2665, %v2588
        %2700 = vst.msk [vmem:[#allocation2 + $0x88] sm:$0xf] %vm2665, %v2590
        %2701 = vst.msk [vmem:[#allocation2 + $0x8c] sm:$0xf] %vm2665, %v2592
        %2702 = vst.msk [vmem:[#allocation2 + $0x90] sm:$0xf] %vm2665, %v2594
        %2703 = vst.msk [vmem:[#allocation2 + $0x94] sm:$0xf] %vm2665, %v2596
        %2704 = vst.msk [vmem:[#allocation2 + $0x98] sm:$0xf] %vm2665, %v2598
        %2705 = vst.msk [vmem:[#allocation2 + $0x9c] sm:$0xf] %vm2665, %v2600
        %2706 = vst.msk [vmem:[#allocation2 + $0xa0] sm:$0xf] %vm2665, %v2602
        %2707 = vst.msk [vmem:[#allocation2 + $0xa4] sm:$0xf] %vm2665, %v2604
        %2708 = vst.msk [vmem:[#allocation2 + $0xa8] sm:$0xf] %vm2665, %v2606
        %2709 = vst.msk [vmem:[#allocation2 + $0xac] sm:$0xf] %vm2665, %v2608
        %2710 = vst.msk [vmem:[#allocation2 + $0xb0] sm:$0xf] %vm2665, %v2610
        %2711 = vst.msk [vmem:[#allocation2 + $0xb4] sm:$0xf] %vm2665, %v2612
        %2712 = vst.msk [vmem:[#allocation2 + $0xb8] sm:$0xf] %vm2665, %v2614
        %2713 = vst.msk [vmem:[#allocation2 + $0xbc] sm:$0xf] %vm2665, %v2616
        %s2714 = scalar_lea.vmem %s178, 1536 [#allocation3]
        %v2715 = vld [vmem:[%s2714] sm:$0xff]
        %v2716 = vld [vmem:[%s2714 + $0x8] sm:$0xff]
        %v2717 = vld [vmem:[%s2714 + $0x10] sm:$0xff]
        %v2718 = vld [vmem:[%s2714 + $0x18] sm:$0xff]
        %v2719 = vld [vmem:[%s2714 + $0x20] sm:$0xff]
        %v2720 = vld [vmem:[%s2714 + $0x28] sm:$0xff]
        %v2721 = vld [vmem:[%s2714 + $0x30] sm:$0xff]
        %v2722 = vld [vmem:[%s2714 + $0x38] sm:$0xff]
        %v2723 = vld [vmem:[%s2714 + $0x40] sm:$0xff]
        %v2724 = vld [vmem:[%s2714 + $0x48] sm:$0xff]
        %v2725 = vld [vmem:[%s2714 + $0x50] sm:$0xff]
        %v2726 = vld [vmem:[%s2714 + $0x58] sm:$0xff]
        %v2727 = vld [vmem:[%s2714 + $0x60] sm:$0xff]
        %v2728 = vld [vmem:[%s2714 + $0x68] sm:$0xff]
        %v2729 = vld [vmem:[%s2714 + $0x70] sm:$0xff]
        %v2730 = vld [vmem:[%s2714 + $0x78] sm:$0xff]
        %v2731 = vld [vmem:[%s2714 + $0x80] sm:$0xff]
        %v2732 = vld [vmem:[%s2714 + $0x88] sm:$0xff]
        %v2733 = vld [vmem:[%s2714 + $0x90] sm:$0xff]
        %v2734 = vld [vmem:[%s2714 + $0x98] sm:$0xff]
        %v2735 = vld [vmem:[%s2714 + $0xa0] sm:$0xff]
        %v2736 = vld [vmem:[%s2714 + $0xa8] sm:$0xff]
        %v2737 = vld [vmem:[%s2714 + $0xb0] sm:$0xff]
        %v2738 = vld [vmem:[%s2714 + $0xb8] sm:$0xff]
        %v2739 = vld [vmem:[%s2714 + $0xc0] sm:$0xff]
        %v2740 = vld [vmem:[%s2714 + $0xc8] sm:$0xff]
        %v2741 = vld [vmem:[%s2714 + $0xd0] sm:$0xff]
        %v2742 = vld [vmem:[%s2714 + $0xd8] sm:$0xff]
        %v2743 = vld [vmem:[%s2714 + $0xe0] sm:$0xff]
        %v2744 = vld [vmem:[%s2714 + $0xe8] sm:$0xff]
        %v2745 = vld [vmem:[%s2714 + $0xf0] sm:$0xff]
        %v2746 = vld [vmem:[%s2714 + $0xf8] sm:$0xff]
        %v2747 = vld [vmem:[%s2714 + $0x100] sm:$0xff]
        %v2748 = vld [vmem:[%s2714 + $0x108] sm:$0xff]
        %v2749 = vld [vmem:[%s2714 + $0x110] sm:$0xff]
        %v2750 = vld [vmem:[%s2714 + $0x118] sm:$0xff]
        %v2751 = vld [vmem:[%s2714 + $0x120] sm:$0xff]
        %v2752 = vld [vmem:[%s2714 + $0x128] sm:$0xff]
        %v2753 = vld [vmem:[%s2714 + $0x130] sm:$0xff]
        %v2754 = vld [vmem:[%s2714 + $0x138] sm:$0xff]
        %v2755 = vld [vmem:[%s2714 + $0x140] sm:$0xff]
        %v2756 = vld [vmem:[%s2714 + $0x148] sm:$0xff]
        %v2757 = vld [vmem:[%s2714 + $0x150] sm:$0xff]
        %v2758 = vld [vmem:[%s2714 + $0x158] sm:$0xff]
        %v2759 = vld [vmem:[%s2714 + $0x160] sm:$0xff]
        %v2760 = vld [vmem:[%s2714 + $0x168] sm:$0xff]
        %v2761 = vld [vmem:[%s2714 + $0x170] sm:$0xff]
        %v2762 = vld [vmem:[%s2714 + $0x178] sm:$0xff]
        %v2763 = vpack.c.bf16 %v2716, %v2715
        %v2764 = vpack.c.bf16 %v2718, %v2717
        %v2765 = vpack.c.bf16 %v2720, %v2719
        %v2766 = vpack.c.bf16 %v2722, %v2721
        %v2767 = vpack.c.bf16 %v2724, %v2723
        %v2768 = vpack.c.bf16 %v2726, %v2725
        %v2769 = vpack.c.bf16 %v2728, %v2727
        %v2770 = vpack.c.bf16 %v2730, %v2729
        %v2771 = vpack.c.bf16 %v2732, %v2731
        %v2772 = vpack.c.bf16 %v2734, %v2733
        %v2773 = vpack.c.bf16 %v2736, %v2735
        %v2774 = vpack.c.bf16 %v2738, %v2737
        %v2775 = vpack.c.bf16 %v2740, %v2739
        %v2776 = vpack.c.bf16 %v2742, %v2741
        %v2777 = vpack.c.bf16 %v2744, %v2743
        %v2778 = vpack.c.bf16 %v2746, %v2745
        %v2779 = vpack.c.bf16 %v2748, %v2747
        %v2780 = vpack.c.bf16 %v2750, %v2749
        %v2781 = vpack.c.bf16 %v2752, %v2751
        %v2782 = vpack.c.bf16 %v2754, %v2753
        %v2783 = vpack.c.bf16 %v2756, %v2755
        %v2784 = vpack.c.bf16 %v2758, %v2757
        %v2785 = vpack.c.bf16 %v2760, %v2759
        %v2786 = vpack.c.bf16 %v2762, %v2761
        %2787 = vmatprep.subr.bf16.mxu0 0
        %2788 = vmatpush1.bf16.msra.mxu0 %v334
        %2789 = vmatprep.subr.bf16.mxu0 0
        %2790 = vmatpush1.bf16.msra.mxu0 %v333
        %2791 = vmatprep.subr.bf16.mxu0 0
        %2792 = vmatpush1.bf16.msra.mxu0 %v332
        %2793 = vmatprep.subr.bf16.mxu0 0
        %2794 = vmatpush1.bf16.msra.mxu0 %v331
        %2795 = vmatprep.subr.bf16.mxu0 0
        %2796 = vmatpush1.bf16.msra.mxu0 %v330
        %2797 = vmatprep.subr.bf16.mxu0 0
        %2798 = vmatpush1.bf16.msra.mxu0 %v329
        %2799 = vmatprep.subr.bf16.mxu0 0
        %2800 = vmatpush1.bf16.msra.mxu0 %v328
        %2801 = vmatprep.subr.bf16.mxu0 0
        %2802 = vmatpush1.bf16.msra.mxu0 %v327
        %2803 = vmatprep.subr.bf16.mxu0 0
        %2804 = vmatpush2.bf16.msra.mxu0 0
        %2805 = vmatprep.subr.bf16.mxu0 0
        %2806 = vmatpush2.bf16.msra.mxu0 0
        %2807 = vmatprep.subr.bf16.mxu0 0
        %2808 = vmatpush2.bf16.msra.mxu0 0
        %2809 = vmatprep.subr.bf16.mxu0 0
        %2810 = vmatpush2.bf16.msra.mxu0 0
        %2811 = vmatprep.subr.bf16.mxu0 0
        %2812 = vmatpush2.bf16.msra.mxu0 0
        %2813 = vmatprep.subr.bf16.mxu0 0
        %2814 = vmatpush2.bf16.msra.mxu0 0
        %2815 = vmatprep.subr.bf16.mxu0 0
        %2816 = vmatpush2.bf16.msra.mxu0 0
        %2817 = vmatprep.subr.bf16.mxu0 0
        %2818 = vmatpush2.bf16.msra.mxu0 0
        %2819 = vmatprep.mubr.bf16.mxu0 0
        %2820 = vmatmul.mubr.bf16.gmra.mxu0 %v2763
        %v2821 = vpop.f32.mrf.mxu0
        %v2822 = vadd.f32 0.0, %v2821
        %v2823 = vpop.f32.mrf.mxu0
        %v2824 = vpop.f32.mrf.mxu0
        %v2825 = vadd.f32 0.0, %v2824
        %v2826 = vpop.f32.mrf.mxu0
        %2827 = vmatprep.mubr.bf16.mxu0 0
        %2828 = vmatmul.mubr.bf16.gmra.mxu0 %v2764
        %v2829 = vpop.f32.mrf.mxu0
        %v2830 = vadd.f32 0.0, %v2829
        %v2831 = vpop.f32.mrf.mxu0
        %v2832 = vpop.f32.mrf.mxu0
        %v2833 = vadd.f32 0.0, %v2832
        %v2834 = vpop.f32.mrf.mxu0
        %2835 = vmatprep.mubr.bf16.mxu0 0
        %2836 = vmatmul.mubr.bf16.gmra.mxu0 %v2765
        %v2837 = vpop.f32.mrf.mxu0
        %v2838 = vadd.f32 0.0, %v2837
        %v2839 = vpop.f32.mrf.mxu0
        %v2840 = vpop.f32.mrf.mxu0
        %v2841 = vadd.f32 0.0, %v2840
        %v2842 = vpop.f32.mrf.mxu0
        %2843 = vmatprep.mubr.bf16.mxu0 0
        %2844 = vmatmul.mubr.bf16.gmra.mxu0 %v2766
        %v2845 = vpop.f32.mrf.mxu0
        %v2846 = vadd.f32 0.0, %v2845
        %v2847 = vpop.f32.mrf.mxu0
        %v2848 = vpop.f32.mrf.mxu0
        %v2849 = vadd.f32 0.0, %v2848
        %v2850 = vpop.f32.mrf.mxu0
        %2851 = vmatprep.mubr.bf16.mxu0 0
        %2852 = vmatmul.mubr.bf16.gmra.mxu0 %v2767
        %v2853 = vpop.f32.mrf.mxu0
        %v2854 = vadd.f32 0.0, %v2853
        %v2855 = vpop.f32.mrf.mxu0
        %v2856 = vpop.f32.mrf.mxu0
        %v2857 = vadd.f32 0.0, %v2856
        %v2858 = vpop.f32.mrf.mxu0
        %2859 = vmatprep.mubr.bf16.mxu0 0
        %2860 = vmatmul.mubr.bf16.gmra.mxu0 %v2768
        %v2861 = vpop.f32.mrf.mxu0
        %v2862 = vadd.f32 0.0, %v2861
        %v2863 = vpop.f32.mrf.mxu0
        %v2864 = vpop.f32.mrf.mxu0
        %v2865 = vadd.f32 0.0, %v2864
        %v2866 = vpop.f32.mrf.mxu0
        %2867 = vmatprep.mubr.bf16.mxu0 0
        %2868 = vmatmul.mubr.bf16.gmra.mxu0 %v2769
        %v2869 = vpop.f32.mrf.mxu0
        %v2870 = vadd.f32 0.0, %v2869
        %v2871 = vpop.f32.mrf.mxu0
        %v2872 = vpop.f32.mrf.mxu0
        %v2873 = vadd.f32 0.0, %v2872
        %v2874 = vpop.f32.mrf.mxu0
        %2875 = vmatprep.mubr.bf16.mxu0 0
        %2876 = vmatmul.mubr.bf16.gmra.mxu0 %v2770
        %v2877 = vpop.f32.mrf.mxu0
        %v2878 = vadd.f32 0.0, %v2877
        %v2879 = vpop.f32.mrf.mxu0
        %v2880 = vpop.f32.mrf.mxu0
        %v2881 = vadd.f32 0.0, %v2880
        %v2882 = vpop.f32.mrf.mxu0
        %2883 = vmatprep.mubr.bf16.mxu0 0
        %2884 = vmatmul.mubr.bf16.gmra.mxu0 %v2771
        %v2885 = vpop.f32.mrf.mxu0
        %v2886 = vadd.f32 0.0, %v2885
        %v2887 = vpop.f32.mrf.mxu0
        %v2888 = vpop.f32.mrf.mxu0
        %v2889 = vadd.f32 0.0, %v2888
        %v2890 = vpop.f32.mrf.mxu0
        %2891 = vmatprep.mubr.bf16.mxu0 0
        %2892 = vmatmul.mubr.bf16.gmra.mxu0 %v2772
        %v2893 = vpop.f32.mrf.mxu0
        %v2894 = vadd.f32 0.0, %v2893
        %v2895 = vpop.f32.mrf.mxu0
        %v2896 = vpop.f32.mrf.mxu0
        %v2897 = vadd.f32 0.0, %v2896
        %v2898 = vpop.f32.mrf.mxu0
        %2899 = vmatprep.mubr.bf16.mxu0 0
        %2900 = vmatmul.mubr.bf16.gmra.mxu0 %v2773
        %v2901 = vpop.f32.mrf.mxu0
        %v2902 = vadd.f32 0.0, %v2901
        %v2903 = vpop.f32.mrf.mxu0
        %v2904 = vpop.f32.mrf.mxu0
        %v2905 = vadd.f32 0.0, %v2904
        %v2906 = vpop.f32.mrf.mxu0
        %2907 = vmatprep.mubr.bf16.mxu0 0
        %2908 = vmatmul.mubr.bf16.gmra.mxu0 %v2774
        %v2909 = vpop.f32.mrf.mxu0
        %v2910 = vadd.f32 0.0, %v2909
        %v2911 = vpop.f32.mrf.mxu0
        %v2912 = vpop.f32.mrf.mxu0
        %v2913 = vadd.f32 0.0, %v2912
        %v2914 = vpop.f32.mrf.mxu0
        %2915 = vmatprep.mubr.bf16.mxu0 0
        %2916 = vmatmul.mubr.bf16.gmra.mxu0 %v2775
        %v2917 = vpop.f32.mrf.mxu0
        %v2918 = vadd.f32 0.0, %v2917
        %v2919 = vpop.f32.mrf.mxu0
        %v2920 = vpop.f32.mrf.mxu0
        %v2921 = vadd.f32 0.0, %v2920
        %v2922 = vpop.f32.mrf.mxu0
        %2923 = vmatprep.mubr.bf16.mxu0 0
        %2924 = vmatmul.mubr.bf16.gmra.mxu0 %v2776
        %v2925 = vpop.f32.mrf.mxu0
        %v2926 = vadd.f32 0.0, %v2925
        %v2927 = vpop.f32.mrf.mxu0
        %v2928 = vpop.f32.mrf.mxu0
        %v2929 = vadd.f32 0.0, %v2928
        %v2930 = vpop.f32.mrf.mxu0
        %2931 = vmatprep.mubr.bf16.mxu0 0
        %2932 = vmatmul.mubr.bf16.gmra.mxu0 %v2777
        %v2933 = vpop.f32.mrf.mxu0
        %v2934 = vadd.f32 0.0, %v2933
        %v2935 = vpop.f32.mrf.mxu0
        %v2936 = vpop.f32.mrf.mxu0
        %v2937 = vadd.f32 0.0, %v2936
        %v2938 = vpop.f32.mrf.mxu0
        %2939 = vmatprep.mubr.bf16.mxu0 0
        %2940 = vmatmul.mubr.bf16.gmra.mxu0 %v2778
        %v2941 = vpop.f32.mrf.mxu0
        %v2942 = vadd.f32 0.0, %v2941
        %v2943 = vpop.f32.mrf.mxu0
        %v2944 = vpop.f32.mrf.mxu0
        %v2945 = vadd.f32 0.0, %v2944
        %v2946 = vpop.f32.mrf.mxu0
        %2947 = vmatprep.mubr.bf16.mxu0 0
        %2948 = vmatmul.mubr.bf16.gmra.mxu0 %v2779
        %v2949 = vpop.f32.mrf.mxu0
        %v2950 = vadd.f32 0.0, %v2949
        %v2951 = vpop.f32.mrf.mxu0
        %v2952 = vpop.f32.mrf.mxu0
        %v2953 = vadd.f32 0.0, %v2952
        %v2954 = vpop.f32.mrf.mxu0
        %2955 = vmatprep.mubr.bf16.mxu0 0
        %2956 = vmatmul.mubr.bf16.gmra.mxu0 %v2780
        %v2957 = vpop.f32.mrf.mxu0
        %v2958 = vadd.f32 0.0, %v2957
        %v2959 = vpop.f32.mrf.mxu0
        %v2960 = vpop.f32.mrf.mxu0
        %v2961 = vadd.f32 0.0, %v2960
        %v2962 = vpop.f32.mrf.mxu0
        %2963 = vmatprep.mubr.bf16.mxu0 0
        %2964 = vmatmul.mubr.bf16.gmra.mxu0 %v2781
        %v2965 = vpop.f32.mrf.mxu0
        %v2966 = vadd.f32 0.0, %v2965
        %v2967 = vpop.f32.mrf.mxu0
        %v2968 = vpop.f32.mrf.mxu0
        %v2969 = vadd.f32 0.0, %v2968
        %v2970 = vpop.f32.mrf.mxu0
        %2971 = vmatprep.mubr.bf16.mxu0 0
        %2972 = vmatmul.mubr.bf16.gmra.mxu0 %v2782
        %v2973 = vpop.f32.mrf.mxu0
        %v2974 = vadd.f32 0.0, %v2973
        %v2975 = vpop.f32.mrf.mxu0
        %v2976 = vpop.f32.mrf.mxu0
        %v2977 = vadd.f32 0.0, %v2976
        %v2978 = vpop.f32.mrf.mxu0
        %2979 = vmatprep.mubr.bf16.mxu0 0
        %2980 = vmatmul.mubr.bf16.gmra.mxu0 %v2783
        %v2981 = vpop.f32.mrf.mxu0
        %v2982 = vadd.f32 0.0, %v2981
        %v2983 = vpop.f32.mrf.mxu0
        %v2984 = vpop.f32.mrf.mxu0
        %v2985 = vadd.f32 0.0, %v2984
        %v2986 = vpop.f32.mrf.mxu0
        %2987 = vmatprep.mubr.bf16.mxu0 0
        %2988 = vmatmul.mubr.bf16.gmra.mxu0 %v2784
        %v2989 = vpop.f32.mrf.mxu0
        %v2990 = vadd.f32 0.0, %v2989
        %v2991 = vpop.f32.mrf.mxu0
        %v2992 = vpop.f32.mrf.mxu0
        %v2993 = vadd.f32 0.0, %v2992
        %v2994 = vpop.f32.mrf.mxu0
        %2995 = vmatprep.mubr.bf16.mxu0 0
        %2996 = vmatmul.mubr.bf16.gmra.mxu0 %v2785
        %v2997 = vpop.f32.mrf.mxu0
        %v2998 = vadd.f32 0.0, %v2997
        %v2999 = vpop.f32.mrf.mxu0
        %v3000 = vpop.f32.mrf.mxu0
        %v3001 = vadd.f32 0.0, %v3000
        %v3002 = vpop.f32.mrf.mxu0
        %3003 = vmatprep.mubr.bf16.mxu0 0
        %3004 = vmatmul.mubr.bf16.gmra.mxu0 %v2786
        %v3005 = vpop.f32.mrf.mxu0
        %v3006 = vadd.f32 0.0, %v3005
        %v3007 = vpop.f32.mrf.mxu0
        %v3008 = vpop.f32.mrf.mxu0
        %v3009 = vadd.f32 0.0, %v3008
        %v3010 = vpop.f32.mrf.mxu0
        %3011 = vdwg.mxu0
        %v3012 = vpack.c.bf16 %v2825, %v2822
        %v3013 = vpack.c.bf16 %v2833, %v2830
        %v3014 = vpack.c.bf16 %v2841, %v2838
        %v3015 = vpack.c.bf16 %v2849, %v2846
        %v3016 = vpack.c.bf16 %v2857, %v2854
        %v3017 = vpack.c.bf16 %v2865, %v2862
        %v3018 = vpack.c.bf16 %v2873, %v2870
        %v3019 = vpack.c.bf16 %v2881, %v2878
        %v3020 = vpack.c.bf16 %v2889, %v2886
        %v3021 = vpack.c.bf16 %v2897, %v2894
        %v3022 = vpack.c.bf16 %v2905, %v2902
        %v3023 = vpack.c.bf16 %v2913, %v2910
        %v3024 = vpack.c.bf16 %v2921, %v2918
        %v3025 = vpack.c.bf16 %v2929, %v2926
        %v3026 = vpack.c.bf16 %v2937, %v2934
        %v3027 = vpack.c.bf16 %v2945, %v2942
        %v3028 = vpack.c.bf16 %v2953, %v2950
        %v3029 = vpack.c.bf16 %v2961, %v2958
        %v3030 = vpack.c.bf16 %v2969, %v2966
        %v3031 = vpack.c.bf16 %v2977, %v2974
        %v3032 = vpack.c.bf16 %v2985, %v2982
        %v3033 = vpack.c.bf16 %v2993, %v2990
        %v3034 = vpack.c.bf16 %v3001, %v2998
        %v3035 = vpack.c.bf16 %v3009, %v3006
        %v3060 = vunpack.c.l.b16 %v3012
        %v3061 = vunpack.c.h.b16 %v3012
        %v3062 = vunpack.c.l.b16 %v3013
        %v3063 = vunpack.c.h.b16 %v3013
        %v3064 = vunpack.c.l.b16 %v3014
        %v3065 = vunpack.c.h.b16 %v3014
        %v3066 = vunpack.c.l.b16 %v3015
        %v3067 = vunpack.c.h.b16 %v3015
        %v3068 = vunpack.c.l.b16 %v3016
        %v3069 = vunpack.c.h.b16 %v3016
        %v3070 = vunpack.c.l.b16 %v3017
        %v3071 = vunpack.c.h.b16 %v3017
        %v3072 = vunpack.c.l.b16 %v3018
        %v3073 = vunpack.c.h.b16 %v3018
        %v3074 = vunpack.c.l.b16 %v3019
        %v3075 = vunpack.c.h.b16 %v3019
        %v3076 = vunpack.c.l.b16 %v3020
        %v3077 = vunpack.c.h.b16 %v3020
        %v3078 = vunpack.c.l.b16 %v3021
        %v3079 = vunpack.c.h.b16 %v3021
        %v3080 = vunpack.c.l.b16 %v3022
        %v3081 = vunpack.c.h.b16 %v3022
        %v3082 = vunpack.c.l.b16 %v3023
        %v3083 = vunpack.c.h.b16 %v3023
        %v3084 = vunpack.c.l.b16 %v3024
        %v3085 = vunpack.c.h.b16 %v3024
        %v3086 = vunpack.c.l.b16 %v3025
        %v3087 = vunpack.c.h.b16 %v3025
        %v3088 = vunpack.c.l.b16 %v3026
        %v3089 = vunpack.c.h.b16 %v3026
        %v3090 = vunpack.c.l.b16 %v3027
        %v3091 = vunpack.c.h.b16 %v3027
        %v3092 = vunpack.c.l.b16 %v3028
        %v3093 = vunpack.c.h.b16 %v3028
        %v3094 = vunpack.c.l.b16 %v3029
        %v3095 = vunpack.c.h.b16 %v3029
        %v3096 = vunpack.c.l.b16 %v3030
        %v3097 = vunpack.c.h.b16 %v3030
        %v3098 = vunpack.c.l.b16 %v3031
        %v3099 = vunpack.c.h.b16 %v3031
        %v3100 = vunpack.c.l.b16 %v3032
        %v3101 = vunpack.c.h.b16 %v3032
        %v3102 = vunpack.c.l.b16 %v3033
        %v3103 = vunpack.c.h.b16 %v3033
        %v3104 = vunpack.c.l.b16 %v3034
        %v3105 = vunpack.c.h.b16 %v3034
        %v3106 = vunpack.c.l.b16 %v3035
        %v3107 = vunpack.c.h.b16 %v3035
        %v3108 = vpack.c.b16 %v3060, %v3060
        %v3109 = vpack.c.b16 %v3061, %v3061
        %v3110 = vpack.c.b16 %v3062, %v3062
        %v3111 = vpack.c.b16 %v3063, %v3063
        %v3112 = vpack.c.b16 %v3064, %v3064
        %v3113 = vpack.c.b16 %v3065, %v3065
        %v3114 = vpack.c.b16 %v3066, %v3066
        %v3115 = vpack.c.b16 %v3067, %v3067
        %v3116 = vpack.c.b16 %v3068, %v3068
        %v3117 = vpack.c.b16 %v3069, %v3069
        %v3118 = vpack.c.b16 %v3070, %v3070
        %v3119 = vpack.c.b16 %v3071, %v3071
        %v3120 = vpack.c.b16 %v3072, %v3072
        %v3121 = vpack.c.b16 %v3073, %v3073
        %v3122 = vpack.c.b16 %v3074, %v3074
        %v3123 = vpack.c.b16 %v3075, %v3075
        %v3124 = vpack.c.b16 %v3076, %v3076
        %v3125 = vpack.c.b16 %v3077, %v3077
        %v3126 = vpack.c.b16 %v3078, %v3078
        %v3127 = vpack.c.b16 %v3079, %v3079
        %v3128 = vpack.c.b16 %v3080, %v3080
        %v3129 = vpack.c.b16 %v3081, %v3081
        %v3130 = vpack.c.b16 %v3082, %v3082
        %v3131 = vpack.c.b16 %v3083, %v3083
        %v3132 = vpack.c.b16 %v3084, %v3084
        %v3133 = vpack.c.b16 %v3085, %v3085
        %v3134 = vpack.c.b16 %v3086, %v3086
        %v3135 = vpack.c.b16 %v3087, %v3087
        %v3136 = vpack.c.b16 %v3088, %v3088
        %v3137 = vpack.c.b16 %v3089, %v3089
        %v3138 = vpack.c.b16 %v3090, %v3090
        %v3139 = vpack.c.b16 %v3091, %v3091
        %v3140 = vpack.c.b16 %v3092, %v3092
        %v3141 = vpack.c.b16 %v3093, %v3093
        %v3142 = vpack.c.b16 %v3094, %v3094
        %v3143 = vpack.c.b16 %v3095, %v3095
        %v3144 = vpack.c.b16 %v3096, %v3096
        %v3145 = vpack.c.b16 %v3097, %v3097
        %v3146 = vpack.c.b16 %v3098, %v3098
        %v3147 = vpack.c.b16 %v3099, %v3099
        %v3148 = vpack.c.b16 %v3100, %v3100
        %v3149 = vpack.c.b16 %v3101, %v3101
        %v3150 = vpack.c.b16 %v3102, %v3102
        %v3151 = vpack.c.b16 %v3103, %v3103
        %v3152 = vpack.c.b16 %v3104, %v3104
        %v3153 = vpack.c.b16 %v3105, %v3105
        %v3154 = vpack.c.b16 %v3106, %v3106
        %v3155 = vpack.c.b16 %v3107, %v3107
        %3156 = vrot.lane.b32.xlu0 %v3108, 64
        %v3157 = vpop.permute.xlu0 %3156
        %3158 = vrot.lane.b32.xlu0 %v3109, 64
        %v3159 = vpop.permute.xlu0 %3158
        %3160 = vrot.lane.b32.xlu0 %v3110, 64
        %v3161 = vpop.permute.xlu0 %3160
        %3162 = vrot.lane.b32.xlu0 %v3111, 64
        %v3163 = vpop.permute.xlu0 %3162
        %3164 = vrot.lane.b32.xlu0 %v3112, 64
        %v3165 = vpop.permute.xlu0 %3164
        %3166 = vrot.lane.b32.xlu0 %v3113, 64
        %v3167 = vpop.permute.xlu0 %3166
        %3168 = vrot.lane.b32.xlu0 %v3114, 64
        %v3169 = vpop.permute.xlu0 %3168
        %3170 = vrot.lane.b32.xlu0 %v3115, 64
        %v3171 = vpop.permute.xlu0 %3170
        %3172 = vrot.lane.b32.xlu0 %v3116, 64
        %v3173 = vpop.permute.xlu0 %3172
        %3174 = vrot.lane.b32.xlu0 %v3117, 64
        %v3175 = vpop.permute.xlu0 %3174
        %3176 = vrot.lane.b32.xlu0 %v3118, 64
        %v3177 = vpop.permute.xlu0 %3176
        %3178 = vrot.lane.b32.xlu0 %v3119, 64
        %v3179 = vpop.permute.xlu0 %3178
        %3180 = vrot.lane.b32.xlu0 %v3120, 64
        %v3181 = vpop.permute.xlu0 %3180
        %3182 = vrot.lane.b32.xlu0 %v3121, 64
        %v3183 = vpop.permute.xlu0 %3182
        %3184 = vrot.lane.b32.xlu0 %v3122, 64
        %v3185 = vpop.permute.xlu0 %3184
        %3186 = vrot.lane.b32.xlu0 %v3123, 64
        %v3187 = vpop.permute.xlu0 %3186
        %3188 = vrot.lane.b32.xlu0 %v3124, 64
        %v3189 = vpop.permute.xlu0 %3188
        %3190 = vrot.lane.b32.xlu0 %v3125, 64
        %v3191 = vpop.permute.xlu0 %3190
        %3192 = vrot.lane.b32.xlu0 %v3126, 64
        %v3193 = vpop.permute.xlu0 %3192
        %3194 = vrot.lane.b32.xlu0 %v3127, 64
        %v3195 = vpop.permute.xlu0 %3194
        %3196 = vrot.lane.b32.xlu0 %v3128, 64
        %v3197 = vpop.permute.xlu0 %3196
        %3198 = vrot.lane.b32.xlu0 %v3129, 64
        %v3199 = vpop.permute.xlu0 %3198
        %3200 = vrot.lane.b32.xlu0 %v3130, 64
        %v3201 = vpop.permute.xlu0 %3200
        %3202 = vrot.lane.b32.xlu0 %v3131, 64
        %v3203 = vpop.permute.xlu0 %3202
        %3204 = vrot.lane.b32.xlu0 %v3132, 64
        %v3205 = vpop.permute.xlu0 %3204
        %3206 = vrot.lane.b32.xlu0 %v3133, 64
        %v3207 = vpop.permute.xlu0 %3206
        %3208 = vrot.lane.b32.xlu0 %v3134, 64
        %v3209 = vpop.permute.xlu0 %3208
        %3210 = vrot.lane.b32.xlu0 %v3135, 64
        %v3211 = vpop.permute.xlu0 %3210
        %3212 = vrot.lane.b32.xlu0 %v3136, 64
        %v3213 = vpop.permute.xlu0 %3212
        %3214 = vrot.lane.b32.xlu0 %v3137, 64
        %v3215 = vpop.permute.xlu0 %3214
        %3216 = vrot.lane.b32.xlu0 %v3138, 64
        %v3217 = vpop.permute.xlu0 %3216
        %3218 = vrot.lane.b32.xlu0 %v3139, 64
        %v3219 = vpop.permute.xlu0 %3218
        %3220 = vrot.lane.b32.xlu0 %v3140, 64
        %v3221 = vpop.permute.xlu0 %3220
        %3222 = vrot.lane.b32.xlu0 %v3141, 64
        %v3223 = vpop.permute.xlu0 %3222
        %3224 = vrot.lane.b32.xlu0 %v3142, 64
        %v3225 = vpop.permute.xlu0 %3224
        %3226 = vrot.lane.b32.xlu0 %v3143, 64
        %v3227 = vpop.permute.xlu0 %3226
        %3228 = vrot.lane.b32.xlu0 %v3144, 64
        %v3229 = vpop.permute.xlu0 %3228
        %3230 = vrot.lane.b32.xlu0 %v3145, 64
        %v3231 = vpop.permute.xlu0 %3230
        %3232 = vrot.lane.b32.xlu0 %v3146, 64
        %v3233 = vpop.permute.xlu0 %3232
        %3234 = vrot.lane.b32.xlu0 %v3147, 64
        %v3235 = vpop.permute.xlu0 %3234
        %3236 = vrot.lane.b32.xlu0 %v3148, 64
        %v3237 = vpop.permute.xlu0 %3236
        %3238 = vrot.lane.b32.xlu0 %v3149, 64
        %v3239 = vpop.permute.xlu0 %3238
        %3240 = vrot.lane.b32.xlu0 %v3150, 64
        %v3241 = vpop.permute.xlu0 %3240
        %3242 = vrot.lane.b32.xlu0 %v3151, 64
        %v3243 = vpop.permute.xlu0 %3242
        %3244 = vrot.lane.b32.xlu0 %v3152, 64
        %v3245 = vpop.permute.xlu0 %3244
        %3246 = vrot.lane.b32.xlu0 %v3153, 64
        %v3247 = vpop.permute.xlu0 %3246
        %3248 = vrot.lane.b32.xlu0 %v3154, 64
        %v3249 = vpop.permute.xlu0 %3248
        %3250 = vrot.lane.b32.xlu0 %v3155, 64
        %v3251 = vpop.permute.xlu0 %3250
        %vm3300 = vcmask 650752
        %3301 = vst.msk [vmem:[#allocation2] sm:$0xf] %vm3300, %v3157
        %3302 = vst.msk [vmem:[#allocation2 + $0x4] sm:$0xf] %vm3300, %v3159
        %3303 = vst.msk [vmem:[#allocation2 + $0x8] sm:$0xf] %vm3300, %v3161
        %3304 = vst.msk [vmem:[#allocation2 + $0xc] sm:$0xf] %vm3300, %v3163
        %3305 = vst.msk [vmem:[#allocation2 + $0x10] sm:$0xf] %vm3300, %v3165
        %3306 = vst.msk [vmem:[#allocation2 + $0x14] sm:$0xf] %vm3300, %v3167
        %3307 = vst.msk [vmem:[#allocation2 + $0x18] sm:$0xf] %vm3300, %v3169
        %3308 = vst.msk [vmem:[#allocation2 + $0x1c] sm:$0xf] %vm3300, %v3171
        %3309 = vst.msk [vmem:[#allocation2 + $0x20] sm:$0xf] %vm3300, %v3173
        %3310 = vst.msk [vmem:[#allocation2 + $0x24] sm:$0xf] %vm3300, %v3175
        %3311 = vst.msk [vmem:[#allocation2 + $0x28] sm:$0xf] %vm3300, %v3177
        %3312 = vst.msk [vmem:[#allocation2 + $0x2c] sm:$0xf] %vm3300, %v3179
        %3313 = vst.msk [vmem:[#allocation2 + $0x30] sm:$0xf] %vm3300, %v3181
        %3314 = vst.msk [vmem:[#allocation2 + $0x34] sm:$0xf] %vm3300, %v3183
        %3315 = vst.msk [vmem:[#allocation2 + $0x38] sm:$0xf] %vm3300, %v3185
        %3316 = vst.msk [vmem:[#allocation2 + $0x3c] sm:$0xf] %vm3300, %v3187
        %3317 = vst.msk [vmem:[#allocation2 + $0x40] sm:$0xf] %vm3300, %v3189
        %3318 = vst.msk [vmem:[#allocation2 + $0x44] sm:$0xf] %vm3300, %v3191
        %3319 = vst.msk [vmem:[#allocation2 + $0x48] sm:$0xf] %vm3300, %v3193
        %3320 = vst.msk [vmem:[#allocation2 + $0x4c] sm:$0xf] %vm3300, %v3195
        %3321 = vst.msk [vmem:[#allocation2 + $0x50] sm:$0xf] %vm3300, %v3197
        %3322 = vst.msk [vmem:[#allocation2 + $0x54] sm:$0xf] %vm3300, %v3199
        %3323 = vst.msk [vmem:[#allocation2 + $0x58] sm:$0xf] %vm3300, %v3201
        %3324 = vst.msk [vmem:[#allocation2 + $0x5c] sm:$0xf] %vm3300, %v3203
        %3325 = vst.msk [vmem:[#allocation2 + $0x60] sm:$0xf] %vm3300, %v3205
        %3326 = vst.msk [vmem:[#allocation2 + $0x64] sm:$0xf] %vm3300, %v3207
        %3327 = vst.msk [vmem:[#allocation2 + $0x68] sm:$0xf] %vm3300, %v3209
        %3328 = vst.msk [vmem:[#allocation2 + $0x6c] sm:$0xf] %vm3300, %v3211
        %3329 = vst.msk [vmem:[#allocation2 + $0x70] sm:$0xf] %vm3300, %v3213
        %3330 = vst.msk [vmem:[#allocation2 + $0x74] sm:$0xf] %vm3300, %v3215
        %3331 = vst.msk [vmem:[#allocation2 + $0x78] sm:$0xf] %vm3300, %v3217
        %3332 = vst.msk [vmem:[#allocation2 + $0x7c] sm:$0xf] %vm3300, %v3219
        %3333 = vst.msk [vmem:[#allocation2 + $0x80] sm:$0xf] %vm3300, %v3221
        %3334 = vst.msk [vmem:[#allocation2 + $0x84] sm:$0xf] %vm3300, %v3223
        %3335 = vst.msk [vmem:[#allocation2 + $0x88] sm:$0xf] %vm3300, %v3225
        %3336 = vst.msk [vmem:[#allocation2 + $0x8c] sm:$0xf] %vm3300, %v3227
        %3337 = vst.msk [vmem:[#allocation2 + $0x90] sm:$0xf] %vm3300, %v3229
        %3338 = vst.msk [vmem:[#allocation2 + $0x94] sm:$0xf] %vm3300, %v3231
        %3339 = vst.msk [vmem:[#allocation2 + $0x98] sm:$0xf] %vm3300, %v3233
        %3340 = vst.msk [vmem:[#allocation2 + $0x9c] sm:$0xf] %vm3300, %v3235
        %3341 = vst.msk [vmem:[#allocation2 + $0xa0] sm:$0xf] %vm3300, %v3237
        %3342 = vst.msk [vmem:[#allocation2 + $0xa4] sm:$0xf] %vm3300, %v3239
        %3343 = vst.msk [vmem:[#allocation2 + $0xa8] sm:$0xf] %vm3300, %v3241
        %3344 = vst.msk [vmem:[#allocation2 + $0xac] sm:$0xf] %vm3300, %v3243
        %3345 = vst.msk [vmem:[#allocation2 + $0xb0] sm:$0xf] %vm3300, %v3245
        %3346 = vst.msk [vmem:[#allocation2 + $0xb4] sm:$0xf] %vm3300, %v3247
        %3347 = vst.msk [vmem:[#allocation2 + $0xb8] sm:$0xf] %vm3300, %v3249
        %3348 = vst.msk [vmem:[#allocation2 + $0xbc] sm:$0xf] %vm3300, %v3251
        %s3349 = scalar_lea.vmem %s178, 1920 [#allocation3]
        %v3350 = vld [vmem:[%s3349] sm:$0xff]
        %v3351 = vld [vmem:[%s3349 + $0x8] sm:$0xff]
        %v3352 = vld [vmem:[%s3349 + $0x10] sm:$0xff]
        %v3353 = vld [vmem:[%s3349 + $0x18] sm:$0xff]
        %v3354 = vld [vmem:[%s3349 + $0x20] sm:$0xff]
        %v3355 = vld [vmem:[%s3349 + $0x28] sm:$0xff]
        %v3356 = vld [vmem:[%s3349 + $0x30] sm:$0xff]
        %v3357 = vld [vmem:[%s3349 + $0x38] sm:$0xff]
        %v3358 = vld [vmem:[%s3349 + $0x40] sm:$0xff]
        %v3359 = vld [vmem:[%s3349 + $0x48] sm:$0xff]
        %v3360 = vld [vmem:[%s3349 + $0x50] sm:$0xff]
        %v3361 = vld [vmem:[%s3349 + $0x58] sm:$0xff]
        %v3362 = vld [vmem:[%s3349 + $0x60] sm:$0xff]
        %v3363 = vld [vmem:[%s3349 + $0x68] sm:$0xff]
        %v3364 = vld [vmem:[%s3349 + $0x70] sm:$0xff]
        %v3365 = vld [vmem:[%s3349 + $0x78] sm:$0xff]
        %v3366 = vld [vmem:[%s3349 + $0x80] sm:$0xff]
        %v3367 = vld [vmem:[%s3349 + $0x88] sm:$0xff]
        %v3368 = vld [vmem:[%s3349 + $0x90] sm:$0xff]
        %v3369 = vld [vmem:[%s3349 + $0x98] sm:$0xff]
        %v3370 = vld [vmem:[%s3349 + $0xa0] sm:$0xff]
        %v3371 = vld [vmem:[%s3349 + $0xa8] sm:$0xff]
        %v3372 = vld [vmem:[%s3349 + $0xb0] sm:$0xff]
        %v3373 = vld [vmem:[%s3349 + $0xb8] sm:$0xff]
        %v3374 = vld [vmem:[%s3349 + $0xc0] sm:$0xff]
        %v3375 = vld [vmem:[%s3349 + $0xc8] sm:$0xff]
        %v3376 = vld [vmem:[%s3349 + $0xd0] sm:$0xff]
        %v3377 = vld [vmem:[%s3349 + $0xd8] sm:$0xff]
        %v3378 = vld [vmem:[%s3349 + $0xe0] sm:$0xff]
        %v3379 = vld [vmem:[%s3349 + $0xe8] sm:$0xff]
        %v3380 = vld [vmem:[%s3349 + $0xf0] sm:$0xff]
        %v3381 = vld [vmem:[%s3349 + $0xf8] sm:$0xff]
        %v3382 = vld [vmem:[%s3349 + $0x100] sm:$0xff]
        %v3383 = vld [vmem:[%s3349 + $0x108] sm:$0xff]
        %v3384 = vld [vmem:[%s3349 + $0x110] sm:$0xff]
        %v3385 = vld [vmem:[%s3349 + $0x118] sm:$0xff]
        %v3386 = vld [vmem:[%s3349 + $0x120] sm:$0xff]
        %v3387 = vld [vmem:[%s3349 + $0x128] sm:$0xff]
        %v3388 = vld [vmem:[%s3349 + $0x130] sm:$0xff]
        %v3389 = vld [vmem:[%s3349 + $0x138] sm:$0xff]
        %v3390 = vld [vmem:[%s3349 + $0x140] sm:$0xff]
        %v3391 = vld [vmem:[%s3349 + $0x148] sm:$0xff]
        %v3392 = vld [vmem:[%s3349 + $0x150] sm:$0xff]
        %v3393 = vld [vmem:[%s3349 + $0x158] sm:$0xff]
        %v3394 = vld [vmem:[%s3349 + $0x160] sm:$0xff]
        %v3395 = vld [vmem:[%s3349 + $0x168] sm:$0xff]
        %v3396 = vld [vmem:[%s3349 + $0x170] sm:$0xff]
        %v3397 = vld [vmem:[%s3349 + $0x178] sm:$0xff]
        %v3398 = vpack.c.bf16 %v3351, %v3350
        %v3399 = vpack.c.bf16 %v3353, %v3352
        %v3400 = vpack.c.bf16 %v3355, %v3354
        %v3401 = vpack.c.bf16 %v3357, %v3356
        %v3402 = vpack.c.bf16 %v3359, %v3358
        %v3403 = vpack.c.bf16 %v3361, %v3360
        %v3404 = vpack.c.bf16 %v3363, %v3362
        %v3405 = vpack.c.bf16 %v3365, %v3364
        %v3406 = vpack.c.bf16 %v3367, %v3366
        %v3407 = vpack.c.bf16 %v3369, %v3368
        %v3408 = vpack.c.bf16 %v3371, %v3370
        %v3409 = vpack.c.bf16 %v3373, %v3372
        %v3410 = vpack.c.bf16 %v3375, %v3374
        %v3411 = vpack.c.bf16 %v3377, %v3376
        %v3412 = vpack.c.bf16 %v3379, %v3378
        %v3413 = vpack.c.bf16 %v3381, %v3380
        %v3414 = vpack.c.bf16 %v3383, %v3382
        %v3415 = vpack.c.bf16 %v3385, %v3384
        %v3416 = vpack.c.bf16 %v3387, %v3386
        %v3417 = vpack.c.bf16 %v3389, %v3388
        %v3418 = vpack.c.bf16 %v3391, %v3390
        %v3419 = vpack.c.bf16 %v3393, %v3392
        %v3420 = vpack.c.bf16 %v3395, %v3394
        %v3421 = vpack.c.bf16 %v3397, %v3396
        %3422 = vmatprep.subr.bf16.mxu0 0
        %3423 = vmatpush1.bf16.msra.mxu0 %v334
        %3424 = vmatprep.subr.bf16.mxu0 0
        %3425 = vmatpush1.bf16.msra.mxu0 %v333
        %3426 = vmatprep.subr.bf16.mxu0 0
        %3427 = vmatpush1.bf16.msra.mxu0 %v332
        %3428 = vmatprep.subr.bf16.mxu0 0
        %3429 = vmatpush1.bf16.msra.mxu0 %v331
        %3430 = vmatprep.subr.bf16.mxu0 0
        %3431 = vmatpush1.bf16.msra.mxu0 %v330
        %3432 = vmatprep.subr.bf16.mxu0 0
        %3433 = vmatpush1.bf16.msra.mxu0 %v329
        %3434 = vmatprep.subr.bf16.mxu0 0
        %3435 = vmatpush1.bf16.msra.mxu0 %v328
        %3436 = vmatprep.subr.bf16.mxu0 0
        %3437 = vmatpush1.bf16.msra.mxu0 %v327
        %3438 = vmatprep.subr.bf16.mxu0 0
        %3439 = vmatpush2.bf16.msra.mxu0 0
        %3440 = vmatprep.subr.bf16.mxu0 0
        %3441 = vmatpush2.bf16.msra.mxu0 0
        %3442 = vmatprep.subr.bf16.mxu0 0
        %3443 = vmatpush2.bf16.msra.mxu0 0
        %3444 = vmatprep.subr.bf16.mxu0 0
        %3445 = vmatpush2.bf16.msra.mxu0 0
        %3446 = vmatprep.subr.bf16.mxu0 0
        %3447 = vmatpush2.bf16.msra.mxu0 0
        %3448 = vmatprep.subr.bf16.mxu0 0
        %3449 = vmatpush2.bf16.msra.mxu0 0
        %3450 = vmatprep.subr.bf16.mxu0 0
        %3451 = vmatpush2.bf16.msra.mxu0 0
        %3452 = vmatprep.subr.bf16.mxu0 0
        %3453 = vmatpush2.bf16.msra.mxu0 0
        %3454 = vmatprep.mubr.bf16.mxu0 0
        %3455 = vmatmul.mubr.bf16.gmra.mxu0 %v3398
        %v3456 = vpop.f32.mrf.mxu0
        %v3457 = vadd.f32 0.0, %v3456
        %v3458 = vpop.f32.mrf.mxu0
        %v3459 = vpop.f32.mrf.mxu0
        %v3460 = vadd.f32 0.0, %v3459
        %v3461 = vpop.f32.mrf.mxu0
        %3462 = vmatprep.mubr.bf16.mxu0 0
        %3463 = vmatmul.mubr.bf16.gmra.mxu0 %v3399
        %v3464 = vpop.f32.mrf.mxu0
        %v3465 = vadd.f32 0.0, %v3464
        %v3466 = vpop.f32.mrf.mxu0
        %v3467 = vpop.f32.mrf.mxu0
        %v3468 = vadd.f32 0.0, %v3467
        %v3469 = vpop.f32.mrf.mxu0
        %3470 = vmatprep.mubr.bf16.mxu0 0
        %3471 = vmatmul.mubr.bf16.gmra.mxu0 %v3400
        %v3472 = vpop.f32.mrf.mxu0
        %v3473 = vadd.f32 0.0, %v3472
        %v3474 = vpop.f32.mrf.mxu0
        %v3475 = vpop.f32.mrf.mxu0
        %v3476 = vadd.f32 0.0, %v3475
        %v3477 = vpop.f32.mrf.mxu0
        %3478 = vmatprep.mubr.bf16.mxu0 0
        %3479 = vmatmul.mubr.bf16.gmra.mxu0 %v3401
        %v3480 = vpop.f32.mrf.mxu0
        %v3481 = vadd.f32 0.0, %v3480
        %v3482 = vpop.f32.mrf.mxu0
        %v3483 = vpop.f32.mrf.mxu0
        %v3484 = vadd.f32 0.0, %v3483
        %v3485 = vpop.f32.mrf.mxu0
        %3486 = vmatprep.mubr.bf16.mxu0 0
        %3487 = vmatmul.mubr.bf16.gmra.mxu0 %v3402
        %v3488 = vpop.f32.mrf.mxu0
        %v3489 = vadd.f32 0.0, %v3488
        %v3490 = vpop.f32.mrf.mxu0
        %v3491 = vpop.f32.mrf.mxu0
        %v3492 = vadd.f32 0.0, %v3491
        %v3493 = vpop.f32.mrf.mxu0
        %3494 = vmatprep.mubr.bf16.mxu0 0
        %3495 = vmatmul.mubr.bf16.gmra.mxu0 %v3403
        %v3496 = vpop.f32.mrf.mxu0
        %v3497 = vadd.f32 0.0, %v3496
        %v3498 = vpop.f32.mrf.mxu0
        %v3499 = vpop.f32.mrf.mxu0
        %v3500 = vadd.f32 0.0, %v3499
        %v3501 = vpop.f32.mrf.mxu0
        %3502 = vmatprep.mubr.bf16.mxu0 0
        %3503 = vmatmul.mubr.bf16.gmra.mxu0 %v3404
        %v3504 = vpop.f32.mrf.mxu0
        %v3505 = vadd.f32 0.0, %v3504
        %v3506 = vpop.f32.mrf.mxu0
        %v3507 = vpop.f32.mrf.mxu0
        %v3508 = vadd.f32 0.0, %v3507
        %v3509 = vpop.f32.mrf.mxu0
        %3510 = vmatprep.mubr.bf16.mxu0 0
        %3511 = vmatmul.mubr.bf16.gmra.mxu0 %v3405
        %v3512 = vpop.f32.mrf.mxu0
        %v3513 = vadd.f32 0.0, %v3512
        %v3514 = vpop.f32.mrf.mxu0
        %v3515 = vpop.f32.mrf.mxu0
        %v3516 = vadd.f32 0.0, %v3515
        %v3517 = vpop.f32.mrf.mxu0
        %3518 = vmatprep.mubr.bf16.mxu0 0
        %3519 = vmatmul.mubr.bf16.gmra.mxu0 %v3406
        %v3520 = vpop.f32.mrf.mxu0
        %v3521 = vadd.f32 0.0, %v3520
        %v3522 = vpop.f32.mrf.mxu0
        %v3523 = vpop.f32.mrf.mxu0
        %v3524 = vadd.f32 0.0, %v3523
        %v3525 = vpop.f32.mrf.mxu0
        %3526 = vmatprep.mubr.bf16.mxu0 0
        %3527 = vmatmul.mubr.bf16.gmra.mxu0 %v3407
        %v3528 = vpop.f32.mrf.mxu0
        %v3529 = vadd.f32 0.0, %v3528
        %v3530 = vpop.f32.mrf.mxu0
        %v3531 = vpop.f32.mrf.mxu0
        %v3532 = vadd.f32 0.0, %v3531
        %v3533 = vpop.f32.mrf.mxu0
        %3534 = vmatprep.mubr.bf16.mxu0 0
        %3535 = vmatmul.mubr.bf16.gmra.mxu0 %v3408
        %v3536 = vpop.f32.mrf.mxu0
        %v3537 = vadd.f32 0.0, %v3536
        %v3538 = vpop.f32.mrf.mxu0
        %v3539 = vpop.f32.mrf.mxu0
        %v3540 = vadd.f32 0.0, %v3539
        %v3541 = vpop.f32.mrf.mxu0
        %3542 = vmatprep.mubr.bf16.mxu0 0
        %3543 = vmatmul.mubr.bf16.gmra.mxu0 %v3409
        %v3544 = vpop.f32.mrf.mxu0
        %v3545 = vadd.f32 0.0, %v3544
        %v3546 = vpop.f32.mrf.mxu0
        %v3547 = vpop.f32.mrf.mxu0
        %v3548 = vadd.f32 0.0, %v3547
        %v3549 = vpop.f32.mrf.mxu0
        %3550 = vmatprep.mubr.bf16.mxu0 0
        %3551 = vmatmul.mubr.bf16.gmra.mxu0 %v3410
        %v3552 = vpop.f32.mrf.mxu0
        %v3553 = vadd.f32 0.0, %v3552
        %v3554 = vpop.f32.mrf.mxu0
        %v3555 = vpop.f32.mrf.mxu0
        %v3556 = vadd.f32 0.0, %v3555
        %v3557 = vpop.f32.mrf.mxu0
        %3558 = vmatprep.mubr.bf16.mxu0 0
        %3559 = vmatmul.mubr.bf16.gmra.mxu0 %v3411
        %v3560 = vpop.f32.mrf.mxu0
        %v3561 = vadd.f32 0.0, %v3560
        %v3562 = vpop.f32.mrf.mxu0
        %v3563 = vpop.f32.mrf.mxu0
        %v3564 = vadd.f32 0.0, %v3563
        %v3565 = vpop.f32.mrf.mxu0
        %3566 = vmatprep.mubr.bf16.mxu0 0
        %3567 = vmatmul.mubr.bf16.gmra.mxu0 %v3412
        %v3568 = vpop.f32.mrf.mxu0
        %v3569 = vadd.f32 0.0, %v3568
        %v3570 = vpop.f32.mrf.mxu0
        %v3571 = vpop.f32.mrf.mxu0
        %v3572 = vadd.f32 0.0, %v3571
        %v3573 = vpop.f32.mrf.mxu0
        %3574 = vmatprep.mubr.bf16.mxu0 0
        %3575 = vmatmul.mubr.bf16.gmra.mxu0 %v3413
        %v3576 = vpop.f32.mrf.mxu0
        %v3577 = vadd.f32 0.0, %v3576
        %v3578 = vpop.f32.mrf.mxu0
        %v3579 = vpop.f32.mrf.mxu0
        %v3580 = vadd.f32 0.0, %v3579
        %v3581 = vpop.f32.mrf.mxu0
        %3582 = vmatprep.mubr.bf16.mxu0 0
        %3583 = vmatmul.mubr.bf16.gmra.mxu0 %v3414
        %v3584 = vpop.f32.mrf.mxu0
        %v3585 = vadd.f32 0.0, %v3584
        %v3586 = vpop.f32.mrf.mxu0
        %v3587 = vpop.f32.mrf.mxu0
        %v3588 = vadd.f32 0.0, %v3587
        %v3589 = vpop.f32.mrf.mxu0
        %3590 = vmatprep.mubr.bf16.mxu0 0
        %3591 = vmatmul.mubr.bf16.gmra.mxu0 %v3415
        %v3592 = vpop.f32.mrf.mxu0
        %v3593 = vadd.f32 0.0, %v3592
        %v3594 = vpop.f32.mrf.mxu0
        %v3595 = vpop.f32.mrf.mxu0
        %v3596 = vadd.f32 0.0, %v3595
        %v3597 = vpop.f32.mrf.mxu0
        %3598 = vmatprep.mubr.bf16.mxu0 0
        %3599 = vmatmul.mubr.bf16.gmra.mxu0 %v3416
        %v3600 = vpop.f32.mrf.mxu0
        %v3601 = vadd.f32 0.0, %v3600
        %v3602 = vpop.f32.mrf.mxu0
        %v3603 = vpop.f32.mrf.mxu0
        %v3604 = vadd.f32 0.0, %v3603
        %v3605 = vpop.f32.mrf.mxu0
        %3606 = vmatprep.mubr.bf16.mxu0 0
        %3607 = vmatmul.mubr.bf16.gmra.mxu0 %v3417
        %v3608 = vpop.f32.mrf.mxu0
        %v3609 = vadd.f32 0.0, %v3608
        %v3610 = vpop.f32.mrf.mxu0
        %v3611 = vpop.f32.mrf.mxu0
        %v3612 = vadd.f32 0.0, %v3611
        %v3613 = vpop.f32.mrf.mxu0
        %3614 = vmatprep.mubr.bf16.mxu0 0
        %3615 = vmatmul.mubr.bf16.gmra.mxu0 %v3418
        %v3616 = vpop.f32.mrf.mxu0
        %v3617 = vadd.f32 0.0, %v3616
        %v3618 = vpop.f32.mrf.mxu0
        %v3619 = vpop.f32.mrf.mxu0
        %v3620 = vadd.f32 0.0, %v3619
        %v3621 = vpop.f32.mrf.mxu0
        %3622 = vmatprep.mubr.bf16.mxu0 0
        %3623 = vmatmul.mubr.bf16.gmra.mxu0 %v3419
        %v3624 = vpop.f32.mrf.mxu0
        %v3625 = vadd.f32 0.0, %v3624
        %v3626 = vpop.f32.mrf.mxu0
        %v3627 = vpop.f32.mrf.mxu0
        %v3628 = vadd.f32 0.0, %v3627
        %v3629 = vpop.f32.mrf.mxu0
        %3630 = vmatprep.mubr.bf16.mxu0 0
        %3631 = vmatmul.mubr.bf16.gmra.mxu0 %v3420
        %v3632 = vpop.f32.mrf.mxu0
        %v3633 = vadd.f32 0.0, %v3632
        %v3634 = vpop.f32.mrf.mxu0
        %v3635 = vpop.f32.mrf.mxu0
        %v3636 = vadd.f32 0.0, %v3635
        %v3637 = vpop.f32.mrf.mxu0
        %3638 = vmatprep.mubr.bf16.mxu0 0
        %3639 = vmatmul.mubr.bf16.gmra.mxu0 %v3421
        %v3640 = vpop.f32.mrf.mxu0
        %v3641 = vadd.f32 0.0, %v3640
        %v3642 = vpop.f32.mrf.mxu0
        %v3643 = vpop.f32.mrf.mxu0
        %v3644 = vadd.f32 0.0, %v3643
        %v3645 = vpop.f32.mrf.mxu0
        %3646 = vdwg.mxu0
        %v3647 = vpack.c.bf16 %v3460, %v3457
        %v3648 = vpack.c.bf16 %v3468, %v3465
        %v3649 = vpack.c.bf16 %v3476, %v3473
        %v3650 = vpack.c.bf16 %v3484, %v3481
        %v3651 = vpack.c.bf16 %v3492, %v3489
        %v3652 = vpack.c.bf16 %v3500, %v3497
        %v3653 = vpack.c.bf16 %v3508, %v3505
        %v3654 = vpack.c.bf16 %v3516, %v3513
        %v3655 = vpack.c.bf16 %v3524, %v3521
        %v3656 = vpack.c.bf16 %v3532, %v3529
        %v3657 = vpack.c.bf16 %v3540, %v3537
        %v3658 = vpack.c.bf16 %v3548, %v3545
        %v3659 = vpack.c.bf16 %v3556, %v3553
        %v3660 = vpack.c.bf16 %v3564, %v3561
        %v3661 = vpack.c.bf16 %v3572, %v3569
        %v3662 = vpack.c.bf16 %v3580, %v3577
        %v3663 = vpack.c.bf16 %v3588, %v3585
        %v3664 = vpack.c.bf16 %v3596, %v3593
        %v3665 = vpack.c.bf16 %v3604, %v3601
        %v3666 = vpack.c.bf16 %v3612, %v3609
        %v3667 = vpack.c.bf16 %v3620, %v3617
        %v3668 = vpack.c.bf16 %v3628, %v3625
        %v3669 = vpack.c.bf16 %v3636, %v3633
        %v3670 = vpack.c.bf16 %v3644, %v3641
        %v3695 = vunpack.c.l.b16 %v3647
        %v3696 = vunpack.c.h.b16 %v3647
        %v3697 = vunpack.c.l.b16 %v3648
        %v3698 = vunpack.c.h.b16 %v3648
        %v3699 = vunpack.c.l.b16 %v3649
        %v3700 = vunpack.c.h.b16 %v3649
        %v3701 = vunpack.c.l.b16 %v3650
        %v3702 = vunpack.c.h.b16 %v3650
        %v3703 = vunpack.c.l.b16 %v3651
        %v3704 = vunpack.c.h.b16 %v3651
        %v3705 = vunpack.c.l.b16 %v3652
        %v3706 = vunpack.c.h.b16 %v3652
        %v3707 = vunpack.c.l.b16 %v3653
        %v3708 = vunpack.c.h.b16 %v3653
        %v3709 = vunpack.c.l.b16 %v3654
        %v3710 = vunpack.c.h.b16 %v3654
        %v3711 = vunpack.c.l.b16 %v3655
        %v3712 = vunpack.c.h.b16 %v3655
        %v3713 = vunpack.c.l.b16 %v3656
        %v3714 = vunpack.c.h.b16 %v3656
        %v3715 = vunpack.c.l.b16 %v3657
        %v3716 = vunpack.c.h.b16 %v3657
        %v3717 = vunpack.c.l.b16 %v3658
        %v3718 = vunpack.c.h.b16 %v3658
        %v3719 = vunpack.c.l.b16 %v3659
        %v3720 = vunpack.c.h.b16 %v3659
        %v3721 = vunpack.c.l.b16 %v3660
        %v3722 = vunpack.c.h.b16 %v3660
        %v3723 = vunpack.c.l.b16 %v3661
        %v3724 = vunpack.c.h.b16 %v3661
        %v3725 = vunpack.c.l.b16 %v3662
        %v3726 = vunpack.c.h.b16 %v3662
        %v3727 = vunpack.c.l.b16 %v3663
        %v3728 = vunpack.c.h.b16 %v3663
        %v3729 = vunpack.c.l.b16 %v3664
        %v3730 = vunpack.c.h.b16 %v3664
        %v3731 = vunpack.c.l.b16 %v3665
        %v3732 = vunpack.c.h.b16 %v3665
        %v3733 = vunpack.c.l.b16 %v3666
        %v3734 = vunpack.c.h.b16 %v3666
        %v3735 = vunpack.c.l.b16 %v3667
        %v3736 = vunpack.c.h.b16 %v3667
        %v3737 = vunpack.c.l.b16 %v3668
        %v3738 = vunpack.c.h.b16 %v3668
        %v3739 = vunpack.c.l.b16 %v3669
        %v3740 = vunpack.c.h.b16 %v3669
        %v3741 = vunpack.c.l.b16 %v3670
        %v3742 = vunpack.c.h.b16 %v3670
        %v3743 = vpack.c.b16 %v3695, %v3695
        %v3744 = vpack.c.b16 %v3696, %v3696
        %v3745 = vpack.c.b16 %v3697, %v3697
        %v3746 = vpack.c.b16 %v3698, %v3698
        %v3747 = vpack.c.b16 %v3699, %v3699
        %v3748 = vpack.c.b16 %v3700, %v3700
        %v3749 = vpack.c.b16 %v3701, %v3701
        %v3750 = vpack.c.b16 %v3702, %v3702
        %v3751 = vpack.c.b16 %v3703, %v3703
        %v3752 = vpack.c.b16 %v3704, %v3704
        %v3753 = vpack.c.b16 %v3705, %v3705
        %v3754 = vpack.c.b16 %v3706, %v3706
        %v3755 = vpack.c.b16 %v3707, %v3707
        %v3756 = vpack.c.b16 %v3708, %v3708
        %v3757 = vpack.c.b16 %v3709, %v3709
        %v3758 = vpack.c.b16 %v3710, %v3710
        %v3759 = vpack.c.b16 %v3711, %v3711
        %v3760 = vpack.c.b16 %v3712, %v3712
        %v3761 = vpack.c.b16 %v3713, %v3713
        %v3762 = vpack.c.b16 %v3714, %v3714
        %v3763 = vpack.c.b16 %v3715, %v3715
        %v3764 = vpack.c.b16 %v3716, %v3716
        %v3765 = vpack.c.b16 %v3717, %v3717
        %v3766 = vpack.c.b16 %v3718, %v3718
        %v3767 = vpack.c.b16 %v3719, %v3719
        %v3768 = vpack.c.b16 %v3720, %v3720
        %v3769 = vpack.c.b16 %v3721, %v3721
        %v3770 = vpack.c.b16 %v3722, %v3722
        %v3771 = vpack.c.b16 %v3723, %v3723
        %v3772 = vpack.c.b16 %v3724, %v3724
        %v3773 = vpack.c.b16 %v3725, %v3725
        %v3774 = vpack.c.b16 %v3726, %v3726
        %v3775 = vpack.c.b16 %v3727, %v3727
        %v3776 = vpack.c.b16 %v3728, %v3728
        %v3777 = vpack.c.b16 %v3729, %v3729
        %v3778 = vpack.c.b16 %v3730, %v3730
        %v3779 = vpack.c.b16 %v3731, %v3731
        %v3780 = vpack.c.b16 %v3732, %v3732
        %v3781 = vpack.c.b16 %v3733, %v3733
        %v3782 = vpack.c.b16 %v3734, %v3734
        %v3783 = vpack.c.b16 %v3735, %v3735
        %v3784 = vpack.c.b16 %v3736, %v3736
        %v3785 = vpack.c.b16 %v3737, %v3737
        %v3786 = vpack.c.b16 %v3738, %v3738
        %v3787 = vpack.c.b16 %v3739, %v3739
        %v3788 = vpack.c.b16 %v3740, %v3740
        %v3789 = vpack.c.b16 %v3741, %v3741
        %v3790 = vpack.c.b16 %v3742, %v3742
        %3791 = vrot.lane.b32.xlu0 %v3743, 80
        %v3792 = vpop.permute.xlu0 %3791
        %3793 = vrot.lane.b32.xlu0 %v3744, 80
        %v3794 = vpop.permute.xlu0 %3793
        %3795 = vrot.lane.b32.xlu0 %v3745, 80
        %v3796 = vpop.permute.xlu0 %3795
        %3797 = vrot.lane.b32.xlu0 %v3746, 80
        %v3798 = vpop.permute.xlu0 %3797
        %3799 = vrot.lane.b32.xlu0 %v3747, 80
        %v3800 = vpop.permute.xlu0 %3799
        %3801 = vrot.lane.b32.xlu0 %v3748, 80
        %v3802 = vpop.permute.xlu0 %3801
        %3803 = vrot.lane.b32.xlu0 %v3749, 80
        %v3804 = vpop.permute.xlu0 %3803
        %3805 = vrot.lane.b32.xlu0 %v3750, 80
        %v3806 = vpop.permute.xlu0 %3805
        %3807 = vrot.lane.b32.xlu0 %v3751, 80
        %v3808 = vpop.permute.xlu0 %3807
        %3809 = vrot.lane.b32.xlu0 %v3752, 80
        %v3810 = vpop.permute.xlu0 %3809
        %3811 = vrot.lane.b32.xlu0 %v3753, 80
        %v3812 = vpop.permute.xlu0 %3811
        %3813 = vrot.lane.b32.xlu0 %v3754, 80
        %v3814 = vpop.permute.xlu0 %3813
        %3815 = vrot.lane.b32.xlu0 %v3755, 80
        %v3816 = vpop.permute.xlu0 %3815
        %3817 = vrot.lane.b32.xlu0 %v3756, 80
        %v3818 = vpop.permute.xlu0 %3817
        %3819 = vrot.lane.b32.xlu0 %v3757, 80
        %v3820 = vpop.permute.xlu0 %3819
        %3821 = vrot.lane.b32.xlu0 %v3758, 80
        %v3822 = vpop.permute.xlu0 %3821
        %3823 = vrot.lane.b32.xlu0 %v3759, 80
        %v3824 = vpop.permute.xlu0 %3823
        %3825 = vrot.lane.b32.xlu0 %v3760, 80
        %v3826 = vpop.permute.xlu0 %3825
        %3827 = vrot.lane.b32.xlu0 %v3761, 80
        %v3828 = vpop.permute.xlu0 %3827
        %3829 = vrot.lane.b32.xlu0 %v3762, 80
        %v3830 = vpop.permute.xlu0 %3829
        %3831 = vrot.lane.b32.xlu0 %v3763, 80
        %v3832 = vpop.permute.xlu0 %3831
        %3833 = vrot.lane.b32.xlu0 %v3764, 80
        %v3834 = vpop.permute.xlu0 %3833
        %3835 = vrot.lane.b32.xlu0 %v3765, 80
        %v3836 = vpop.permute.xlu0 %3835
        %3837 = vrot.lane.b32.xlu0 %v3766, 80
        %v3838 = vpop.permute.xlu0 %3837
        %3839 = vrot.lane.b32.xlu0 %v3767, 80
        %v3840 = vpop.permute.xlu0 %3839
        %3841 = vrot.lane.b32.xlu0 %v3768, 80
        %v3842 = vpop.permute.xlu0 %3841
        %3843 = vrot.lane.b32.xlu0 %v3769, 80
        %v3844 = vpop.permute.xlu0 %3843
        %3845 = vrot.lane.b32.xlu0 %v3770, 80
        %v3846 = vpop.permute.xlu0 %3845
        %3847 = vrot.lane.b32.xlu0 %v3771, 80
        %v3848 = vpop.permute.xlu0 %3847
        %3849 = vrot.lane.b32.xlu0 %v3772, 80
        %v3850 = vpop.permute.xlu0 %3849
        %3851 = vrot.lane.b32.xlu0 %v3773, 80
        %v3852 = vpop.permute.xlu0 %3851
        %3853 = vrot.lane.b32.xlu0 %v3774, 80
        %v3854 = vpop.permute.xlu0 %3853
        %3855 = vrot.lane.b32.xlu0 %v3775, 80
        %v3856 = vpop.permute.xlu0 %3855
        %3857 = vrot.lane.b32.xlu0 %v3776, 80
        %v3858 = vpop.permute.xlu0 %3857
        %3859 = vrot.lane.b32.xlu0 %v3777, 80
        %v3860 = vpop.permute.xlu0 %3859
        %3861 = vrot.lane.b32.xlu0 %v3778, 80
        %v3862 = vpop.permute.xlu0 %3861
        %3863 = vrot.lane.b32.xlu0 %v3779, 80
        %v3864 = vpop.permute.xlu0 %3863
        %3865 = vrot.lane.b32.xlu0 %v3780, 80
        %v3866 = vpop.permute.xlu0 %3865
        %3867 = vrot.lane.b32.xlu0 %v3781, 80
        %v3868 = vpop.permute.xlu0 %3867
        %3869 = vrot.lane.b32.xlu0 %v3782, 80
        %v3870 = vpop.permute.xlu0 %3869
        %3871 = vrot.lane.b32.xlu0 %v3783, 80
        %v3872 = vpop.permute.xlu0 %3871
        %3873 = vrot.lane.b32.xlu0 %v3784, 80
        %v3874 = vpop.permute.xlu0 %3873
        %3875 = vrot.lane.b32.xlu0 %v3785, 80
        %v3876 = vpop.permute.xlu0 %3875
        %3877 = vrot.lane.b32.xlu0 %v3786, 80
        %v3878 = vpop.permute.xlu0 %3877
        %3879 = vrot.lane.b32.xlu0 %v3787, 80
        %v3880 = vpop.permute.xlu0 %3879
        %3881 = vrot.lane.b32.xlu0 %v3788, 80
        %v3882 = vpop.permute.xlu0 %3881
        %3883 = vrot.lane.b32.xlu0 %v3789, 80
        %v3884 = vpop.permute.xlu0 %3883
        %3885 = vrot.lane.b32.xlu0 %v3790, 80
        %v3886 = vpop.permute.xlu0 %3885
        %vm3935 = vcmask 781952
        %3936 = vst.msk [vmem:[#allocation2] sm:$0xf] %vm3935, %v3792
        %3937 = vst.msk [vmem:[#allocation2 + $0x4] sm:$0xf] %vm3935, %v3794
        %3938 = vst.msk [vmem:[#allocation2 + $0x8] sm:$0xf] %vm3935, %v3796
        %3939 = vst.msk [vmem:[#allocation2 + $0xc] sm:$0xf] %vm3935, %v3798
        %3940 = vst.msk [vmem:[#allocation2 + $0x10] sm:$0xf] %vm3935, %v3800
        %3941 = vst.msk [vmem:[#allocation2 + $0x14] sm:$0xf] %vm3935, %v3802
        %3942 = vst.msk [vmem:[#allocation2 + $0x18] sm:$0xf] %vm3935, %v3804
        %3943 = vst.msk [vmem:[#allocation2 + $0x1c] sm:$0xf] %vm3935, %v3806
        %3944 = vst.msk [vmem:[#allocation2 + $0x20] sm:$0xf] %vm3935, %v3808
        %3945 = vst.msk [vmem:[#allocation2 + $0x24] sm:$0xf] %vm3935, %v3810
        %3946 = vst.msk [vmem:[#allocation2 + $0x28] sm:$0xf] %vm3935, %v3812
        %3947 = vst.msk [vmem:[#allocation2 + $0x2c] sm:$0xf] %vm3935, %v3814
        %3948 = vst.msk [vmem:[#allocation2 + $0x30] sm:$0xf] %vm3935, %v3816
        %3949 = vst.msk [vmem:[#allocation2 + $0x34] sm:$0xf] %vm3935, %v3818
        %3950 = vst.msk [vmem:[#allocation2 + $0x38] sm:$0xf] %vm3935, %v3820
        %3951 = vst.msk [vmem:[#allocation2 + $0x3c] sm:$0xf] %vm3935, %v3822
        %3952 = vst.msk [vmem:[#allocation2 + $0x40] sm:$0xf] %vm3935, %v3824
        %3953 = vst.msk [vmem:[#allocation2 + $0x44] sm:$0xf] %vm3935, %v3826
        %3954 = vst.msk [vmem:[#allocation2 + $0x48] sm:$0xf] %vm3935, %v3828
        %3955 = vst.msk [vmem:[#allocation2 + $0x4c] sm:$0xf] %vm3935, %v3830
        %3956 = vst.msk [vmem:[#allocation2 + $0x50] sm:$0xf] %vm3935, %v3832
        %3957 = vst.msk [vmem:[#allocation2 + $0x54] sm:$0xf] %vm3935, %v3834
        %3958 = vst.msk [vmem:[#allocation2 + $0x58] sm:$0xf] %vm3935, %v3836
        %3959 = vst.msk [vmem:[#allocation2 + $0x5c] sm:$0xf] %vm3935, %v3838
        %3960 = vst.msk [vmem:[#allocation2 + $0x60] sm:$0xf] %vm3935, %v3840
        %3961 = vst.msk [vmem:[#allocation2 + $0x64] sm:$0xf] %vm3935, %v3842
        %3962 = vst.msk [vmem:[#allocation2 + $0x68] sm:$0xf] %vm3935, %v3844
        %3963 = vst.msk [vmem:[#allocation2 + $0x6c] sm:$0xf] %vm3935, %v3846
        %3964 = vst.msk [vmem:[#allocation2 + $0x70] sm:$0xf] %vm3935, %v3848
        %3965 = vst.msk [vmem:[#allocation2 + $0x74] sm:$0xf] %vm3935, %v3850
        %3966 = vst.msk [vmem:[#allocation2 + $0x78] sm:$0xf] %vm3935, %v3852
        %3967 = vst.msk [vmem:[#allocation2 + $0x7c] sm:$0xf] %vm3935, %v3854
        %3968 = vst.msk [vmem:[#allocation2 + $0x80] sm:$0xf] %vm3935, %v3856
        %3969 = vst.msk [vmem:[#allocation2 + $0x84] sm:$0xf] %vm3935, %v3858
        %3970 = vst.msk [vmem:[#allocation2 + $0x88] sm:$0xf] %vm3935, %v3860
        %3971 = vst.msk [vmem:[#allocation2 + $0x8c] sm:$0xf] %vm3935, %v3862
        %3972 = vst.msk [vmem:[#allocation2 + $0x90] sm:$0xf] %vm3935, %v3864
        %3973 = vst.msk [vmem:[#allocation2 + $0x94] sm:$0xf] %vm3935, %v3866
        %3974 = vst.msk [vmem:[#allocation2 + $0x98] sm:$0xf] %vm3935, %v3868
        %3975 = vst.msk [vmem:[#allocation2 + $0x9c] sm:$0xf] %vm3935, %v3870
        %3976 = vst.msk [vmem:[#allocation2 + $0xa0] sm:$0xf] %vm3935, %v3872
        %3977 = vst.msk [vmem:[#allocation2 + $0xa4] sm:$0xf] %vm3935, %v3874
        %3978 = vst.msk [vmem:[#allocation2 + $0xa8] sm:$0xf] %vm3935, %v3876
        %3979 = vst.msk [vmem:[#allocation2 + $0xac] sm:$0xf] %vm3935, %v3878
        %3980 = vst.msk [vmem:[#allocation2 + $0xb0] sm:$0xf] %vm3935, %v3880
        %3981 = vst.msk [vmem:[#allocation2 + $0xb4] sm:$0xf] %vm3935, %v3882
        %3982 = vst.msk [vmem:[#allocation2 + $0xb8] sm:$0xf] %vm3935, %v3884
        %3983 = vst.msk [vmem:[#allocation2 + $0xbc] sm:$0xf] %vm3935, %v3886
        %s3984 = scalar_lea.vmem %s178, 2304 [#allocation3]
        %v3985 = vld [vmem:[%s3984] sm:$0xff]
        %v3986 = vld [vmem:[%s3984 + $0x8] sm:$0xff]
        %v3987 = vld [vmem:[%s3984 + $0x10] sm:$0xff]
        %v3988 = vld [vmem:[%s3984 + $0x18] sm:$0xff]
        %v3989 = vld [vmem:[%s3984 + $0x20] sm:$0xff]
        %v3990 = vld [vmem:[%s3984 + $0x28] sm:$0xff]
        %v3991 = vld [vmem:[%s3984 + $0x30] sm:$0xff]
        %v3992 = vld [vmem:[%s3984 + $0x38] sm:$0xff]
        %v3993 = vld [vmem:[%s3984 + $0x40] sm:$0xff]
        %v3994 = vld [vmem:[%s3984 + $0x48] sm:$0xff]
        %v3995 = vld [vmem:[%s3984 + $0x50] sm:$0xff]
        %v3996 = vld [vmem:[%s3984 + $0x58] sm:$0xff]
        %v3997 = vld [vmem:[%s3984 + $0x60] sm:$0xff]
        %v3998 = vld [vmem:[%s3984 + $0x68] sm:$0xff]
        %v3999 = vld [vmem:[%s3984 + $0x70] sm:$0xff]
        %v4000 = vld [vmem:[%s3984 + $0x78] sm:$0xff]
        %v4001 = vld [vmem:[%s3984 + $0x80] sm:$0xff]
        %v4002 = vld [vmem:[%s3984 + $0x88] sm:$0xff]
        %v4003 = vld [vmem:[%s3984 + $0x90] sm:$0xff]
        %v4004 = vld [vmem:[%s3984 + $0x98] sm:$0xff]
        %v4005 = vld [vmem:[%s3984 + $0xa0] sm:$0xff]
        %v4006 = vld [vmem:[%s3984 + $0xa8] sm:$0xff]
        %v4007 = vld [vmem:[%s3984 + $0xb0] sm:$0xff]
        %v4008 = vld [vmem:[%s3984 + $0xb8] sm:$0xff]
        %v4009 = vld [vmem:[%s3984 + $0xc0] sm:$0xff]
        %v4010 = vld [vmem:[%s3984 + $0xc8] sm:$0xff]
        %v4011 = vld [vmem:[%s3984 + $0xd0] sm:$0xff]
        %v4012 = vld [vmem:[%s3984 + $0xd8] sm:$0xff]
        %v4013 = vld [vmem:[%s3984 + $0xe0] sm:$0xff]
        %v4014 = vld [vmem:[%s3984 + $0xe8] sm:$0xff]
        %v4015 = vld [vmem:[%s3984 + $0xf0] sm:$0xff]
        %v4016 = vld [vmem:[%s3984 + $0xf8] sm:$0xff]
        %v4017 = vld [vmem:[%s3984 + $0x100] sm:$0xff]
        %v4018 = vld [vmem:[%s3984 + $0x108] sm:$0xff]
        %v4019 = vld [vmem:[%s3984 + $0x110] sm:$0xff]
        %v4020 = vld [vmem:[%s3984 + $0x118] sm:$0xff]
        %v4021 = vld [vmem:[%s3984 + $0x120] sm:$0xff]
        %v4022 = vld [vmem:[%s3984 + $0x128] sm:$0xff]
        %v4023 = vld [vmem:[%s3984 + $0x130] sm:$0xff]
        %v4024 = vld [vmem:[%s3984 + $0x138] sm:$0xff]
        %v4025 = vld [vmem:[%s3984 + $0x140] sm:$0xff]
        %v4026 = vld [vmem:[%s3984 + $0x148] sm:$0xff]
        %v4027 = vld [vmem:[%s3984 + $0x150] sm:$0xff]
        %v4028 = vld [vmem:[%s3984 + $0x158] sm:$0xff]
        %v4029 = vld [vmem:[%s3984 + $0x160] sm:$0xff]
        %v4030 = vld [vmem:[%s3984 + $0x168] sm:$0xff]
        %v4031 = vld [vmem:[%s3984 + $0x170] sm:$0xff]
        %v4032 = vld [vmem:[%s3984 + $0x178] sm:$0xff]
        %v4033 = vpack.c.bf16 %v3986, %v3985
        %v4034 = vpack.c.bf16 %v3988, %v3987
        %v4035 = vpack.c.bf16 %v3990, %v3989
        %v4036 = vpack.c.bf16 %v3992, %v3991
        %v4037 = vpack.c.bf16 %v3994, %v3993
        %v4038 = vpack.c.bf16 %v3996, %v3995
        %v4039 = vpack.c.bf16 %v3998, %v3997
        %v4040 = vpack.c.bf16 %v4000, %v3999
        %v4041 = vpack.c.bf16 %v4002, %v4001
        %v4042 = vpack.c.bf16 %v4004, %v4003
        %v4043 = vpack.c.bf16 %v4006, %v4005
        %v4044 = vpack.c.bf16 %v4008, %v4007
        %v4045 = vpack.c.bf16 %v4010, %v4009
        %v4046 = vpack.c.bf16 %v4012, %v4011
        %v4047 = vpack.c.bf16 %v4014, %v4013
        %v4048 = vpack.c.bf16 %v4016, %v4015
        %v4049 = vpack.c.bf16 %v4018, %v4017
        %v4050 = vpack.c.bf16 %v4020, %v4019
        %v4051 = vpack.c.bf16 %v4022, %v4021
        %v4052 = vpack.c.bf16 %v4024, %v4023
        %v4053 = vpack.c.bf16 %v4026, %v4025
        %v4054 = vpack.c.bf16 %v4028, %v4027
        %v4055 = vpack.c.bf16 %v4030, %v4029
        %v4056 = vpack.c.bf16 %v4032, %v4031
        %4057 = vmatprep.subr.bf16.mxu0 0
        %4058 = vmatpush1.bf16.msra.mxu0 %v334
        %4059 = vmatprep.subr.bf16.mxu0 0
        %4060 = vmatpush1.bf16.msra.mxu0 %v333
        %4061 = vmatprep.subr.bf16.mxu0 0
        %4062 = vmatpush1.bf16.msra.mxu0 %v332
        %4063 = vmatprep.subr.bf16.mxu0 0
        %4064 = vmatpush1.bf16.msra.mxu0 %v331
        %4065 = vmatprep.subr.bf16.mxu0 0
        %4066 = vmatpush1.bf16.msra.mxu0 %v330
        %4067 = vmatprep.subr.bf16.mxu0 0
        %4068 = vmatpush1.bf16.msra.mxu0 %v329
        %4069 = vmatprep.subr.bf16.mxu0 0
        %4070 = vmatpush1.bf16.msra.mxu0 %v328
        %4071 = vmatprep.subr.bf16.mxu0 0
        %4072 = vmatpush1.bf16.msra.mxu0 %v327
        %4073 = vmatprep.subr.bf16.mxu0 0
        %4074 = vmatpush2.bf16.msra.mxu0 0
        %4075 = vmatprep.subr.bf16.mxu0 0
        %4076 = vmatpush2.bf16.msra.mxu0 0
        %4077 = vmatprep.subr.bf16.mxu0 0
        %4078 = vmatpush2.bf16.msra.mxu0 0
        %4079 = vmatprep.subr.bf16.mxu0 0
        %4080 = vmatpush2.bf16.msra.mxu0 0
        %4081 = vmatprep.subr.bf16.mxu0 0
        %4082 = vmatpush2.bf16.msra.mxu0 0
        %4083 = vmatprep.subr.bf16.mxu0 0
        %4084 = vmatpush2.bf16.msra.mxu0 0
        %4085 = vmatprep.subr.bf16.mxu0 0
        %4086 = vmatpush2.bf16.msra.mxu0 0
        %4087 = vmatprep.subr.bf16.mxu0 0
        %4088 = vmatpush2.bf16.msra.mxu0 0
        %4089 = vmatprep.mubr.bf16.mxu0 0
        %4090 = vmatmul.mubr.bf16.gmra.mxu0 %v4033
        %v4091 = vpop.f32.mrf.mxu0
        %v4092 = vadd.f32 0.0, %v4091
        %v4093 = vpop.f32.mrf.mxu0
        %v4094 = vpop.f32.mrf.mxu0
        %v4095 = vadd.f32 0.0, %v4094
        %v4096 = vpop.f32.mrf.mxu0
        %4097 = vmatprep.mubr.bf16.mxu0 0
        %4098 = vmatmul.mubr.bf16.gmra.mxu0 %v4034
        %v4099 = vpop.f32.mrf.mxu0
        %v4100 = vadd.f32 0.0, %v4099
        %v4101 = vpop.f32.mrf.mxu0
        %v4102 = vpop.f32.mrf.mxu0
        %v4103 = vadd.f32 0.0, %v4102
        %v4104 = vpop.f32.mrf.mxu0
        %4105 = vmatprep.mubr.bf16.mxu0 0
        %4106 = vmatmul.mubr.bf16.gmra.mxu0 %v4035
        %v4107 = vpop.f32.mrf.mxu0
        %v4108 = vadd.f32 0.0, %v4107
        %v4109 = vpop.f32.mrf.mxu0
        %v4110 = vpop.f32.mrf.mxu0
        %v4111 = vadd.f32 0.0, %v4110
        %v4112 = vpop.f32.mrf.mxu0
        %4113 = vmatprep.mubr.bf16.mxu0 0
        %4114 = vmatmul.mubr.bf16.gmra.mxu0 %v4036
        %v4115 = vpop.f32.mrf.mxu0
        %v4116 = vadd.f32 0.0, %v4115
        %v4117 = vpop.f32.mrf.mxu0
        %v4118 = vpop.f32.mrf.mxu0
        %v4119 = vadd.f32 0.0, %v4118
        %v4120 = vpop.f32.mrf.mxu0
        %4121 = vmatprep.mubr.bf16.mxu0 0
        %4122 = vmatmul.mubr.bf16.gmra.mxu0 %v4037
        %v4123 = vpop.f32.mrf.mxu0
        %v4124 = vadd.f32 0.0, %v4123
        %v4125 = vpop.f32.mrf.mxu0
        %v4126 = vpop.f32.mrf.mxu0
        %v4127 = vadd.f32 0.0, %v4126
        %v4128 = vpop.f32.mrf.mxu0
        %4129 = vmatprep.mubr.bf16.mxu0 0
        %4130 = vmatmul.mubr.bf16.gmra.mxu0 %v4038
        %v4131 = vpop.f32.mrf.mxu0
        %v4132 = vadd.f32 0.0, %v4131
        %v4133 = vpop.f32.mrf.mxu0
        %v4134 = vpop.f32.mrf.mxu0
        %v4135 = vadd.f32 0.0, %v4134
        %v4136 = vpop.f32.mrf.mxu0
        %4137 = vmatprep.mubr.bf16.mxu0 0
        %4138 = vmatmul.mubr.bf16.gmra.mxu0 %v4039
        %v4139 = vpop.f32.mrf.mxu0
        %v4140 = vadd.f32 0.0, %v4139
        %v4141 = vpop.f32.mrf.mxu0
        %v4142 = vpop.f32.mrf.mxu0
        %v4143 = vadd.f32 0.0, %v4142
        %v4144 = vpop.f32.mrf.mxu0
        %4145 = vmatprep.mubr.bf16.mxu0 0
        %4146 = vmatmul.mubr.bf16.gmra.mxu0 %v4040
        %v4147 = vpop.f32.mrf.mxu0
        %v4148 = vadd.f32 0.0, %v4147
        %v4149 = vpop.f32.mrf.mxu0
        %v4150 = vpop.f32.mrf.mxu0
        %v4151 = vadd.f32 0.0, %v4150
        %v4152 = vpop.f32.mrf.mxu0
        %4153 = vmatprep.mubr.bf16.mxu0 0
        %4154 = vmatmul.mubr.bf16.gmra.mxu0 %v4041
        %v4155 = vpop.f32.mrf.mxu0
        %v4156 = vadd.f32 0.0, %v4155
        %v4157 = vpop.f32.mrf.mxu0
        %v4158 = vpop.f32.mrf.mxu0
        %v4159 = vadd.f32 0.0, %v4158
        %v4160 = vpop.f32.mrf.mxu0
        %4161 = vmatprep.mubr.bf16.mxu0 0
        %4162 = vmatmul.mubr.bf16.gmra.mxu0 %v4042
        %v4163 = vpop.f32.mrf.mxu0
        %v4164 = vadd.f32 0.0, %v4163
        %v4165 = vpop.f32.mrf.mxu0
        %v4166 = vpop.f32.mrf.mxu0
        %v4167 = vadd.f32 0.0, %v4166
        %v4168 = vpop.f32.mrf.mxu0
        %4169 = vmatprep.mubr.bf16.mxu0 0
        %4170 = vmatmul.mubr.bf16.gmra.mxu0 %v4043
        %v4171 = vpop.f32.mrf.mxu0
        %v4172 = vadd.f32 0.0, %v4171
        %v4173 = vpop.f32.mrf.mxu0
        %v4174 = vpop.f32.mrf.mxu0
        %v4175 = vadd.f32 0.0, %v4174
        %v4176 = vpop.f32.mrf.mxu0
        %4177 = vmatprep.mubr.bf16.mxu0 0
        %4178 = vmatmul.mubr.bf16.gmra.mxu0 %v4044
        %v4179 = vpop.f32.mrf.mxu0
        %v4180 = vadd.f32 0.0, %v4179
        %v4181 = vpop.f32.mrf.mxu0
        %v4182 = vpop.f32.mrf.mxu0
        %v4183 = vadd.f32 0.0, %v4182
        %v4184 = vpop.f32.mrf.mxu0
        %4185 = vmatprep.mubr.bf16.mxu0 0
        %4186 = vmatmul.mubr.bf16.gmra.mxu0 %v4045
        %v4187 = vpop.f32.mrf.mxu0
        %v4188 = vadd.f32 0.0, %v4187
        %v4189 = vpop.f32.mrf.mxu0
        %v4190 = vpop.f32.mrf.mxu0
        %v4191 = vadd.f32 0.0, %v4190
        %v4192 = vpop.f32.mrf.mxu0
        %4193 = vmatprep.mubr.bf16.mxu0 0
        %4194 = vmatmul.mubr.bf16.gmra.mxu0 %v4046
        %v4195 = vpop.f32.mrf.mxu0
        %v4196 = vadd.f32 0.0, %v4195
        %v4197 = vpop.f32.mrf.mxu0
        %v4198 = vpop.f32.mrf.mxu0
        %v4199 = vadd.f32 0.0, %v4198
        %v4200 = vpop.f32.mrf.mxu0
        %4201 = vmatprep.mubr.bf16.mxu0 0
        %4202 = vmatmul.mubr.bf16.gmra.mxu0 %v4047
        %v4203 = vpop.f32.mrf.mxu0
        %v4204 = vadd.f32 0.0, %v4203
        %v4205 = vpop.f32.mrf.mxu0
        %v4206 = vpop.f32.mrf.mxu0
        %v4207 = vadd.f32 0.0, %v4206
        %v4208 = vpop.f32.mrf.mxu0
        %4209 = vmatprep.mubr.bf16.mxu0 0
        %4210 = vmatmul.mubr.bf16.gmra.mxu0 %v4048
        %v4211 = vpop.f32.mrf.mxu0
        %v4212 = vadd.f32 0.0, %v4211
        %v4213 = vpop.f32.mrf.mxu0
        %v4214 = vpop.f32.mrf.mxu0
        %v4215 = vadd.f32 0.0, %v4214
        %v4216 = vpop.f32.mrf.mxu0
        %4217 = vmatprep.mubr.bf16.mxu0 0
        %4218 = vmatmul.mubr.bf16.gmra.mxu0 %v4049
        %v4219 = vpop.f32.mrf.mxu0
        %v4220 = vadd.f32 0.0, %v4219
        %v4221 = vpop.f32.mrf.mxu0
        %v4222 = vpop.f32.mrf.mxu0
        %v4223 = vadd.f32 0.0, %v4222
        %v4224 = vpop.f32.mrf.mxu0
        %4225 = vmatprep.mubr.bf16.mxu0 0
        %4226 = vmatmul.mubr.bf16.gmra.mxu0 %v4050
        %v4227 = vpop.f32.mrf.mxu0
        %v4228 = vadd.f32 0.0, %v4227
        %v4229 = vpop.f32.mrf.mxu0
        %v4230 = vpop.f32.mrf.mxu0
        %v4231 = vadd.f32 0.0, %v4230
        %v4232 = vpop.f32.mrf.mxu0
        %4233 = vmatprep.mubr.bf16.mxu0 0
        %4234 = vmatmul.mubr.bf16.gmra.mxu0 %v4051
        %v4235 = vpop.f32.mrf.mxu0
        %v4236 = vadd.f32 0.0, %v4235
        %v4237 = vpop.f32.mrf.mxu0
        %v4238 = vpop.f32.mrf.mxu0
        %v4239 = vadd.f32 0.0, %v4238
        %v4240 = vpop.f32.mrf.mxu0
        %4241 = vmatprep.mubr.bf16.mxu0 0
        %4242 = vmatmul.mubr.bf16.gmra.mxu0 %v4052
        %v4243 = vpop.f32.mrf.mxu0
        %v4244 = vadd.f32 0.0, %v4243
        %v4245 = vpop.f32.mrf.mxu0
        %v4246 = vpop.f32.mrf.mxu0
        %v4247 = vadd.f32 0.0, %v4246
        %v4248 = vpop.f32.mrf.mxu0
        %4249 = vmatprep.mubr.bf16.mxu0 0
        %4250 = vmatmul.mubr.bf16.gmra.mxu0 %v4053
        %v4251 = vpop.f32.mrf.mxu0
        %v4252 = vadd.f32 0.0, %v4251
        %v4253 = vpop.f32.mrf.mxu0
        %v4254 = vpop.f32.mrf.mxu0
        %v4255 = vadd.f32 0.0, %v4254
        %v4256 = vpop.f32.mrf.mxu0
        %4257 = vmatprep.mubr.bf16.mxu0 0
        %4258 = vmatmul.mubr.bf16.gmra.mxu0 %v4054
        %v4259 = vpop.f32.mrf.mxu0
        %v4260 = vadd.f32 0.0, %v4259
        %v4261 = vpop.f32.mrf.mxu0
        %v4262 = vpop.f32.mrf.mxu0
        %v4263 = vadd.f32 0.0, %v4262
        %v4264 = vpop.f32.mrf.mxu0
        %4265 = vmatprep.mubr.bf16.mxu0 0
        %4266 = vmatmul.mubr.bf16.gmra.mxu0 %v4055
        %v4267 = vpop.f32.mrf.mxu0
        %v4268 = vadd.f32 0.0, %v4267
        %v4269 = vpop.f32.mrf.mxu0
        %v4270 = vpop.f32.mrf.mxu0
        %v4271 = vadd.f32 0.0, %v4270
        %v4272 = vpop.f32.mrf.mxu0
        %4273 = vmatprep.mubr.bf16.mxu0 0
        %4274 = vmatmul.mubr.bf16.gmra.mxu0 %v4056
        %v4275 = vpop.f32.mrf.mxu0
        %v4276 = vadd.f32 0.0, %v4275
        %v4277 = vpop.f32.mrf.mxu0
        %v4278 = vpop.f32.mrf.mxu0
        %v4279 = vadd.f32 0.0, %v4278
        %v4280 = vpop.f32.mrf.mxu0
        %4281 = vdwg.mxu0
        %v4282 = vpack.c.bf16 %v4095, %v4092
        %v4283 = vpack.c.bf16 %v4103, %v4100
        %v4284 = vpack.c.bf16 %v4111, %v4108
        %v4285 = vpack.c.bf16 %v4119, %v4116
        %v4286 = vpack.c.bf16 %v4127, %v4124
        %v4287 = vpack.c.bf16 %v4135, %v4132
        %v4288 = vpack.c.bf16 %v4143, %v4140
        %v4289 = vpack.c.bf16 %v4151, %v4148
        %v4290 = vpack.c.bf16 %v4159, %v4156
        %v4291 = vpack.c.bf16 %v4167, %v4164
        %v4292 = vpack.c.bf16 %v4175, %v4172
        %v4293 = vpack.c.bf16 %v4183, %v4180
        %v4294 = vpack.c.bf16 %v4191, %v4188
        %v4295 = vpack.c.bf16 %v4199, %v4196
        %v4296 = vpack.c.bf16 %v4207, %v4204
        %v4297 = vpack.c.bf16 %v4215, %v4212
        %v4298 = vpack.c.bf16 %v4223, %v4220
        %v4299 = vpack.c.bf16 %v4231, %v4228
        %v4300 = vpack.c.bf16 %v4239, %v4236
        %v4301 = vpack.c.bf16 %v4247, %v4244
        %v4302 = vpack.c.bf16 %v4255, %v4252
        %v4303 = vpack.c.bf16 %v4263, %v4260
        %v4304 = vpack.c.bf16 %v4271, %v4268
        %v4305 = vpack.c.bf16 %v4279, %v4276
        %v4330 = vunpack.c.l.b16 %v4282
        %v4331 = vunpack.c.h.b16 %v4282
        %v4332 = vunpack.c.l.b16 %v4283
        %v4333 = vunpack.c.h.b16 %v4283
        %v4334 = vunpack.c.l.b16 %v4284
        %v4335 = vunpack.c.h.b16 %v4284
        %v4336 = vunpack.c.l.b16 %v4285
        %v4337 = vunpack.c.h.b16 %v4285
        %v4338 = vunpack.c.l.b16 %v4286
        %v4339 = vunpack.c.h.b16 %v4286
        %v4340 = vunpack.c.l.b16 %v4287
        %v4341 = vunpack.c.h.b16 %v4287
        %v4342 = vunpack.c.l.b16 %v4288
        %v4343 = vunpack.c.h.b16 %v4288
        %v4344 = vunpack.c.l.b16 %v4289
        %v4345 = vunpack.c.h.b16 %v4289
        %v4346 = vunpack.c.l.b16 %v4290
        %v4347 = vunpack.c.h.b16 %v4290
        %v4348 = vunpack.c.l.b16 %v4291
        %v4349 = vunpack.c.h.b16 %v4291
        %v4350 = vunpack.c.l.b16 %v4292
        %v4351 = vunpack.c.h.b16 %v4292
        %v4352 = vunpack.c.l.b16 %v4293
        %v4353 = vunpack.c.h.b16 %v4293
        %v4354 = vunpack.c.l.b16 %v4294
        %v4355 = vunpack.c.h.b16 %v4294
        %v4356 = vunpack.c.l.b16 %v4295
        %v4357 = vunpack.c.h.b16 %v4295
        %v4358 = vunpack.c.l.b16 %v4296
        %v4359 = vunpack.c.h.b16 %v4296
        %v4360 = vunpack.c.l.b16 %v4297
        %v4361 = vunpack.c.h.b16 %v4297
        %v4362 = vunpack.c.l.b16 %v4298
        %v4363 = vunpack.c.h.b16 %v4298
        %v4364 = vunpack.c.l.b16 %v4299
        %v4365 = vunpack.c.h.b16 %v4299
        %v4366 = vunpack.c.l.b16 %v4300
        %v4367 = vunpack.c.h.b16 %v4300
        %v4368 = vunpack.c.l.b16 %v4301
        %v4369 = vunpack.c.h.b16 %v4301
        %v4370 = vunpack.c.l.b16 %v4302
        %v4371 = vunpack.c.h.b16 %v4302
        %v4372 = vunpack.c.l.b16 %v4303
        %v4373 = vunpack.c.h.b16 %v4303
        %v4374 = vunpack.c.l.b16 %v4304
        %v4375 = vunpack.c.h.b16 %v4304
        %v4376 = vunpack.c.l.b16 %v4305
        %v4377 = vunpack.c.h.b16 %v4305
        %v4378 = vpack.c.b16 %v4330, %v4330
        %v4379 = vpack.c.b16 %v4331, %v4331
        %v4380 = vpack.c.b16 %v4332, %v4332
        %v4381 = vpack.c.b16 %v4333, %v4333
        %v4382 = vpack.c.b16 %v4334, %v4334
        %v4383 = vpack.c.b16 %v4335, %v4335
        %v4384 = vpack.c.b16 %v4336, %v4336
        %v4385 = vpack.c.b16 %v4337, %v4337
        %v4386 = vpack.c.b16 %v4338, %v4338
        %v4387 = vpack.c.b16 %v4339, %v4339
        %v4388 = vpack.c.b16 %v4340, %v4340
        %v4389 = vpack.c.b16 %v4341, %v4341
        %v4390 = vpack.c.b16 %v4342, %v4342
        %v4391 = vpack.c.b16 %v4343, %v4343
        %v4392 = vpack.c.b16 %v4344, %v4344
        %v4393 = vpack.c.b16 %v4345, %v4345
        %v4394 = vpack.c.b16 %v4346, %v4346
        %v4395 = vpack.c.b16 %v4347, %v4347
        %v4396 = vpack.c.b16 %v4348, %v4348
        %v4397 = vpack.c.b16 %v4349, %v4349
        %v4398 = vpack.c.b16 %v4350, %v4350
        %v4399 = vpack.c.b16 %v4351, %v4351
        %v4400 = vpack.c.b16 %v4352, %v4352
        %v4401 = vpack.c.b16 %v4353, %v4353
        %v4402 = vpack.c.b16 %v4354, %v4354
        %v4403 = vpack.c.b16 %v4355, %v4355
        %v4404 = vpack.c.b16 %v4356, %v4356
        %v4405 = vpack.c.b16 %v4357, %v4357
        %v4406 = vpack.c.b16 %v4358, %v4358
        %v4407 = vpack.c.b16 %v4359, %v4359
        %v4408 = vpack.c.b16 %v4360, %v4360
        %v4409 = vpack.c.b16 %v4361, %v4361
        %v4410 = vpack.c.b16 %v4362, %v4362
        %v4411 = vpack.c.b16 %v4363, %v4363
        %v4412 = vpack.c.b16 %v4364, %v4364
        %v4413 = vpack.c.b16 %v4365, %v4365
        %v4414 = vpack.c.b16 %v4366, %v4366
        %v4415 = vpack.c.b16 %v4367, %v4367
        %v4416 = vpack.c.b16 %v4368, %v4368
        %v4417 = vpack.c.b16 %v4369, %v4369
        %v4418 = vpack.c.b16 %v4370, %v4370
        %v4419 = vpack.c.b16 %v4371, %v4371
        %v4420 = vpack.c.b16 %v4372, %v4372
        %v4421 = vpack.c.b16 %v4373, %v4373
        %v4422 = vpack.c.b16 %v4374, %v4374
        %v4423 = vpack.c.b16 %v4375, %v4375
        %v4424 = vpack.c.b16 %v4376, %v4376
        %v4425 = vpack.c.b16 %v4377, %v4377
        %4426 = vrot.lane.b32.xlu0 %v4378, 96
        %v4427 = vpop.permute.xlu0 %4426
        %4428 = vrot.lane.b32.xlu0 %v4379, 96
        %v4429 = vpop.permute.xlu0 %4428
        %4430 = vrot.lane.b32.xlu0 %v4380, 96
        %v4431 = vpop.permute.xlu0 %4430
        %4432 = vrot.lane.b32.xlu0 %v4381, 96
        %v4433 = vpop.permute.xlu0 %4432
        %4434 = vrot.lane.b32.xlu0 %v4382, 96
        %v4435 = vpop.permute.xlu0 %4434
        %4436 = vrot.lane.b32.xlu0 %v4383, 96
        %v4437 = vpop.permute.xlu0 %4436
        %4438 = vrot.lane.b32.xlu0 %v4384, 96
        %v4439 = vpop.permute.xlu0 %4438
        %4440 = vrot.lane.b32.xlu0 %v4385, 96
        %v4441 = vpop.permute.xlu0 %4440
        %4442 = vrot.lane.b32.xlu0 %v4386, 96
        %v4443 = vpop.permute.xlu0 %4442
        %4444 = vrot.lane.b32.xlu0 %v4387, 96
        %v4445 = vpop.permute.xlu0 %4444
        %4446 = vrot.lane.b32.xlu0 %v4388, 96
        %v4447 = vpop.permute.xlu0 %4446
        %4448 = vrot.lane.b32.xlu0 %v4389, 96
        %v4449 = vpop.permute.xlu0 %4448
        %4450 = vrot.lane.b32.xlu0 %v4390, 96
        %v4451 = vpop.permute.xlu0 %4450
        %4452 = vrot.lane.b32.xlu0 %v4391, 96
        %v4453 = vpop.permute.xlu0 %4452
        %4454 = vrot.lane.b32.xlu0 %v4392, 96
        %v4455 = vpop.permute.xlu0 %4454
        %4456 = vrot.lane.b32.xlu0 %v4393, 96
        %v4457 = vpop.permute.xlu0 %4456
        %4458 = vrot.lane.b32.xlu0 %v4394, 96
        %v4459 = vpop.permute.xlu0 %4458
        %4460 = vrot.lane.b32.xlu0 %v4395, 96
        %v4461 = vpop.permute.xlu0 %4460
        %4462 = vrot.lane.b32.xlu0 %v4396, 96
        %v4463 = vpop.permute.xlu0 %4462
        %4464 = vrot.lane.b32.xlu0 %v4397, 96
        %v4465 = vpop.permute.xlu0 %4464
        %4466 = vrot.lane.b32.xlu0 %v4398, 96
        %v4467 = vpop.permute.xlu0 %4466
        %4468 = vrot.lane.b32.xlu0 %v4399, 96
        %v4469 = vpop.permute.xlu0 %4468
        %4470 = vrot.lane.b32.xlu0 %v4400, 96
        %v4471 = vpop.permute.xlu0 %4470
        %4472 = vrot.lane.b32.xlu0 %v4401, 96
        %v4473 = vpop.permute.xlu0 %4472
        %4474 = vrot.lane.b32.xlu0 %v4402, 96
        %v4475 = vpop.permute.xlu0 %4474
        %4476 = vrot.lane.b32.xlu0 %v4403, 96
        %v4477 = vpop.permute.xlu0 %4476
        %4478 = vrot.lane.b32.xlu0 %v4404, 96
        %v4479 = vpop.permute.xlu0 %4478
        %4480 = vrot.lane.b32.xlu0 %v4405, 96
        %v4481 = vpop.permute.xlu0 %4480
        %4482 = vrot.lane.b32.xlu0 %v4406, 96
        %v4483 = vpop.permute.xlu0 %4482
        %4484 = vrot.lane.b32.xlu0 %v4407, 96
        %v4485 = vpop.permute.xlu0 %4484
        %4486 = vrot.lane.b32.xlu0 %v4408, 96
        %v4487 = vpop.permute.xlu0 %4486
        %4488 = vrot.lane.b32.xlu0 %v4409, 96
        %v4489 = vpop.permute.xlu0 %4488
        %4490 = vrot.lane.b32.xlu0 %v4410, 96
        %v4491 = vpop.permute.xlu0 %4490
        %4492 = vrot.lane.b32.xlu0 %v4411, 96
        %v4493 = vpop.permute.xlu0 %4492
        %4494 = vrot.lane.b32.xlu0 %v4412, 96
        %v4495 = vpop.permute.xlu0 %4494
        %4496 = vrot.lane.b32.xlu0 %v4413, 96
        %v4497 = vpop.permute.xlu0 %4496
        %4498 = vrot.lane.b32.xlu0 %v4414, 96
        %v4499 = vpop.permute.xlu0 %4498
        %4500 = vrot.lane.b32.xlu0 %v4415, 96
        %v4501 = vpop.permute.xlu0 %4500
        %4502 = vrot.lane.b32.xlu0 %v4416, 96
        %v4503 = vpop.permute.xlu0 %4502
        %4504 = vrot.lane.b32.xlu0 %v4417, 96
        %v4505 = vpop.permute.xlu0 %4504
        %4506 = vrot.lane.b32.xlu0 %v4418, 96
        %v4507 = vpop.permute.xlu0 %4506
        %4508 = vrot.lane.b32.xlu0 %v4419, 96
        %v4509 = vpop.permute.xlu0 %4508
        %4510 = vrot.lane.b32.xlu0 %v4420, 96
        %v4511 = vpop.permute.xlu0 %4510
        %4512 = vrot.lane.b32.xlu0 %v4421, 96
        %v4513 = vpop.permute.xlu0 %4512
        %4514 = vrot.lane.b32.xlu0 %v4422, 96
        %v4515 = vpop.permute.xlu0 %4514
        %4516 = vrot.lane.b32.xlu0 %v4423, 96
        %v4517 = vpop.permute.xlu0 %4516
        %4518 = vrot.lane.b32.xlu0 %v4424, 96
        %v4519 = vpop.permute.xlu0 %4518
        %4520 = vrot.lane.b32.xlu0 %v4425, 96
        %v4521 = vpop.permute.xlu0 %4520
        %vm4570 = vcmask 913152
        %4571 = vst.msk [vmem:[#allocation2] sm:$0xf] %vm4570, %v4427
        %4572 = vst.msk [vmem:[#allocation2 + $0x4] sm:$0xf] %vm4570, %v4429
        %4573 = vst.msk [vmem:[#allocation2 + $0x8] sm:$0xf] %vm4570, %v4431
        %4574 = vst.msk [vmem:[#allocation2 + $0xc] sm:$0xf] %vm4570, %v4433
        %4575 = vst.msk [vmem:[#allocation2 + $0x10] sm:$0xf] %vm4570, %v4435
        %4576 = vst.msk [vmem:[#allocation2 + $0x14] sm:$0xf] %vm4570, %v4437
        %4577 = vst.msk [vmem:[#allocation2 + $0x18] sm:$0xf] %vm4570, %v4439
        %4578 = vst.msk [vmem:[#allocation2 + $0x1c] sm:$0xf] %vm4570, %v4441
        %4579 = vst.msk [vmem:[#allocation2 + $0x20] sm:$0xf] %vm4570, %v4443
        %4580 = vst.msk [vmem:[#allocation2 + $0x24] sm:$0xf] %vm4570, %v4445
        %4581 = vst.msk [vmem:[#allocation2 + $0x28] sm:$0xf] %vm4570, %v4447
        %4582 = vst.msk [vmem:[#allocation2 + $0x2c] sm:$0xf] %vm4570, %v4449
        %4583 = vst.msk [vmem:[#allocation2 + $0x30] sm:$0xf] %vm4570, %v4451
        %4584 = vst.msk [vmem:[#allocation2 + $0x34] sm:$0xf] %vm4570, %v4453
        %4585 = vst.msk [vmem:[#allocation2 + $0x38] sm:$0xf] %vm4570, %v4455
        %4586 = vst.msk [vmem:[#allocation2 + $0x3c] sm:$0xf] %vm4570, %v4457
        %4587 = vst.msk [vmem:[#allocation2 + $0x40] sm:$0xf] %vm4570, %v4459
        %4588 = vst.msk [vmem:[#allocation2 + $0x44] sm:$0xf] %vm4570, %v4461
        %4589 = vst.msk [vmem:[#allocation2 + $0x48] sm:$0xf] %vm4570, %v4463
        %4590 = vst.msk [vmem:[#allocation2 + $0x4c] sm:$0xf] %vm4570, %v4465
        %4591 = vst.msk [vmem:[#allocation2 + $0x50] sm:$0xf] %vm4570, %v4467
        %4592 = vst.msk [vmem:[#allocation2 + $0x54] sm:$0xf] %vm4570, %v4469
        %4593 = vst.msk [vmem:[#allocation2 + $0x58] sm:$0xf] %vm4570, %v4471
        %4594 = vst.msk [vmem:[#allocation2 + $0x5c] sm:$0xf] %vm4570, %v4473
        %4595 = vst.msk [vmem:[#allocation2 + $0x60] sm:$0xf] %vm4570, %v4475
        %4596 = vst.msk [vmem:[#allocation2 + $0x64] sm:$0xf] %vm4570, %v4477
        %4597 = vst.msk [vmem:[#allocation2 + $0x68] sm:$0xf] %vm4570, %v4479
        %4598 = vst.msk [vmem:[#allocation2 + $0x6c] sm:$0xf] %vm4570, %v4481
        %4599 = vst.msk [vmem:[#allocation2 + $0x70] sm:$0xf] %vm4570, %v4483
        %4600 = vst.msk [vmem:[#allocation2 + $0x74] sm:$0xf] %vm4570, %v4485
        %4601 = vst.msk [vmem:[#allocation2 + $0x78] sm:$0xf] %vm4570, %v4487
        %4602 = vst.msk [vmem:[#allocation2 + $0x7c] sm:$0xf] %vm4570, %v4489
        %4603 = vst.msk [vmem:[#allocation2 + $0x80] sm:$0xf] %vm4570, %v4491
        %4604 = vst.msk [vmem:[#allocation2 + $0x84] sm:$0xf] %vm4570, %v4493
        %4605 = vst.msk [vmem:[#allocation2 + $0x88] sm:$0xf] %vm4570, %v4495
        %4606 = vst.msk [vmem:[#allocation2 + $0x8c] sm:$0xf] %vm4570, %v4497
        %4607 = vst.msk [vmem:[#allocation2 + $0x90] sm:$0xf] %vm4570, %v4499
        %4608 = vst.msk [vmem:[#allocation2 + $0x94] sm:$0xf] %vm4570, %v4501
        %4609 = vst.msk [vmem:[#allocation2 + $0x98] sm:$0xf] %vm4570, %v4503
        %4610 = vst.msk [vmem:[#allocation2 + $0x9c] sm:$0xf] %vm4570, %v4505
        %4611 = vst.msk [vmem:[#allocation2 + $0xa0] sm:$0xf] %vm4570, %v4507
        %4612 = vst.msk [vmem:[#allocation2 + $0xa4] sm:$0xf] %vm4570, %v4509
        %4613 = vst.msk [vmem:[#allocation2 + $0xa8] sm:$0xf] %vm4570, %v4511
        %4614 = vst.msk [vmem:[#allocation2 + $0xac] sm:$0xf] %vm4570, %v4513
        %4615 = vst.msk [vmem:[#allocation2 + $0xb0] sm:$0xf] %vm4570, %v4515
        %4616 = vst.msk [vmem:[#allocation2 + $0xb4] sm:$0xf] %vm4570, %v4517
        %4617 = vst.msk [vmem:[#allocation2 + $0xb8] sm:$0xf] %vm4570, %v4519
        %4618 = vst.msk [vmem:[#allocation2 + $0xbc] sm:$0xf] %vm4570, %v4521
        %s4619 = scalar_lea.vmem %s178, 2688 [#allocation3]
        %v4620 = vld [vmem:[%s4619] sm:$0xff]
        %v4621 = vld [vmem:[%s4619 + $0x8] sm:$0xff]
        %v4622 = vld [vmem:[%s4619 + $0x10] sm:$0xff]
        %v4623 = vld [vmem:[%s4619 + $0x18] sm:$0xff]
        %v4624 = vld [vmem:[%s4619 + $0x20] sm:$0xff]
        %v4625 = vld [vmem:[%s4619 + $0x28] sm:$0xff]
        %v4626 = vld [vmem:[%s4619 + $0x30] sm:$0xff]
        %v4627 = vld [vmem:[%s4619 + $0x38] sm:$0xff]
        %v4628 = vld [vmem:[%s4619 + $0x40] sm:$0xff]
        %v4629 = vld [vmem:[%s4619 + $0x48] sm:$0xff]
        %v4630 = vld [vmem:[%s4619 + $0x50] sm:$0xff]
        %v4631 = vld [vmem:[%s4619 + $0x58] sm:$0xff]
        %v4632 = vld [vmem:[%s4619 + $0x60] sm:$0xff]
        %v4633 = vld [vmem:[%s4619 + $0x68] sm:$0xff]
        %v4634 = vld [vmem:[%s4619 + $0x70] sm:$0xff]
        %v4635 = vld [vmem:[%s4619 + $0x78] sm:$0xff]
        %v4636 = vld [vmem:[%s4619 + $0x80] sm:$0xff]
        %v4637 = vld [vmem:[%s4619 + $0x88] sm:$0xff]
        %v4638 = vld [vmem:[%s4619 + $0x90] sm:$0xff]
        %v4639 = vld [vmem:[%s4619 + $0x98] sm:$0xff]
        %v4640 = vld [vmem:[%s4619 + $0xa0] sm:$0xff]
        %v4641 = vld [vmem:[%s4619 + $0xa8] sm:$0xff]
        %v4642 = vld [vmem:[%s4619 + $0xb0] sm:$0xff]
        %v4643 = vld [vmem:[%s4619 + $0xb8] sm:$0xff]
        %v4644 = vld [vmem:[%s4619 + $0xc0] sm:$0xff]
        %v4645 = vld [vmem:[%s4619 + $0xc8] sm:$0xff]
        %v4646 = vld [vmem:[%s4619 + $0xd0] sm:$0xff]
        %v4647 = vld [vmem:[%s4619 + $0xd8] sm:$0xff]
        %v4648 = vld [vmem:[%s4619 + $0xe0] sm:$0xff]
        %v4649 = vld [vmem:[%s4619 + $0xe8] sm:$0xff]
        %v4650 = vld [vmem:[%s4619 + $0xf0] sm:$0xff]
        %v4651 = vld [vmem:[%s4619 + $0xf8] sm:$0xff]
        %v4652 = vld [vmem:[%s4619 + $0x100] sm:$0xff]
        %v4653 = vld [vmem:[%s4619 + $0x108] sm:$0xff]
        %v4654 = vld [vmem:[%s4619 + $0x110] sm:$0xff]
        %v4655 = vld [vmem:[%s4619 + $0x118] sm:$0xff]
        %v4656 = vld [vmem:[%s4619 + $0x120] sm:$0xff]
        %v4657 = vld [vmem:[%s4619 + $0x128] sm:$0xff]
        %v4658 = vld [vmem:[%s4619 + $0x130] sm:$0xff]
        %v4659 = vld [vmem:[%s4619 + $0x138] sm:$0xff]
        %v4660 = vld [vmem:[%s4619 + $0x140] sm:$0xff]
        %v4661 = vld [vmem:[%s4619 + $0x148] sm:$0xff]
        %v4662 = vld [vmem:[%s4619 + $0x150] sm:$0xff]
        %v4663 = vld [vmem:[%s4619 + $0x158] sm:$0xff]
        %v4664 = vld [vmem:[%s4619 + $0x160] sm:$0xff]
        %v4665 = vld [vmem:[%s4619 + $0x168] sm:$0xff]
        %v4666 = vld [vmem:[%s4619 + $0x170] sm:$0xff]
        %v4667 = vld [vmem:[%s4619 + $0x178] sm:$0xff]
        %v4668 = vpack.c.bf16 %v4621, %v4620
        %v4669 = vpack.c.bf16 %v4623, %v4622
        %v4670 = vpack.c.bf16 %v4625, %v4624
        %v4671 = vpack.c.bf16 %v4627, %v4626
        %v4672 = vpack.c.bf16 %v4629, %v4628
        %v4673 = vpack.c.bf16 %v4631, %v4630
        %v4674 = vpack.c.bf16 %v4633, %v4632
        %v4675 = vpack.c.bf16 %v4635, %v4634
        %v4676 = vpack.c.bf16 %v4637, %v4636
        %v4677 = vpack.c.bf16 %v4639, %v4638
        %v4678 = vpack.c.bf16 %v4641, %v4640
        %v4679 = vpack.c.bf16 %v4643, %v4642
        %v4680 = vpack.c.bf16 %v4645, %v4644
        %v4681 = vpack.c.bf16 %v4647, %v4646
        %v4682 = vpack.c.bf16 %v4649, %v4648
        %v4683 = vpack.c.bf16 %v4651, %v4650
        %v4684 = vpack.c.bf16 %v4653, %v4652
        %v4685 = vpack.c.bf16 %v4655, %v4654
        %v4686 = vpack.c.bf16 %v4657, %v4656
        %v4687 = vpack.c.bf16 %v4659, %v4658
        %v4688 = vpack.c.bf16 %v4661, %v4660
        %v4689 = vpack.c.bf16 %v4663, %v4662
        %v4690 = vpack.c.bf16 %v4665, %v4664
        %v4691 = vpack.c.bf16 %v4667, %v4666
        %4692 = vmatprep.subr.bf16.mxu0 0
        %4693 = vmatpush1.bf16.msra.mxu0 %v334
        %4694 = vmatprep.subr.bf16.mxu0 0
        %4695 = vmatpush1.bf16.msra.mxu0 %v333
        %4696 = vmatprep.subr.bf16.mxu0 0
        %4697 = vmatpush1.bf16.msra.mxu0 %v332
        %4698 = vmatprep.subr.bf16.mxu0 0
        %4699 = vmatpush1.bf16.msra.mxu0 %v331
        %4700 = vmatprep.subr.bf16.mxu0 0
        %4701 = vmatpush1.bf16.msra.mxu0 %v330
        %4702 = vmatprep.subr.bf16.mxu0 0
        %4703 = vmatpush1.bf16.msra.mxu0 %v329
        %4704 = vmatprep.subr.bf16.mxu0 0
        %4705 = vmatpush1.bf16.msra.mxu0 %v328
        %4706 = vmatprep.subr.bf16.mxu0 0
        %4707 = vmatpush1.bf16.msra.mxu0 %v327
        %4708 = vmatprep.subr.bf16.mxu0 0
        %4709 = vmatpush2.bf16.msra.mxu0 0
        %4710 = vmatprep.subr.bf16.mxu0 0
        %4711 = vmatpush2.bf16.msra.mxu0 0
        %4712 = vmatprep.subr.bf16.mxu0 0
        %4713 = vmatpush2.bf16.msra.mxu0 0
        %4714 = vmatprep.subr.bf16.mxu0 0
        %4715 = vmatpush2.bf16.msra.mxu0 0
        %4716 = vmatprep.subr.bf16.mxu0 0
        %4717 = vmatpush2.bf16.msra.mxu0 0
        %4718 = vmatprep.subr.bf16.mxu0 0
        %4719 = vmatpush2.bf16.msra.mxu0 0
        %4720 = vmatprep.subr.bf16.mxu0 0
        %4721 = vmatpush2.bf16.msra.mxu0 0
        %4722 = vmatprep.subr.bf16.mxu0 0
        %4723 = vmatpush2.bf16.msra.mxu0 0
        %4724 = vmatprep.mubr.bf16.mxu0 0
        %4725 = vmatmul.mubr.bf16.gmra.mxu0 %v4668
        %v4726 = vpop.f32.mrf.mxu0
        %v4727 = vadd.f32 0.0, %v4726
        %v4728 = vpop.f32.mrf.mxu0
        %v4729 = vpop.f32.mrf.mxu0
        %v4730 = vadd.f32 0.0, %v4729
        %v4731 = vpop.f32.mrf.mxu0
        %4732 = vmatprep.mubr.bf16.mxu0 0
        %4733 = vmatmul.mubr.bf16.gmra.mxu0 %v4669
        %v4734 = vpop.f32.mrf.mxu0
        %v4735 = vadd.f32 0.0, %v4734
        %v4736 = vpop.f32.mrf.mxu0
        %v4737 = vpop.f32.mrf.mxu0
        %v4738 = vadd.f32 0.0, %v4737
        %v4739 = vpop.f32.mrf.mxu0
        %4740 = vmatprep.mubr.bf16.mxu0 0
        %4741 = vmatmul.mubr.bf16.gmra.mxu0 %v4670
        %v4742 = vpop.f32.mrf.mxu0
        %v4743 = vadd.f32 0.0, %v4742
        %v4744 = vpop.f32.mrf.mxu0
        %v4745 = vpop.f32.mrf.mxu0
        %v4746 = vadd.f32 0.0, %v4745
        %v4747 = vpop.f32.mrf.mxu0
        %4748 = vmatprep.mubr.bf16.mxu0 0
        %4749 = vmatmul.mubr.bf16.gmra.mxu0 %v4671
        %v4750 = vpop.f32.mrf.mxu0
        %v4751 = vadd.f32 0.0, %v4750
        %v4752 = vpop.f32.mrf.mxu0
        %v4753 = vpop.f32.mrf.mxu0
        %v4754 = vadd.f32 0.0, %v4753
        %v4755 = vpop.f32.mrf.mxu0
        %4756 = vmatprep.mubr.bf16.mxu0 0
        %4757 = vmatmul.mubr.bf16.gmra.mxu0 %v4672
        %v4758 = vpop.f32.mrf.mxu0
        %v4759 = vadd.f32 0.0, %v4758
        %v4760 = vpop.f32.mrf.mxu0
        %v4761 = vpop.f32.mrf.mxu0
        %v4762 = vadd.f32 0.0, %v4761
        %v4763 = vpop.f32.mrf.mxu0
        %4764 = vmatprep.mubr.bf16.mxu0 0
        %4765 = vmatmul.mubr.bf16.gmra.mxu0 %v4673
        %v4766 = vpop.f32.mrf.mxu0
        %v4767 = vadd.f32 0.0, %v4766
        %v4768 = vpop.f32.mrf.mxu0
        %v4769 = vpop.f32.mrf.mxu0
        %v4770 = vadd.f32 0.0, %v4769
        %v4771 = vpop.f32.mrf.mxu0
        %4772 = vmatprep.mubr.bf16.mxu0 0
        %4773 = vmatmul.mubr.bf16.gmra.mxu0 %v4674
        %v4774 = vpop.f32.mrf.mxu0
        %v4775 = vadd.f32 0.0, %v4774
        %v4776 = vpop.f32.mrf.mxu0
        %v4777 = vpop.f32.mrf.mxu0
        %v4778 = vadd.f32 0.0, %v4777
        %v4779 = vpop.f32.mrf.mxu0
        %4780 = vmatprep.mubr.bf16.mxu0 0
        %4781 = vmatmul.mubr.bf16.gmra.mxu0 %v4675
        %v4782 = vpop.f32.mrf.mxu0
        %v4783 = vadd.f32 0.0, %v4782
        %v4784 = vpop.f32.mrf.mxu0
        %v4785 = vpop.f32.mrf.mxu0
        %v4786 = vadd.f32 0.0, %v4785
        %v4787 = vpop.f32.mrf.mxu0
        %4788 = vmatprep.mubr.bf16.mxu0 0
        %4789 = vmatmul.mubr.bf16.gmra.mxu0 %v4676
        %v4790 = vpop.f32.mrf.mxu0
        %v4791 = vadd.f32 0.0, %v4790
        %v4792 = vpop.f32.mrf.mxu0
        %v4793 = vpop.f32.mrf.mxu0
        %v4794 = vadd.f32 0.0, %v4793
        %v4795 = vpop.f32.mrf.mxu0
        %4796 = vmatprep.mubr.bf16.mxu0 0
        %4797 = vmatmul.mubr.bf16.gmra.mxu0 %v4677
        %v4798 = vpop.f32.mrf.mxu0
        %v4799 = vadd.f32 0.0, %v4798
        %v4800 = vpop.f32.mrf.mxu0
        %v4801 = vpop.f32.mrf.mxu0
        %v4802 = vadd.f32 0.0, %v4801
        %v4803 = vpop.f32.mrf.mxu0
        %4804 = vmatprep.mubr.bf16.mxu0 0
        %4805 = vmatmul.mubr.bf16.gmra.mxu0 %v4678
        %v4806 = vpop.f32.mrf.mxu0
        %v4807 = vadd.f32 0.0, %v4806
        %v4808 = vpop.f32.mrf.mxu0
        %v4809 = vpop.f32.mrf.mxu0
        %v4810 = vadd.f32 0.0, %v4809
        %v4811 = vpop.f32.mrf.mxu0
        %4812 = vmatprep.mubr.bf16.mxu0 0
        %4813 = vmatmul.mubr.bf16.gmra.mxu0 %v4679
        %v4814 = vpop.f32.mrf.mxu0
        %v4815 = vadd.f32 0.0, %v4814
        %v4816 = vpop.f32.mrf.mxu0
        %v4817 = vpop.f32.mrf.mxu0
        %v4818 = vadd.f32 0.0, %v4817
        %v4819 = vpop.f32.mrf.mxu0
        %4820 = vmatprep.mubr.bf16.mxu0 0
        %4821 = vmatmul.mubr.bf16.gmra.mxu0 %v4680
        %v4822 = vpop.f32.mrf.mxu0
        %v4823 = vadd.f32 0.0, %v4822
        %v4824 = vpop.f32.mrf.mxu0
        %v4825 = vpop.f32.mrf.mxu0
        %v4826 = vadd.f32 0.0, %v4825
        %v4827 = vpop.f32.mrf.mxu0
        %4828 = vmatprep.mubr.bf16.mxu0 0
        %4829 = vmatmul.mubr.bf16.gmra.mxu0 %v4681
        %v4830 = vpop.f32.mrf.mxu0
        %v4831 = vadd.f32 0.0, %v4830
        %v4832 = vpop.f32.mrf.mxu0
        %v4833 = vpop.f32.mrf.mxu0
        %v4834 = vadd.f32 0.0, %v4833
        %v4835 = vpop.f32.mrf.mxu0
        %4836 = vmatprep.mubr.bf16.mxu0 0
        %4837 = vmatmul.mubr.bf16.gmra.mxu0 %v4682
        %v4838 = vpop.f32.mrf.mxu0
        %v4839 = vadd.f32 0.0, %v4838
        %v4840 = vpop.f32.mrf.mxu0
        %v4841 = vpop.f32.mrf.mxu0
        %v4842 = vadd.f32 0.0, %v4841
        %v4843 = vpop.f32.mrf.mxu0
        %4844 = vmatprep.mubr.bf16.mxu0 0
        %4845 = vmatmul.mubr.bf16.gmra.mxu0 %v4683
        %v4846 = vpop.f32.mrf.mxu0
        %v4847 = vadd.f32 0.0, %v4846
        %v4848 = vpop.f32.mrf.mxu0
        %v4849 = vpop.f32.mrf.mxu0
        %v4850 = vadd.f32 0.0, %v4849
        %v4851 = vpop.f32.mrf.mxu0
        %4852 = vmatprep.mubr.bf16.mxu0 0
        %4853 = vmatmul.mubr.bf16.gmra.mxu0 %v4684
        %v4854 = vpop.f32.mrf.mxu0
        %v4855 = vadd.f32 0.0, %v4854
        %v4856 = vpop.f32.mrf.mxu0
        %v4857 = vpop.f32.mrf.mxu0
        %v4858 = vadd.f32 0.0, %v4857
        %v4859 = vpop.f32.mrf.mxu0
        %4860 = vmatprep.mubr.bf16.mxu0 0
        %4861 = vmatmul.mubr.bf16.gmra.mxu0 %v4685
        %v4862 = vpop.f32.mrf.mxu0
        %v4863 = vadd.f32 0.0, %v4862
        %v4864 = vpop.f32.mrf.mxu0
        %v4865 = vpop.f32.mrf.mxu0
        %v4866 = vadd.f32 0.0, %v4865
        %v4867 = vpop.f32.mrf.mxu0
        %4868 = vmatprep.mubr.bf16.mxu0 0
        %4869 = vmatmul.mubr.bf16.gmra.mxu0 %v4686
        %v4870 = vpop.f32.mrf.mxu0
        %v4871 = vadd.f32 0.0, %v4870
        %v4872 = vpop.f32.mrf.mxu0
        %v4873 = vpop.f32.mrf.mxu0
        %v4874 = vadd.f32 0.0, %v4873
        %v4875 = vpop.f32.mrf.mxu0
        %4876 = vmatprep.mubr.bf16.mxu0 0
        %4877 = vmatmul.mubr.bf16.gmra.mxu0 %v4687
        %v4878 = vpop.f32.mrf.mxu0
        %v4879 = vadd.f32 0.0, %v4878
        %v4880 = vpop.f32.mrf.mxu0
        %v4881 = vpop.f32.mrf.mxu0
        %v4882 = vadd.f32 0.0, %v4881
        %v4883 = vpop.f32.mrf.mxu0
        %4884 = vmatprep.mubr.bf16.mxu0 0
        %4885 = vmatmul.mubr.bf16.gmra.mxu0 %v4688
        %v4886 = vpop.f32.mrf.mxu0
        %v4887 = vadd.f32 0.0, %v4886
        %v4888 = vpop.f32.mrf.mxu0
        %v4889 = vpop.f32.mrf.mxu0
        %v4890 = vadd.f32 0.0, %v4889
        %v4891 = vpop.f32.mrf.mxu0
        %4892 = vmatprep.mubr.bf16.mxu0 0
        %4893 = vmatmul.mubr.bf16.gmra.mxu0 %v4689
        %v4894 = vpop.f32.mrf.mxu0
        %v4895 = vadd.f32 0.0, %v4894
        %v4896 = vpop.f32.mrf.mxu0
        %v4897 = vpop.f32.mrf.mxu0
        %v4898 = vadd.f32 0.0, %v4897
        %v4899 = vpop.f32.mrf.mxu0
        %4900 = vmatprep.mubr.bf16.mxu0 0
        %4901 = vmatmul.mubr.bf16.gmra.mxu0 %v4690
        %v4902 = vpop.f32.mrf.mxu0
        %v4903 = vadd.f32 0.0, %v4902
        %v4904 = vpop.f32.mrf.mxu0
        %v4905 = vpop.f32.mrf.mxu0
        %v4906 = vadd.f32 0.0, %v4905
        %v4907 = vpop.f32.mrf.mxu0
        %4908 = vmatprep.mubr.bf16.mxu0 0
        %4909 = vmatmul.mubr.bf16.gmra.mxu0 %v4691
        %v4910 = vpop.f32.mrf.mxu0
        %v4911 = vadd.f32 0.0, %v4910
        %v4912 = vpop.f32.mrf.mxu0
        %v4913 = vpop.f32.mrf.mxu0
        %v4914 = vadd.f32 0.0, %v4913
        %v4915 = vpop.f32.mrf.mxu0
        %4916 = vdwg.mxu0
        %v4917 = vpack.c.bf16 %v4730, %v4727
        %v4918 = vpack.c.bf16 %v4738, %v4735
        %v4919 = vpack.c.bf16 %v4746, %v4743
        %v4920 = vpack.c.bf16 %v4754, %v4751
        %v4921 = vpack.c.bf16 %v4762, %v4759
        %v4922 = vpack.c.bf16 %v4770, %v4767
        %v4923 = vpack.c.bf16 %v4778, %v4775
        %v4924 = vpack.c.bf16 %v4786, %v4783
        %v4925 = vpack.c.bf16 %v4794, %v4791
        %v4926 = vpack.c.bf16 %v4802, %v4799
        %v4927 = vpack.c.bf16 %v4810, %v4807
        %v4928 = vpack.c.bf16 %v4818, %v4815
        %v4929 = vpack.c.bf16 %v4826, %v4823
        %v4930 = vpack.c.bf16 %v4834, %v4831
        %v4931 = vpack.c.bf16 %v4842, %v4839
        %v4932 = vpack.c.bf16 %v4850, %v4847
        %v4933 = vpack.c.bf16 %v4858, %v4855
        %v4934 = vpack.c.bf16 %v4866, %v4863
        %v4935 = vpack.c.bf16 %v4874, %v4871
        %v4936 = vpack.c.bf16 %v4882, %v4879
        %v4937 = vpack.c.bf16 %v4890, %v4887
        %v4938 = vpack.c.bf16 %v4898, %v4895
        %v4939 = vpack.c.bf16 %v4906, %v4903
        %v4940 = vpack.c.bf16 %v4914, %v4911
        %v4965 = vunpack.c.l.b16 %v4917
        %v4966 = vunpack.c.h.b16 %v4917
        %v4967 = vunpack.c.l.b16 %v4918
        %v4968 = vunpack.c.h.b16 %v4918
        %v4969 = vunpack.c.l.b16 %v4919
        %v4970 = vunpack.c.h.b16 %v4919
        %v4971 = vunpack.c.l.b16 %v4920
        %v4972 = vunpack.c.h.b16 %v4920
        %v4973 = vunpack.c.l.b16 %v4921
        %v4974 = vunpack.c.h.b16 %v4921
        %v4975 = vunpack.c.l.b16 %v4922
        %v4976 = vunpack.c.h.b16 %v4922
        %v4977 = vunpack.c.l.b16 %v4923
        %v4978 = vunpack.c.h.b16 %v4923
        %v4979 = vunpack.c.l.b16 %v4924
        %v4980 = vunpack.c.h.b16 %v4924
        %v4981 = vunpack.c.l.b16 %v4925
        %v4982 = vunpack.c.h.b16 %v4925
        %v4983 = vunpack.c.l.b16 %v4926
        %v4984 = vunpack.c.h.b16 %v4926
        %v4985 = vunpack.c.l.b16 %v4927
        %v4986 = vunpack.c.h.b16 %v4927
        %v4987 = vunpack.c.l.b16 %v4928
        %v4988 = vunpack.c.h.b16 %v4928
        %v4989 = vunpack.c.l.b16 %v4929
        %v4990 = vunpack.c.h.b16 %v4929
        %v4991 = vunpack.c.l.b16 %v4930
        %v4992 = vunpack.c.h.b16 %v4930
        %v4993 = vunpack.c.l.b16 %v4931
        %v4994 = vunpack.c.h.b16 %v4931
        %v4995 = vunpack.c.l.b16 %v4932
        %v4996 = vunpack.c.h.b16 %v4932
        %v4997 = vunpack.c.l.b16 %v4933
        %v4998 = vunpack.c.h.b16 %v4933
        %v4999 = vunpack.c.l.b16 %v4934
        %v5000 = vunpack.c.h.b16 %v4934
        %v5001 = vunpack.c.l.b16 %v4935
        %v5002 = vunpack.c.h.b16 %v4935
        %v5003 = vunpack.c.l.b16 %v4936
        %v5004 = vunpack.c.h.b16 %v4936
        %v5005 = vunpack.c.l.b16 %v4937
        %v5006 = vunpack.c.h.b16 %v4937
        %v5007 = vunpack.c.l.b16 %v4938
        %v5008 = vunpack.c.h.b16 %v4938
        %v5009 = vunpack.c.l.b16 %v4939
        %v5010 = vunpack.c.h.b16 %v4939
        %v5011 = vunpack.c.l.b16 %v4940
        %v5012 = vunpack.c.h.b16 %v4940
        %v5013 = vpack.c.b16 %v4965, %v4965
        %v5014 = vpack.c.b16 %v4966, %v4966
        %v5015 = vpack.c.b16 %v4967, %v4967
        %v5016 = vpack.c.b16 %v4968, %v4968
        %v5017 = vpack.c.b16 %v4969, %v4969
        %v5018 = vpack.c.b16 %v4970, %v4970
        %v5019 = vpack.c.b16 %v4971, %v4971
        %v5020 = vpack.c.b16 %v4972, %v4972
        %v5021 = vpack.c.b16 %v4973, %v4973
        %v5022 = vpack.c.b16 %v4974, %v4974
        %v5023 = vpack.c.b16 %v4975, %v4975
        %v5024 = vpack.c.b16 %v4976, %v4976
        %v5025 = vpack.c.b16 %v4977, %v4977
        %v5026 = vpack.c.b16 %v4978, %v4978
        %v5027 = vpack.c.b16 %v4979, %v4979
        %v5028 = vpack.c.b16 %v4980, %v4980
        %v5029 = vpack.c.b16 %v4981, %v4981
        %v5030 = vpack.c.b16 %v4982, %v4982
        %v5031 = vpack.c.b16 %v4983, %v4983
        %v5032 = vpack.c.b16 %v4984, %v4984
        %v5033 = vpack.c.b16 %v4985, %v4985
        %v5034 = vpack.c.b16 %v4986, %v4986
        %v5035 = vpack.c.b16 %v4987, %v4987
        %v5036 = vpack.c.b16 %v4988, %v4988
        %v5037 = vpack.c.b16 %v4989, %v4989
        %v5038 = vpack.c.b16 %v4990, %v4990
        %v5039 = vpack.c.b16 %v4991, %v4991
        %v5040 = vpack.c.b16 %v4992, %v4992
        %v5041 = vpack.c.b16 %v4993, %v4993
        %v5042 = vpack.c.b16 %v4994, %v4994
        %v5043 = vpack.c.b16 %v4995, %v4995
        %v5044 = vpack.c.b16 %v4996, %v4996
        %v5045 = vpack.c.b16 %v4997, %v4997
        %v5046 = vpack.c.b16 %v4998, %v4998
        %v5047 = vpack.c.b16 %v4999, %v4999
        %v5048 = vpack.c.b16 %v5000, %v5000
        %v5049 = vpack.c.b16 %v5001, %v5001
        %v5050 = vpack.c.b16 %v5002, %v5002
        %v5051 = vpack.c.b16 %v5003, %v5003
        %v5052 = vpack.c.b16 %v5004, %v5004
        %v5053 = vpack.c.b16 %v5005, %v5005
        %v5054 = vpack.c.b16 %v5006, %v5006
        %v5055 = vpack.c.b16 %v5007, %v5007
        %v5056 = vpack.c.b16 %v5008, %v5008
        %v5057 = vpack.c.b16 %v5009, %v5009
        %v5058 = vpack.c.b16 %v5010, %v5010
        %v5059 = vpack.c.b16 %v5011, %v5011
        %v5060 = vpack.c.b16 %v5012, %v5012
        %5061 = vrot.lane.b32.xlu0 %v5013, 112
        %v5062 = vpop.permute.xlu0 %5061
        %5063 = vrot.lane.b32.xlu0 %v5014, 112
        %v5064 = vpop.permute.xlu0 %5063
        %5065 = vrot.lane.b32.xlu0 %v5015, 112
        %v5066 = vpop.permute.xlu0 %5065
        %5067 = vrot.lane.b32.xlu0 %v5016, 112
        %v5068 = vpop.permute.xlu0 %5067
        %5069 = vrot.lane.b32.xlu0 %v5017, 112
        %v5070 = vpop.permute.xlu0 %5069
        %5071 = vrot.lane.b32.xlu0 %v5018, 112
        %v5072 = vpop.permute.xlu0 %5071
        %5073 = vrot.lane.b32.xlu0 %v5019, 112
        %v5074 = vpop.permute.xlu0 %5073
        %5075 = vrot.lane.b32.xlu0 %v5020, 112
        %v5076 = vpop.permute.xlu0 %5075
        %5077 = vrot.lane.b32.xlu0 %v5021, 112
        %v5078 = vpop.permute.xlu0 %5077
        %5079 = vrot.lane.b32.xlu0 %v5022, 112
        %v5080 = vpop.permute.xlu0 %5079
        %5081 = vrot.lane.b32.xlu0 %v5023, 112
        %v5082 = vpop.permute.xlu0 %5081
        %5083 = vrot.lane.b32.xlu0 %v5024, 112
        %v5084 = vpop.permute.xlu0 %5083
        %5085 = vrot.lane.b32.xlu0 %v5025, 112
        %v5086 = vpop.permute.xlu0 %5085
        %5087 = vrot.lane.b32.xlu0 %v5026, 112
        %v5088 = vpop.permute.xlu0 %5087
        %5089 = vrot.lane.b32.xlu0 %v5027, 112
        %v5090 = vpop.permute.xlu0 %5089
        %5091 = vrot.lane.b32.xlu0 %v5028, 112
        %v5092 = vpop.permute.xlu0 %5091
        %5093 = vrot.lane.b32.xlu0 %v5029, 112
        %v5094 = vpop.permute.xlu0 %5093
        %5095 = vrot.lane.b32.xlu0 %v5030, 112
        %v5096 = vpop.permute.xlu0 %5095
        %5097 = vrot.lane.b32.xlu0 %v5031, 112
        %v5098 = vpop.permute.xlu0 %5097
        %5099 = vrot.lane.b32.xlu0 %v5032, 112
        %v5100 = vpop.permute.xlu0 %5099
        %5101 = vrot.lane.b32.xlu0 %v5033, 112
        %v5102 = vpop.permute.xlu0 %5101
        %5103 = vrot.lane.b32.xlu0 %v5034, 112
        %v5104 = vpop.permute.xlu0 %5103
        %5105 = vrot.lane.b32.xlu0 %v5035, 112
        %v5106 = vpop.permute.xlu0 %5105
        %5107 = vrot.lane.b32.xlu0 %v5036, 112
        %v5108 = vpop.permute.xlu0 %5107
        %5109 = vrot.lane.b32.xlu0 %v5037, 112
        %v5110 = vpop.permute.xlu0 %5109
        %5111 = vrot.lane.b32.xlu0 %v5038, 112
        %v5112 = vpop.permute.xlu0 %5111
        %5113 = vrot.lane.b32.xlu0 %v5039, 112
        %v5114 = vpop.permute.xlu0 %5113
        %5115 = vrot.lane.b32.xlu0 %v5040, 112
        %v5116 = vpop.permute.xlu0 %5115
        %5117 = vrot.lane.b32.xlu0 %v5041, 112
        %v5118 = vpop.permute.xlu0 %5117
        %5119 = vrot.lane.b32.xlu0 %v5042, 112
        %v5120 = vpop.permute.xlu0 %5119
        %5121 = vrot.lane.b32.xlu0 %v5043, 112
        %v5122 = vpop.permute.xlu0 %5121
        %5123 = vrot.lane.b32.xlu0 %v5044, 112
        %v5124 = vpop.permute.xlu0 %5123
        %5125 = vrot.lane.b32.xlu0 %v5045, 112
        %v5126 = vpop.permute.xlu0 %5125
        %5127 = vrot.lane.b32.xlu0 %v5046, 112
        %v5128 = vpop.permute.xlu0 %5127
        %5129 = vrot.lane.b32.xlu0 %v5047, 112
        %v5130 = vpop.permute.xlu0 %5129
        %5131 = vrot.lane.b32.xlu0 %v5048, 112
        %v5132 = vpop.permute.xlu0 %5131
        %5133 = vrot.lane.b32.xlu0 %v5049, 112
        %v5134 = vpop.permute.xlu0 %5133
        %5135 = vrot.lane.b32.xlu0 %v5050, 112
        %v5136 = vpop.permute.xlu0 %5135
        %5137 = vrot.lane.b32.xlu0 %v5051, 112
        %v5138 = vpop.permute.xlu0 %5137
        %5139 = vrot.lane.b32.xlu0 %v5052, 112
        %v5140 = vpop.permute.xlu0 %5139
        %5141 = vrot.lane.b32.xlu0 %v5053, 112
        %v5142 = vpop.permute.xlu0 %5141
        %5143 = vrot.lane.b32.xlu0 %v5054, 112
        %v5144 = vpop.permute.xlu0 %5143
        %5145 = vrot.lane.b32.xlu0 %v5055, 112
        %v5146 = vpop.permute.xlu0 %5145
        %5147 = vrot.lane.b32.xlu0 %v5056, 112
        %v5148 = vpop.permute.xlu0 %5147
        %5149 = vrot.lane.b32.xlu0 %v5057, 112
        %v5150 = vpop.permute.xlu0 %5149
        %5151 = vrot.lane.b32.xlu0 %v5058, 112
        %v5152 = vpop.permute.xlu0 %5151
        %5153 = vrot.lane.b32.xlu0 %v5059, 112
        %v5154 = vpop.permute.xlu0 %5153
        %5155 = vrot.lane.b32.xlu0 %v5060, 112
        %v5156 = vpop.permute.xlu0 %5155
        %vm5205 = vcmask 1044352
        %5206 = vst.msk [vmem:[#allocation2] sm:$0xf] %vm5205, %v5062
        %5207 = vst.msk [vmem:[#allocation2 + $0x4] sm:$0xf] %vm5205, %v5064
        %5208 = vst.msk [vmem:[#allocation2 + $0x8] sm:$0xf] %vm5205, %v5066
        %5209 = vst.msk [vmem:[#allocation2 + $0xc] sm:$0xf] %vm5205, %v5068
        %5210 = vst.msk [vmem:[#allocation2 + $0x10] sm:$0xf] %vm5205, %v5070
        %5211 = vst.msk [vmem:[#allocation2 + $0x14] sm:$0xf] %vm5205, %v5072
        %5212 = vst.msk [vmem:[#allocation2 + $0x18] sm:$0xf] %vm5205, %v5074
        %5213 = vst.msk [vmem:[#allocation2 + $0x1c] sm:$0xf] %vm5205, %v5076
        %5214 = vst.msk [vmem:[#allocation2 + $0x20] sm:$0xf] %vm5205, %v5078
        %5215 = vst.msk [vmem:[#allocation2 + $0x24] sm:$0xf] %vm5205, %v5080
        %5216 = vst.msk [vmem:[#allocation2 + $0x28] sm:$0xf] %vm5205, %v5082
        %5217 = vst.msk [vmem:[#allocation2 + $0x2c] sm:$0xf] %vm5205, %v5084
        %5218 = vst.msk [vmem:[#allocation2 + $0x30] sm:$0xf] %vm5205, %v5086
        %5219 = vst.msk [vmem:[#allocation2 + $0x34] sm:$0xf] %vm5205, %v5088
        %5220 = vst.msk [vmem:[#allocation2 + $0x38] sm:$0xf] %vm5205, %v5090
        %5221 = vst.msk [vmem:[#allocation2 + $0x3c] sm:$0xf] %vm5205, %v5092
        %5222 = vst.msk [vmem:[#allocation2 + $0x40] sm:$0xf] %vm5205, %v5094
        %5223 = vst.msk [vmem:[#allocation2 + $0x44] sm:$0xf] %vm5205, %v5096
        %5224 = vst.msk [vmem:[#allocation2 + $0x48] sm:$0xf] %vm5205, %v5098
        %5225 = vst.msk [vmem:[#allocation2 + $0x4c] sm:$0xf] %vm5205, %v5100
        %5226 = vst.msk [vmem:[#allocation2 + $0x50] sm:$0xf] %vm5205, %v5102
        %5227 = vst.msk [vmem:[#allocation2 + $0x54] sm:$0xf] %vm5205, %v5104
        %5228 = vst.msk [vmem:[#allocation2 + $0x58] sm:$0xf] %vm5205, %v5106
        %5229 = vst.msk [vmem:[#allocation2 + $0x5c] sm:$0xf] %vm5205, %v5108
        %5230 = vst.msk [vmem:[#allocation2 + $0x60] sm:$0xf] %vm5205, %v5110
        %5231 = vst.msk [vmem:[#allocation2 + $0x64] sm:$0xf] %vm5205, %v5112
        %5232 = vst.msk [vmem:[#allocation2 + $0x68] sm:$0xf] %vm5205, %v5114
        %5233 = vst.msk [vmem:[#allocation2 + $0x6c] sm:$0xf] %vm5205, %v5116
        %5234 = vst.msk [vmem:[#allocation2 + $0x70] sm:$0xf] %vm5205, %v5118
        %5235 = vst.msk [vmem:[#allocation2 + $0x74] sm:$0xf] %vm5205, %v5120
        %5236 = vst.msk [vmem:[#allocation2 + $0x78] sm:$0xf] %vm5205, %v5122
        %5237 = vst.msk [vmem:[#allocation2 + $0x7c] sm:$0xf] %vm5205, %v5124
        %5238 = vst.msk [vmem:[#allocation2 + $0x80] sm:$0xf] %vm5205, %v5126
        %5239 = vst.msk [vmem:[#allocation2 + $0x84] sm:$0xf] %vm5205, %v5128
        %5240 = vst.msk [vmem:[#allocation2 + $0x88] sm:$0xf] %vm5205, %v5130
        %5241 = vst.msk [vmem:[#allocation2 + $0x8c] sm:$0xf] %vm5205, %v5132
        %5242 = vst.msk [vmem:[#allocation2 + $0x90] sm:$0xf] %vm5205, %v5134
        %5243 = vst.msk [vmem:[#allocation2 + $0x94] sm:$0xf] %vm5205, %v5136
        %5244 = vst.msk [vmem:[#allocation2 + $0x98] sm:$0xf] %vm5205, %v5138
        %5245 = vst.msk [vmem:[#allocation2 + $0x9c] sm:$0xf] %vm5205, %v5140
        %5246 = vst.msk [vmem:[#allocation2 + $0xa0] sm:$0xf] %vm5205, %v5142
        %5247 = vst.msk [vmem:[#allocation2 + $0xa4] sm:$0xf] %vm5205, %v5144
        %5248 = vst.msk [vmem:[#allocation2 + $0xa8] sm:$0xf] %vm5205, %v5146
        %5249 = vst.msk [vmem:[#allocation2 + $0xac] sm:$0xf] %vm5205, %v5148
        %5250 = vst.msk [vmem:[#allocation2 + $0xb0] sm:$0xf] %vm5205, %v5150
        %5251 = vst.msk [vmem:[#allocation2 + $0xb4] sm:$0xf] %vm5205, %v5152
        %5252 = vst.msk [vmem:[#allocation2 + $0xb8] sm:$0xf] %vm5205, %v5154
        %5253 = vst.msk [vmem:[#allocation2 + $0xbc] sm:$0xf] %vm5205, %v5156
        %v5254 = vld [vmem:[#allocation6] sm:$0xff]
        %v5255 = vld [vmem:[#allocation6 + $0x8] sm:$0xf]
        %v5256 = vld [vmem:[#allocation6 + $0xc] sm:$0xff]
        %v5257 = vld [vmem:[#allocation6 + $0x14] sm:$0xf]
        %v5258 = vld [vmem:[#allocation2] sm:$0xf]
        %v5259 = vld [vmem:[#allocation2 + $0x4] sm:$0xf]
        %v5260 = vld [vmem:[#allocation2 + $0x8] sm:$0xf]
        %v5261 = vld [vmem:[#allocation2 + $0xc] sm:$0xf]
        %v5262 = vld [vmem:[#allocation2 + $0x10] sm:$0xf]
        %v5263 = vld [vmem:[#allocation2 + $0x14] sm:$0xf]
        %v5264 = vld [vmem:[#allocation2 + $0x18] sm:$0xf]
        %v5265 = vld [vmem:[#allocation2 + $0x1c] sm:$0xf]
        %v5266 = vld [vmem:[#allocation2 + $0x20] sm:$0xf]
        %v5267 = vld [vmem:[#allocation2 + $0x24] sm:$0xf]
        %v5268 = vld [vmem:[#allocation2 + $0x28] sm:$0xf]
        %v5269 = vld [vmem:[#allocation2 + $0x2c] sm:$0xf]
        %v5270 = vld [vmem:[#allocation2 + $0x30] sm:$0xf]
        %v5271 = vld [vmem:[#allocation2 + $0x34] sm:$0xf]
        %v5272 = vld [vmem:[#allocation2 + $0x38] sm:$0xf]
        %v5273 = vld [vmem:[#allocation2 + $0x3c] sm:$0xf]
        %v5274 = vld [vmem:[#allocation2 + $0x40] sm:$0xf]
        %v5275 = vld [vmem:[#allocation2 + $0x44] sm:$0xf]
        %v5276 = vld [vmem:[#allocation2 + $0x48] sm:$0xf]
        %v5277 = vld [vmem:[#allocation2 + $0x4c] sm:$0xf]
        %v5278 = vld [vmem:[#allocation2 + $0x50] sm:$0xf]
        %v5279 = vld [vmem:[#allocation2 + $0x54] sm:$0xf]
        %v5280 = vld [vmem:[#allocation2 + $0x58] sm:$0xf]
        %v5281 = vld [vmem:[#allocation2 + $0x5c] sm:$0xf]
        %v5282 = vld [vmem:[#allocation2 + $0x60] sm:$0xf]
        %v5283 = vld [vmem:[#allocation2 + $0x64] sm:$0xf]
        %v5284 = vld [vmem:[#allocation2 + $0x68] sm:$0xf]
        %v5285 = vld [vmem:[#allocation2 + $0x6c] sm:$0xf]
        %v5286 = vld [vmem:[#allocation2 + $0x70] sm:$0xf]
        %v5287 = vld [vmem:[#allocation2 + $0x74] sm:$0xf]
        %v5288 = vld [vmem:[#allocation2 + $0x78] sm:$0xf]
        %v5289 = vld [vmem:[#allocation2 + $0x7c] sm:$0xf]
        %v5290 = vld [vmem:[#allocation2 + $0x80] sm:$0xf]
        %v5291 = vld [vmem:[#allocation2 + $0x84] sm:$0xf]
        %v5292 = vld [vmem:[#allocation2 + $0x88] sm:$0xf]
        %v5293 = vld [vmem:[#allocation2 + $0x8c] sm:$0xf]
        %v5294 = vld [vmem:[#allocation2 + $0x90] sm:$0xf]
        %v5295 = vld [vmem:[#allocation2 + $0x94] sm:$0xf]
        %v5296 = vld [vmem:[#allocation2 + $0x98] sm:$0xf]
        %v5297 = vld [vmem:[#allocation2 + $0x9c] sm:$0xf]
        %v5298 = vld [vmem:[#allocation2 + $0xa0] sm:$0xf]
        %v5299 = vld [vmem:[#allocation2 + $0xa4] sm:$0xf]
        %v5300 = vld [vmem:[#allocation2 + $0xa8] sm:$0xf]
        %v5301 = vld [vmem:[#allocation2 + $0xac] sm:$0xf]
        %v5302 = vld [vmem:[#allocation2 + $0xb0] sm:$0xf]
        %v5303 = vld [vmem:[#allocation2 + $0xb4] sm:$0xf]
        %v5304 = vld [vmem:[#allocation2 + $0xb8] sm:$0xf]
        %v5305 = vld [vmem:[#allocation2 + $0xbc] sm:$0xf]
        %v5310 = vunpack.c.l.b16 %v5254
        %v5311 = vunpack.c.h.b16 %v5254
        %v5312 = vunpack.c.l.b16 %v5255
        %v5313 = vunpack.c.l.b16 %v5256
        %v5314 = vunpack.c.h.b16 %v5256
        %v5315 = vunpack.c.l.b16 %v5257
        %v5316 = vpack.c.b16 %v5313, %v5310
        %v5317 = vpack.c.b16 %v5314, %v5311
        %v5318 = vpack.c.b16 %v5315, %v5312
        %v5370 = vunpack.c.l.b16 %v5258
        %v5371 = vunpack.c.l.b16 %v5259
        %v5372 = vunpack.c.l.b16 %v5260
        %v5373 = vunpack.c.l.b16 %v5261
        %v5374 = vunpack.c.l.b16 %v5262
        %v5375 = vunpack.c.l.b16 %v5263
        %v5376 = vunpack.c.l.b16 %v5264
        %v5377 = vunpack.c.l.b16 %v5265
        %v5378 = vunpack.c.l.b16 %v5266
        %v5379 = vunpack.c.l.b16 %v5267
        %v5380 = vunpack.c.l.b16 %v5268
        %v5381 = vunpack.c.l.b16 %v5269
        %v5382 = vunpack.c.l.b16 %v5270
        %v5383 = vunpack.c.l.b16 %v5271
        %v5384 = vunpack.c.l.b16 %v5272
        %v5385 = vunpack.c.l.b16 %v5273
        %v5386 = vunpack.c.l.b16 %v5274
        %v5387 = vunpack.c.l.b16 %v5275
        %v5388 = vunpack.c.l.b16 %v5276
        %v5389 = vunpack.c.l.b16 %v5277
        %v5390 = vunpack.c.l.b16 %v5278
        %v5391 = vunpack.c.l.b16 %v5279
        %v5392 = vunpack.c.l.b16 %v5280
        %v5393 = vunpack.c.l.b16 %v5281
        %v5394 = vunpack.c.l.b16 %v5282
        %v5395 = vunpack.c.l.b16 %v5283
        %v5396 = vunpack.c.l.b16 %v5284
        %v5397 = vunpack.c.l.b16 %v5285
        %v5398 = vunpack.c.l.b16 %v5286
        %v5399 = vunpack.c.l.b16 %v5287
        %v5400 = vunpack.c.l.b16 %v5288
        %v5401 = vunpack.c.l.b16 %v5289
        %v5402 = vunpack.c.l.b16 %v5290
        %v5403 = vunpack.c.l.b16 %v5291
        %v5404 = vunpack.c.l.b16 %v5292
        %v5405 = vunpack.c.l.b16 %v5293
        %v5406 = vunpack.c.l.b16 %v5294
        %v5407 = vunpack.c.l.b16 %v5295
        %v5408 = vunpack.c.l.b16 %v5296
        %v5409 = vunpack.c.l.b16 %v5297
        %v5410 = vunpack.c.l.b16 %v5298
        %v5411 = vunpack.c.l.b16 %v5299
        %v5412 = vunpack.c.l.b16 %v5300
        %v5413 = vunpack.c.l.b16 %v5301
        %v5414 = vunpack.c.l.b16 %v5302
        %v5415 = vunpack.c.l.b16 %v5303
        %v5416 = vunpack.c.l.b16 %v5304
        %v5417 = vunpack.c.l.b16 %v5305
        %v5418 = vpack.c.b16 %v5371, %v5370
        %v5419 = vpack.c.b16 %v5373, %v5372
        %v5420 = vpack.c.b16 %v5375, %v5374
        %v5421 = vpack.c.b16 %v5377, %v5376
        %v5422 = vpack.c.b16 %v5379, %v5378
        %v5423 = vpack.c.b16 %v5381, %v5380
        %v5424 = vpack.c.b16 %v5383, %v5382
        %v5425 = vpack.c.b16 %v5385, %v5384
        %v5426 = vpack.c.b16 %v5387, %v5386
        %v5427 = vpack.c.b16 %v5389, %v5388
        %v5428 = vpack.c.b16 %v5391, %v5390
        %v5429 = vpack.c.b16 %v5393, %v5392
        %v5430 = vpack.c.b16 %v5395, %v5394
        %v5431 = vpack.c.b16 %v5397, %v5396
        %v5432 = vpack.c.b16 %v5399, %v5398
        %v5433 = vpack.c.b16 %v5401, %v5400
        %v5434 = vpack.c.b16 %v5403, %v5402
        %v5435 = vpack.c.b16 %v5405, %v5404
        %v5436 = vpack.c.b16 %v5407, %v5406
        %v5437 = vpack.c.b16 %v5409, %v5408
        %v5438 = vpack.c.b16 %v5411, %v5410
        %v5439 = vpack.c.b16 %v5413, %v5412
        %v5440 = vpack.c.b16 %v5415, %v5414
        %v5441 = vpack.c.b16 %v5417, %v5416
        %5466 = vmatprep.subr.bf16.mxu0 0
        %5467 = vmatpush1.bf16.msra.mxu0 %v5425
        %5468 = vmatprep.subr.bf16.mxu0 0
        %5469 = vmatpush1.bf16.msra.mxu0 %v5424
        %5470 = vmatprep.subr.bf16.mxu0 0
        %5471 = vmatpush1.bf16.msra.mxu0 %v5423
        %5472 = vmatprep.subr.bf16.mxu0 0
        %5473 = vmatpush1.bf16.msra.mxu0 %v5422
        %5474 = vmatprep.subr.bf16.mxu0 0
        %5475 = vmatpush1.bf16.msra.mxu0 %v5421
        %5476 = vmatprep.subr.bf16.mxu0 0
        %5477 = vmatpush1.bf16.msra.mxu0 %v5420
        %5478 = vmatprep.subr.bf16.mxu0 0
        %5479 = vmatpush1.bf16.msra.mxu0 %v5419
        %5480 = vmatprep.subr.bf16.mxu0 0
        %5481 = vmatpush1.bf16.msra.mxu0 %v5418
        %5482 = vmatprep.subr.bf16.mxu0 0
        %5483 = vmatpush2.bf16.msra.mxu0 %v5433
        %5484 = vmatprep.subr.bf16.mxu0 0
        %5485 = vmatpush2.bf16.msra.mxu0 %v5432
        %5486 = vmatprep.subr.bf16.mxu0 0
        %5487 = vmatpush2.bf16.msra.mxu0 %v5431
        %5488 = vmatprep.subr.bf16.mxu0 0
        %5489 = vmatpush2.bf16.msra.mxu0 %v5430
        %5490 = vmatprep.subr.bf16.mxu0 0
        %5491 = vmatpush2.bf16.msra.mxu0 %v5429
        %5492 = vmatprep.subr.bf16.mxu0 0
        %5493 = vmatpush2.bf16.msra.mxu0 %v5428
        %5494 = vmatprep.subr.bf16.mxu0 0
        %5495 = vmatpush2.bf16.msra.mxu0 %v5427
        %5496 = vmatprep.subr.bf16.mxu0 0
        %5497 = vmatpush2.bf16.msra.mxu0 %v5426
        %5498 = vmatprep.mubr.bf16.mxu0 %v5317
        %5499 = vmatmul.mubr.bf16.gmra.mxu0 %v5316
        %v5500 = vpop.f32.mrf.mxu0
        %v5501 = vadd.f32 0.49995, %v5500
        %v5502 = vpop.f32.mrf.mxu0
        %v5503 = vpop.f32.mrf.mxu0
        %v5504 = vadd.f32 0.49995, %v5503
        %v5505 = vpop.f32.mrf.mxu0
        %5506 = vdwg.mxu0
        %5507 = vmatprep.subr.bf16.mxu0 0
        %5508 = vmatpush1.bf16.msra.mxu0 %v5441
        %5509 = vmatprep.subr.bf16.mxu0 0
        %5510 = vmatpush1.bf16.msra.mxu0 %v5440
        %5511 = vmatprep.subr.bf16.mxu0 0
        %5512 = vmatpush1.bf16.msra.mxu0 %v5439
        %5513 = vmatprep.subr.bf16.mxu0 0
        %5514 = vmatpush1.bf16.msra.mxu0 %v5438
        %5515 = vmatprep.subr.bf16.mxu0 0
        %5516 = vmatpush1.bf16.msra.mxu0 %v5437
        %5517 = vmatprep.subr.bf16.mxu0 0
        %5518 = vmatpush1.bf16.msra.mxu0 %v5436
        %5519 = vmatprep.subr.bf16.mxu0 0
        %5520 = vmatpush1.bf16.msra.mxu0 %v5435
        %5521 = vmatprep.subr.bf16.mxu0 0
        %5522 = vmatpush1.bf16.msra.mxu0 %v5434
        %5523 = vmatprep.subr.bf16.mxu0 0
        %5524 = vmatpush2.bf16.msra.mxu0 0
        %5525 = vmatprep.subr.bf16.mxu0 0
        %5526 = vmatpush2.bf16.msra.mxu0 0
        %5527 = vmatprep.subr.bf16.mxu0 0
        %5528 = vmatpush2.bf16.msra.mxu0 0
        %5529 = vmatprep.subr.bf16.mxu0 0
        %5530 = vmatpush2.bf16.msra.mxu0 0
        %5531 = vmatprep.subr.bf16.mxu0 0
        %5532 = vmatpush2.bf16.msra.mxu0 0
        %5533 = vmatprep.subr.bf16.mxu0 0
        %5534 = vmatpush2.bf16.msra.mxu0 0
        %5535 = vmatprep.subr.bf16.mxu0 0
        %5536 = vmatpush2.bf16.msra.mxu0 0
        %5537 = vmatprep.subr.bf16.mxu0 0
        %5538 = vmatpush2.bf16.msra.mxu0 0
        %5539 = vmatprep.mubr.bf16.mxu0 0
        %5540 = vmatmul.mubr.bf16.gmra.mxu0 %v5318
        %v5541 = vpop.f32.mrf.mxu0
        %v5542 = vadd.f32 %v5501, %v5541
        %v5543 = vpop.f32.mrf.mxu0
        %v5544 = vpop.f32.mrf.mxu0
        %v5545 = vadd.f32 %v5504, %v5544
        %v5546 = vpop.f32.mrf.mxu0
        %5547 = vdwg.mxu0
        %v5548 = vlaneseq
        %v5549 = vand.u32 %v5548, 127
        %vm5550 = vcmp.lt.s32.totalorder %v5549, 0
        %v5551 = vsub.s32 0, %v5549
        %v5552 = vsel %vm5550, %v5551, %v5549
        %v5553 = vshrl.u32 %v5552, 4
        %v5554 = vand.u32 %v5552, 15
        %v5555 = vsub.s32 0, %v5554
        %v5556 = vsel %vm5550, %v5555, %v5554
        %vm5557 = vcmp.ne.s32.totalorder %v5556, 0
        %vm5558 = vcmp.lt.s32.totalorder %v5556, 0
        %vm5559 = vmand %vm5558, %vm5557
        %v5560 = vadd.s32 %v5556, 16
        %v5561 = vsel %vm5559, %v5560, %v5556
        %v5562 = vlaneseq
        %v5563 = vshrl.u32 %v5562, 7
        %v5564 = vadd.s32 %v5563, 8
        %vm5565 = vcmp.ne.s32.totalorder %v5561, 15
        %vm5566 = vcmp.ne.s32.totalorder %v5561, 0
        %vm5567 = vcmp.ne.s32.totalorder %v5563, 15
        %vm5568 = vcmp.ne.s32.totalorder %v5564, 15
        %vm5569 = vcmp.ne.s32.totalorder %v5563, 0
        %vm5570 = vcmp.ne.s32.totalorder %v5564, 0
        %5571 = vrot.lane.b32.xlu0 %v5542, 127
        %v5572 = vpop.permute.xlu0 %5571
        %5573 = vrot.lane.b32.xlu0 %v5545, 127
        %v5574 = vpop.permute.xlu0 %5573
        %v5575 = vsel %vm5565, %v5572, 0.0
        %v5576 = vsel %vm5565, %v5574, 0.0
        %5577 = vrot.lane.b32.xlu0 %v5542, 1
        %v5578 = vpop.permute.xlu0 %5577
        %5579 = vrot.lane.b32.xlu0 %v5545, 1
        %v5580 = vpop.permute.xlu0 %5579
        %v5581 = vsel %vm5566, %v5578, 0.0
        %v5582 = vsel %vm5566, %v5580, 0.0
        %v5583 = vsub.f32 %v5575, %v5581
        %v5584 = vsub.f32 %v5576, %v5582
        %v5585 = vmul.f32 %v5542, 2.0
        %v5586 = vmul.f32 %v5545, 2.0
        %v5587 = vadd.f32 %v5581, %v5585
        %v5588 = vadd.f32 %v5582, %v5586
        %v5589 = vadd.f32 %v5587, %v5575
        %v5590 = vadd.f32 %v5588, %v5576
        %v5591 = vrot.slane %v5583, 7
        %v5592 = vrot.slane %v5584, 7
        %vm5593 = vcmp.lt.s32.totalorder %v5563, 1
        %v5594 = vsel %vm5593, %v5591, %v5592
        %v5595 = vsel %vm5593, %v5592, %v5591
        %v5596 = vsel %vm5569, %v5595, 0.0
        %v5597 = vsel %vm5570, %v5594, 0.0
        %v5598 = vmul.f32 %v5583, 2.0
        %v5599 = vmul.f32 %v5584, 2.0
        %v5600 = vadd.f32 %v5596, %v5598
        %v5601 = vadd.f32 %v5597, %v5599
        %v5602 = vrot.slane %v5583, 1
        %v5603 = vrot.slane %v5584, 1
        %vm5604 = vcmp.lt.s32.totalorder %v5563, 7
        %v5605 = vsel %vm5604, %v5602, %v5603
        %v5606 = vsel %vm5604, %v5603, %v5602
        %v5607 = vsel %vm5567, %v5605, 0.0
        %v5608 = vsel %vm5568, %v5606, 0.0
        %v5609 = vadd.f32 %v5600, %v5607
        %v5610 = vadd.f32 %v5601, %v5608
        %v5611 = vrot.slane %v5589, 1
        %v5612 = vrot.slane %v5590, 1
        %v5613 = vsel %vm5604, %v5611, %v5612
        %v5614 = vsel %vm5604, %v5612, %v5611
        %v5615 = vsel %vm5567, %v5613, 0.0
        %v5616 = vsel %vm5568, %v5614, 0.0
        %v5617 = vrot.slane %v5589, 7
        %v5618 = vrot.slane %v5590, 7
        %v5619 = vsel %vm5593, %v5617, %v5618
        %v5620 = vsel %vm5593, %v5618, %v5617
        %v5621 = vsel %vm5569, %v5620, 0.0
        %v5622 = vsel %vm5570, %v5619, 0.0
        %v5623 = vsub.f32 %v5615, %v5621
        %v5624 = vsub.f32 %v5616, %v5622
        %v5625 = vand.u32 2147483647, %v5609
        %v5626 = vand.u32 2147483647, %v5610
        %v5627 = vsub.f32 0.0, %v5625
        %v5628 = vsub.f32 0.0, %v5626
        %v5629 = vmul.f32 %v5627, 1.442695
        %v5630 = vpow.pop %v5629
        %v5631 = vmul.f32 %v5628, 1.442695
        %v5632 = vpow.pop %v5631
        %5633 = vst [vmem:[%s204] sm:$0xff] %v5630
        %5634 = vst [vmem:[%s204 + $0x8] sm:$0xff] %v5632
        %v5635 = vand.u32 2147483647, %v5623
        %v5636 = vand.u32 2147483647, %v5624
        %v5637 = vsub.f32 0.0, %v5635
        %v5638 = vsub.f32 0.0, %v5636
        %v5639 = vmul.f32 %v5637, 1.442695
        %v5640 = vpow.pop %v5639
        %v5641 = vmul.f32 %v5638, 1.442695
        %v5642 = vpow.pop %v5641
        %s5643 = scalar_lea.vmem %s204, 16 [#allocation8]
        %5644 = vst [vmem:[%s5643] sm:$0xff] %v5640
        %5645 = vst [vmem:[%s5643 + $0x8] sm:$0xff] %v5642
        %s5646 = sand.u32 %s97, 1
        %s5647 = scalar_lea.sflag [#allocation5], %s5646
        %s5648 = sand.u32 %s97, 1
        %s5649 = smul.addr %s5648, 32
        %s5650 = scalar_lea.vmem [#allocation8], %s5649
        // Predicated region
        $region41: #{tpu_custom_call.1} parent=31 // pred_check
          %p5651 = pneg %p107
        $region42: #{tpu_custom_call.1} parent=31 // pred_check_branch
          %5653 = sbr.rel (%p5651) target = $region44
        $region43: #{tpu_custom_call.1} parent=31 // pred_region
          %s5655 = ssub.s32 512, 512
          %5656 = vsyncadd %s5647, %s5655
          %s5657 = smul.addr %s21, 4
          %s5658 = smul.addr %s5657, 128
          %s5659 = scalar_lea.hbm %s3, %s5658
          %s5660 = sshll.u32 %s5650, 4
          %s5661 = int_to_ptr.vmem [resolvable:$true] %s5660
          %5666 = dma.vmem_to_hbm [thread:$0]  %s5661, 512, %s5659, %s5647, 128, 128, 8
        $region44: #{tpu_custom_call.1} parent=31 // pred_fallthru
          _
      $region32: #{tpu_custom_call.1} parent=5 // pred_fallthru
        _
      %p5667 = scmp.le.s32.totalorder 2, %s16
      // Predicated region
      $region45: #{tpu_custom_call.1} parent=5 // pred_check
        %p5668 = pneg %p5667
      $region46: #{tpu_custom_call.1} parent=5 // pred_check_branch
        %5670 = sbr.rel (%p5668) target = $region48
      $region47: #{tpu_custom_call.1} parent=5 // pred_region
        %s5671 = ssub.s32 %s16, 2
        // Predicated region
        $region49: #{tpu_custom_call.1} parent=47 // pred_check
          %p5672 = pneg %p113
        $region50: #{tpu_custom_call.1} parent=47 // pred_check_branch
          %5674 = sbr.rel (%p5672) target = $region52
        $region51: #{tpu_custom_call.1} parent=47 // pred_region
          %s5675 = sand.u32 %s98, 1
          %s5676 = scalar_lea.sflag [#allocation5], %s5675
          %s5677 = sand.u32 %s98, 1
          %s5678 = smul.addr %s5677, 32
          %s5679 = scalar_lea.vmem [#allocation8], %s5678
          %5680 = dma.done %s5676, 512
        $region52: #{tpu_custom_call.1} parent=47 // pred_fallthru
          _
      $region48: #{tpu_custom_call.1} parent=5 // pred_fallthru
        _
    $region6: #{tpu_custom_call.1} parent=1 // loop_footer
      %s20 = sadd.s32 1, %s16
    $region7: #{tpu_custom_call.1} parent=1 // loop_footer_branch
      %15 = sbr.rel target = $region3
    $region8: #{tpu_custom_call.1} parent=1 // loop_exit
      _
    %5681 = vsyncpa [#allocation4], 1
    %s5682 = scalar_lea.sflag [#allocation4], 1
    %5683 = vsyncpa %s5682, 1
    %5684 = vsyncpa [#allocation7], 1
    %5685 = vsyncpa [#allocation5], 1
    %s5686 = scalar_lea.sflag [#allocation5], 1
    %5687 = vsyncpa %s5686, 1

</llo_original>
